<compile_context>
chip_gen: v7x
topology: tpu7x:2x2x1
jax: 0.10.0
libtpu: 0.0.40
codegen_flags: <defaults>
</compile_context>

<pallas_src>
import numpy as np

import jax
import jax.numpy as jnp
from jax.experimental import pallas as pl
from jax.experimental.pallas import tpu as pltpu

# ---------------- synthetic config (stands in for cfg / MANO) ----------------
BATCH = 2
IMG_C, IMG_H, IMG_W = 3, 64, 64
NUM_STAGE = 2
CHANNEL = 64                      # backbone.fc.in_features surrogate
C_MID = CHANNEL // 4              # feat_mid channels (ResNet layer2 out)
NUM_FMS = 4
HEATMAP_SIZE = 8
FEAT_HW = HEATMAP_SIZE // 4       # feat_high spatial side (layer3/4 stride 4)
FEATURE_SIZE = FEAT_HW * FEAT_HW  # = 4
NUM_VERT = 16
NUM_JOINT = 4
NUM_TOTAL = NUM_VERT + NUM_JOINT
IN_DIM = NUM_FMS * FEATURE_SIZE + 3   # GraphConv input feature dim = 19
HM_HW = HEATMAP_SIZE * HEATMAP_SIZE   # 64
LANES = BATCH * HM_HW                 # 128 = batch-major spatial, the lane axis everywhere

# packed-output row offsets (single lane-dense (OUT_ROWS, 128) store)
OUT_COORD, OUT_LHM, OUT_DM, OUT_ROWS = 0, 24, 48, 72


# --------------------------- constant slab packing ----------------------------
class _Slab:
    """Packs 2-D constants into one (rows, width) slab with aligned row offsets."""

    def __init__(self, width, align):
        self.width, self.align = width, align
        self.blocks, self.off, self.rows = [], {}, 0

    def add(self, name, arr):
        assert name not in self.off, name
        a = np.asarray(arr, dtype=np.float32)
        r, c = a.shape
        assert c <= self.width, (name, a.shape, self.width)
        pad = (-r) % self.align
        blk = np.zeros((r + pad, self.width), np.float32)
        blk[:r, :c] = a
        self.off[name] = (self.rows, r, c)
        self.blocks.append(blk)
        self.rows += r + pad

    def finalize(self, dtype):
        slab = np.concatenate(self.blocks, axis=0)
        return jnp.asarray(slab, dtype=dtype), self.off


def _take(ref, off, name):
    r0, nrow, ncol = off[name]
    return ref[r0:r0 + nrow, 0:ncol]


def _lap(adj):
    # matches PyTorch GraphConv.laplacian: A / (rowsum(A) + 1e-5)
    a = np.asarray(adj, np.float32)
    return a / (a.sum(1, keepdims=True) + 1e-5)


def build_constants(params):
    """One-time host-side (numpy) prep of every kernel constant, packed into 3 slabs."""
    wbig = _Slab(2 * LANES, 16)   # bf16, 256 wide: fused SAIGB-reshuffle + graph-conv-1 weights
    wsm = _Slab(LANES, 16)        # bf16, 128 wide: every other matmul operand
    vsm = _Slab(LANES, 8)         # f32,  128 wide: biases / folded constants / beta

    tmpl = np.asarray(params['template'], np.float32)                       # (V, 3)

    wsm.add('mid_w', params['mid_w'])
    vsm.add('mid_b', params['mid_b'])

    # 4x4 average pool of the 8x8 maps, acting on the (batch-major spatial) lane axis
    p4 = np.zeros((LANES, BATCH * FEATURE_SIZE), np.float32)
    for b in range(BATCH):
        for r in range(HEATMAP_SIZE):
            for c in range(HEATMAP_SIZE):
                q = (r // 4) * FEAT_HW + (c // 4)
                p4[b * HM_HW + r * HEATMAP_SIZE + c, b * FEATURE_SIZE + q] = 1.0 / 16.0
    wsm.add('p4', p4)

    # per-batch (64-lane segment) sum matrix for the softmax normalisation
    seg = np.zeros((LANES, LANES), np.float32)
    for b in range(BATCH):
        seg[b * HM_HW:(b + 1) * HM_HW, b * HM_HW:(b + 1) * HM_HW] = 1.0
    wsm.add('seg', seg)

    # soft-argmax / depth-sum weights (1/(H/2) scale folded in) + affine offset row
    wx = (np.arange(HM_HW) % HEATMAP_SIZE).astype(np.float32)
    wy = (np.arange(HM_HW) // HEATMAP_SIZE).astype(np.float32)
    inv_half = 1.0 / float(HEATMAP_SIZE // 2)
    wc_xy = np.zeros((LANES, LANES), np.float32)
    wc_z = np.zeros((LANES, LANES), np.float32)
    coff = np.zeros((1, LANES), np.float32)
    for b in range(BATCH):
        rows = slice(b * HM_HW, (b + 1) * HM_HW)
        wc_xy[rows, 3 * b + 0] = wx * inv_half
        wc_xy[rows, 3 * b + 1] = wy * inv_half
        wc_z[rows, 3 * b + 2] = 1.0
        coff[0, 3 * b + 0] = -1.0
        coff[0, 3 * b + 1] = -1.0
    wsm.add('wc_xy', wc_xy)
    wsm.add('wc_z', wc_z)
    vsm.add('coff', coff)

    for i, st in enumerate(params['stages']):
        p = f's{i}_'
        wsm.add(p + 'hi_w', st['hi_w'])
        vsm.add(p + 'hi_b', st['hi_b'])

        # SAIGB grouped 1x1 conv, rows permuted to m-major (m*NUM_VERT + v)
        sgw = np.asarray(st['saigb_w'], np.float32).reshape(NUM_VERT, NUM_FMS, CHANNEL)
        sgb = np.asarray(st['saigb_b'], np.float32).reshape(NUM_VERT, NUM_FMS, 1)
        wsm.add(p + 'sg_w', sgw.transpose(1, 0, 2).reshape(NUM_FMS * NUM_VERT, CHANNEL))
        vsm.add(p + 'sg_b', sgb.transpose(1, 0, 2).reshape(NUM_FMS * NUM_VERT, 1))

        w1 = {'xy': np.asarray(st['xy_w1'], np.float32), 'z': np.asarray(st['z_w1'], np.float32)}
        b1 = {'xy': np.asarray(st['xy_b1'], np.float32), 'z': np.asarray(st['z_b1'], np.float32)}
        w2 = {'xy': np.asarray(st['xy_w2'], np.float32), 'z': np.asarray(st['z_w2'], np.float32)}
        b2 = {'xy': np.asarray(st['xy_b2'], np.float32), 'z': np.asarray(st['z_b2'], np.float32)}
        L1 = {'xy': _lap(st['xy_adj1']), 'z': _lap(st['z_adj1'])}
        L2 = {'xy': _lap(st['xy_adj2']), 'z': _lap(st['z_adj2'])}

        # Fused SAIGB-reshuffle + graph-conv-1 fc right weights.  For feature-map group m,
        # W1M[m] maps the (b,s) columns of the grouped conv output straight onto the
        # 256-lane [xy(b0,b1) | z(b0,b1)] layout -> the MXU performs the layout shuffle
        # the old kernel did with ragged 4-lane slices/concats.
        for m in range(NUM_FMS):
            wm = np.zeros((BATCH * FEATURE_SIZE, 2 * LANES), np.float32)
            for b in range(BATCH):
                for bi, br in enumerate(('xy', 'z')):
                    wm[b * FEATURE_SIZE:(b + 1) * FEATURE_SIZE,
                       bi * LANES + b * HM_HW: bi * LANES + (b + 1) * HM_HW] = \
                        w1[br][:, m * FEATURE_SIZE:(m + 1) * FEATURE_SIZE].T
            wbig.add(p + f'w1m{m}', wm)

        for br in ('xy', 'z'):
            wsm.add(p + 'L1' + br, L1[br])
            wsm.add(p + 'L2' + br, L2[br])
            # per-batch block-diagonal second graph-conv weight (x @ W.T for both batches)
            wsm.add(p + 'w2' + br, np.kron(np.eye(BATCH, dtype=np.float32), w2[br].T))
            # graph-conv-1 constant: template contribution (through L1 and w1) + bias (folded)
            tpart = L1[br] @ (tmpl @ w1[br][:, NUM_FMS * FEATURE_SIZE:].T)   # (V, HM_HW)
            vsm.add(p + 'c1' + br, np.tile(tpart, (1, BATCH)) + np.tile(b1[br], (1, BATCH)))
            vsm.add(p + 'b2' + br, np.tile(b2[br], (1, BATCH)))
        wsm.add(p + 'm2p_hm', st['m2p_hm_w'])
        wsm.add(p + 'm2p_dm', st['m2p_dm_w'])
        vsm.add(p + 'm2p_hm_b', st['m2p_hm_b'])
        vsm.add(p + 'm2p_dm_b', st['m2p_dm_b'])
        beta = np.asarray(st['beta'], np.float32)
        vsm.add(p + 'beta', beta)                       # all NUM_TOTAL channels (last stage)
        vsm.add(p + 'beta_j', beta[NUM_VERT:])          # joint channels only (earlier stages)
        if i > 0:
            fw = np.asarray(st['fuse_w'], np.float32)   # (C_MID, C_MID + 2*NUM_JOINT)
            wsm.add(p + 'fuse_mid', fw[:, :C_MID])
            wsm.add(p + 'fuse_lhm', fw[:, C_MID:C_MID + NUM_JOINT])
            wsm.add(p + 'fuse_dm', fw[:, C_MID + NUM_JOINT:])
            vsm.add(p + 'fuse_b', st['fuse_b'])

    wbig_arr, wbig_off = wbig.finalize(jnp.bfloat16)
    wsm_arr, wsm_off = wsm.finalize(jnp.bfloat16)
    vsm_arr, vsm_off = vsm.finalize(jnp.float32)
    return (wbig_arr, wsm_arr, vsm_arr), (wbig_off, wsm_off, vsm_off)


# ------------------------------ parameters -----------------------------------
def init_params(key):
    ks = iter(jax.random.split(key, 64))

    def w(shape, scale=0.1):
        return scale * jax.random.normal(next(ks), shape, dtype=jnp.float32)

    p = {}
    p['template'] = w((NUM_VERT, 3), 1.0)                 # MANO template surrogate
    p['mid_w'] = w((C_MID, IMG_C))
    p['mid_b'] = w((C_MID, 1))
    p['stages'] = []
    for i in range(NUM_STAGE):
        st = {}
        st['hi_w'] = w((CHANNEL, C_MID))
        st['hi_b'] = w((CHANNEL, 1))
        st['saigb_w'] = w((NUM_FMS * NUM_VERT, CHANNEL))
        st['saigb_b'] = w((NUM_FMS * NUM_VERT, 1))
        for br in ('xy', 'z'):
            st[f'{br}_adj1'] = jnp.eye(NUM_VERT, dtype=jnp.float32)   # GraphConv adj init = eye
            st[f'{br}_w1'] = w((HM_HW, IN_DIM))
            st[f'{br}_b1'] = w((1, HM_HW))
            st[f'{br}_adj2'] = jnp.eye(NUM_VERT, dtype=jnp.float32)
            st[f'{br}_w2'] = w((HM_HW, HM_HW))
            st[f'{br}_b2'] = w((1, HM_HW))
        st['m2p_hm_w'] = w((NUM_JOINT, NUM_VERT))
        st['m2p_hm_b'] = w((NUM_JOINT, 1))
        st['m2p_dm_w'] = w((NUM_JOINT, NUM_VERT))
        st['m2p_dm_b'] = w((NUM_JOINT, 1))
        st['beta'] = jax.random.uniform(next(ks), (NUM_TOTAL, 1),
                                        minval=0.5, maxval=1.5, dtype=jnp.float32)
        if i > 0:
            st['fuse_w'] = w((C_MID, C_MID + NUM_JOINT * 2))
            st['fuse_b'] = w((C_MID, 1))
        p['stages'].append(st)
    return p


# ------------------------------ fused forward ---------------------------------
def make_forward(offsets):
    wbig_off, wsm_off, vsm_off = offsets

    def kernel(x_ref, wbig_ref, wsm_ref, vsm_ref, out_ref):
        Wb = lambda n: _take(wbig_ref, wbig_off, n)
        Ws = lambda n: _take(wsm_ref, wsm_off, n)
        Vc = lambda n: _take(vsm_ref, vsm_off, n)

        def mx(a, b):
            # MXU matmul: bf16 operands, f32 accumulation (elementwise math stays f32)
            return jnp.dot(a.astype(jnp.bfloat16), b.astype(jnp.bfloat16),
                           preferred_element_type=jnp.float32)

        def leaky(y):
            return jnp.where(y >= 0.0, y, 0.1 * y)

        def soft_heat(hm_xy, hm_z, beta):
            # per-(channel, batch) softmax over the 64-lane spatial segment of each row:
            # full-row max is an exact stabiliser; segment sums via one constant MXU matmul.
            s = hm_xy * beta
            e = jnp.exp(s - jnp.max(s, axis=1, keepdims=True))
            seg_sum = mx(e, Ws('seg'))
            score = e * pl.reciprocal(seg_sum + 1e-30, approx=False)
            return score, score * hm_z

        def stage_core(feat, i):
            p = f's{i}_'
            # extract_high surrogate: 4x4 avg-pool (matmul) + 1x1 conv + LeakyReLU(0.1)
            # TODO(synk): pretrained ResNet layer3/layer4 replaced by this surrogate.
            pooled = mx(feat, Ws('p4'))                                         # (C_MID, B*FS)
            fh = leaky(mx(Ws(p + 'hi_w'), pooled) + Vc(p + 'hi_b'))             # (CHANNEL, B*FS)
            # SAIGB grouped 1x1 conv + LeakyReLU(0.1); rows m-major (m*NV + v)
            g = leaky(mx(Ws(p + 'sg_w'), fh) + Vc(p + 'sg_b'))                  # (NF*NV, B*FS)
            # fused SAIGB reshuffle + graph-conv-1 fc: lanes = [xy(b0,b1) | z(b0,b1)]
            P = mx(g[0:NUM_VERT], Wb(p + 'w1m0'))
            for m in range(1, NUM_FMS):
                P = P + mx(g[m * NUM_VERT:(m + 1) * NUM_VERT], Wb(p + f'w1m{m}'))
            # graph conv 1: per-branch Laplacian + (template+bias) constant + LeakyReLU(0.1)
            hxy = leaky(mx(Ws(p + 'L1xy'), P[:, :LANES]) + Vc(p + 'c1xy'))      # (NV, B*HW)
            hz = leaky(mx(Ws(p + 'L1z'), P[:, LANES:]) + Vc(p + 'c1z'))
            # graph conv 2 (Dropout is identity at inference, no activation)
            mxy = mx(Ws(p + 'L2xy'), mx(hxy, Ws(p + 'w2xy'))) + Vc(p + 'b2xy')
            mz = mx(Ws(p + 'L2z'), mx(hz, Ws(p + 'w2z'))) + Vc(p + 'b2z')
            # mesh2pose linears
            jxy = mx(Ws(p + 'm2p_hm'), mxy) + Vc(p + 'm2p_hm_b')                # (NJ, B*HW)
            jz = mx(Ws(p + 'm2p_dm'), mz) + Vc(p + 'm2p_dm_b')
            return mxy, mz, jxy, jz

        # extract_mid surrogate tail: 1x1 conv + LeakyReLU(0.1)
        # TODO(synk): pretrained ResNet stem/layer1/layer2, prev_heatmap, fuse_latent,
        #             extract_weight / extract_visib ("wVis") branches not reproducible.
        feat_mid = leaky(mx(Ws('mid_w'), x_ref[...]) + Vc('mid_b'))             # (C_MID, B*HW)

        feat = feat_mid
        sc_j = dm_j = None
        for i in range(NUM_STAGE):
            if i > 0:
                # fuse conv (no activation) over [feat_mid ; joint latent hm ; joint depth]
                feat = (mx(Ws(f's{i}_fuse_mid'), feat_mid)
                        + mx(Ws(f's{i}_fuse_lhm'), sc_j)
                        + mx(Ws(f's{i}_fuse_dm'), dm_j)
                        + Vc(f's{i}_fuse_b'))
            mxy, mz, jxy, jz = stage_core(feat, i)
            if i < NUM_STAGE - 1:
                # earlier stages: only the joint maps feed the next fuse (no dead work)
                sc_j, dm_j = soft_heat(jxy, jz, Vc(f's{i}_beta_j'))
            else:
                hm_xy = jnp.concatenate([mxy, jxy], axis=0)                      # (NT, B*HW)
                hm_z = jnp.concatenate([mz, jz], axis=0)
                score, dmaps = soft_heat(hm_xy, hm_z, Vc(f's{i}_beta'))
                # soft-argmax, depth sum and coordinate affine as two constant matmuls
                coords = mx(score, Ws('wc_xy')) + mx(dmaps, Ws('wc_z')) + Vc('coff')
                out_ref[OUT_COORD:OUT_COORD + NUM_TOTAL, :] = coords
                out_ref[OUT_LHM:OUT_LHM + NUM_TOTAL, :] = score
                out_ref[OUT_DM:OUT_DM + NUM_TOTAL, :] = dmaps

    vmem = pltpu.MemorySpace.VMEM

    @jax.jit
    def forward(slabs, img):
        wbig_arr, wsm_arr, vsm_arr = slabs
        b = img.shape[0]
        # extract_mid front half: /8 average-pool surrogate for the ResNet stem (shapes kept)
        x = img.reshape(b, IMG_C, HEATMAP_SIZE, IMG_H // HEATMAP_SIZE,
                        HEATMAP_SIZE, IMG_W // HEATMAP_SIZE).mean(axis=(3, 5))
        x_packed = jnp.transpose(x.reshape(b, IMG_C, HM_HW), (1, 0, 2)) \
                      .reshape(IMG_C, b * HM_HW)                                 # (C, B*HW)

        raw = pl.pallas_call(
            kernel,
            out_shape=jax.ShapeDtypeStruct((OUT_ROWS, LANES), jnp.float32),
            in_specs=[pl.BlockSpec(memory_space=vmem)] * 4,
            out_specs=pl.BlockSpec(memory_space=vmem),
        )(x_packed, wbig_arr, wsm_arr, vsm_arr)

        coords = raw[OUT_COORD:OUT_COORD + NUM_TOTAL, :3 * b] \
            .reshape(NUM_TOTAL, b, 3).transpose(1, 0, 2)
        lhm = raw[OUT_LHM:OUT_LHM + NUM_TOTAL, :b * HM_HW] \
            .reshape(NUM_TOTAL, b, HM_HW).transpose(1, 0, 2)
        dm = raw[OUT_DM:OUT_DM + NUM_TOTAL, :b * HM_HW] \
            .reshape(NUM_TOTAL, b, HM_HW).transpose(1, 0, 2)
        # eval path of SAR: only the last stage's coordinates are returned
        # TODO(synk): training-loss branch (L1 / NormalVector / EdgeLength / MSE) not implemented.
        return {'coords': coords}, lhm, dm

    return forward


# ----------------------------------- main ------------------------------------
if __name__ == "__main__":
    key = jax.random.PRNGKey(0)
    pkey, ikey = jax.random.split(key)
    params = init_params(pkey)

    # one-time host-side constant prep (numpy) -- hoisted out of the jitted forward
    slabs, offsets = build_constants(params)
    forward = make_forward(offsets)

    img = jax.random.normal(ikey, (BATCH, IMG_C, IMG_H, IMG_W), dtype=jnp.float32)

    outs, lhm, dm = forward(slabs, img)
    jax.block_until_ready((outs['coords'], lhm, dm))

    assert outs['coords'].shape == (BATCH, NUM_TOTAL, 3)
    assert lhm.shape == (BATCH, NUM_TOTAL, HM_HW)
    assert dm.shape == (BATCH, NUM_TOTAL, HM_HW)
    assert bool(jnp.all(jnp.isfinite(outs['coords'])))
    print("KERNEL_OK")
</pallas_src>

<mosaic_0001>
module attributes {stable_mosaic.version = 11 : i64} {
  func.func @kernel(%arg0: memref<3x128xf32, #tpu.memory_space<vmem>>, %arg1: memref<128x256xbf16, #tpu.memory_space<vmem>>, %arg2: memref<1536x128xbf16, #tpu.memory_space<vmem>>, %arg3: memref<488x128xf32, #tpu.memory_space<vmem>>, %arg4: memref<72x128xf32, #tpu.memory_space<vmem>>) attributes {dimension_semantics = [], scalar_prefetch = 0 : i64, scratch_operands = 0 : i64, tpu.core_type = #tpu.core_type<tc>} {
    %c0 = arith.constant 0 : index
    %c0_0 = arith.constant 0 : index
    %0 = vector.load %arg2[%c0, %c0_0] : memref<1536x128xbf16, #tpu.memory_space<vmem>>, vector<16x3xbf16>
    %c0_1 = arith.constant 0 : index
    %c0_2 = arith.constant 0 : index
    %1 = vector.load %arg0[%c0_1, %c0_2] : memref<3x128xf32, #tpu.memory_space<vmem>>, vector<3x128xf32>
    %2 = arith.truncf %1 : vector<3x128xf32> to vector<3x128xbf16>
    %cst = arith.constant dense<0.000000e+00> : vector<16x128xf32>
    %3 = tpu.matmul %0, %2, %cst {dimension_numbers = #tpu.dot_dimension_numbers<[1], [0], [0], [1], [0, 0, 1, 1], [], []>} : vector<16x3xbf16>, vector<3x128xbf16>, vector<16x128xf32> -> vector<16x128xf32>
    %c0_3 = arith.constant 0 : index
    %c0_4 = arith.constant 0 : index
    %4 = vector.load %arg3[%c0_3, %c0_4] : memref<488x128xf32, #tpu.memory_space<vmem>>, vector<16x1xf32>
    %5 = vector.broadcast %4 : vector<16x1xf32> to vector<16x128xf32>
    %6 = arith.addf %3, %5 : vector<16x128xf32>
    %cst_5 = arith.constant 0.000000e+00 : f32
    %7 = vector.broadcast %cst_5 : f32 to vector<16x128xf32>
    %8 = arith.cmpf oge, %6, %7 : vector<16x128xf32>
    %cst_6 = arith.constant 1.000000e-01 : f32
    %9 = vector.broadcast %cst_6 : f32 to vector<16x128xf32>
    %10 = arith.mulf %9, %6 : vector<16x128xf32>
    %11 = arith.select %8, %6, %10 : vector<16x128xi1>, vector<16x128xf32>
    %c16 = arith.constant 16 : index
    %c0_7 = arith.constant 0 : index
    %12 = vector.load %arg2[%c16, %c0_7] : memref<1536x128xbf16, #tpu.memory_space<vmem>>, vector<128x8xbf16>
    %13 = arith.truncf %11 : vector<16x128xf32> to vector<16x128xbf16>
    %cst_8 = arith.constant dense<0.000000e+00> : vector<16x8xf32>
    %14 = tpu.matmul %13, %12, %cst_8 {dimension_numbers = #tpu.dot_dimension_numbers<[1], [0], [0], [1], [0, 0, 1, 1], [], []>} : vector<16x128xbf16>, vector<128x8xbf16>, vector<16x8xf32> -> vector<16x8xf32>
    %c528 = arith.constant 528 : index
    %c0_9 = arith.constant 0 : index
    %15 = vector.load %arg2[%c528, %c0_9] : memref<1536x128xbf16, #tpu.memory_space<vmem>>, vector<64x16xbf16>
    %16 = arith.truncf %14 : vector<16x8xf32> to vector<16x8xbf16>
    %cst_10 = arith.constant dense<0.000000e+00> : vector<64x8xf32>
    %17 = tpu.matmul %15, %16, %cst_10 {dimension_numbers = #tpu.dot_dimension_numbers<[1], [0], [0], [1], [0, 0, 1, 1], [], []>} : vector<64x16xbf16>, vector<16x8xbf16>, vector<64x8xf32> -> vector<64x8xf32>
    %c24 = arith.constant 24 : index
    %c0_11 = arith.constant 0 : index
    %18 = vector.load %arg3[%c24, %c0_11] : memref<488x128xf32, #tpu.memory_space<vmem>>, vector<64x1xf32>
    %19 = vector.broadcast %18 : vector<64x1xf32> to vector<64x8xf32>
    %20 = arith.addf %17, %19 : vector<64x8xf32>
    %cst_12 = arith.constant 0.000000e+00 : f32
    %21 = vector.broadcast %cst_12 : f32 to vector<64x8xf32>
    %22 = arith.cmpf oge, %20, %21 : vector<64x8xf32>
    %cst_13 = arith.constant 1.000000e-01 : f32
    %23 = vector.broadcast %cst_13 : f32 to vector<64x8xf32>
    %24 = arith.mulf %23, %20 : vector<64x8xf32>
    %25 = arith.select %22, %20, %24 : vector<64x8xi1>, vector<64x8xf32>
    %c592 = arith.constant 592 : index
    %c0_14 = arith.constant 0 : index
    %26 = vector.load %arg2[%c592, %c0_14] : memref<1536x128xbf16, #tpu.memory_space<vmem>>, vector<64x64xbf16>
    %27 = arith.truncf %25 : vector<64x8xf32> to vector<64x8xbf16>
    %cst_15 = arith.constant dense<0.000000e+00> : vector<64x8xf32>
    %28 = tpu.matmul %26, %27, %cst_15 {dimension_numbers = #tpu.dot_dimension_numbers<[1], [0], [0], [1], [0, 0, 1, 1], [], []>} : vector<64x64xbf16>, vector<64x8xbf16>, vector<64x8xf32> -> vector<64x8xf32>
    %c88 = arith.constant 88 : index
    %c0_16 = arith.constant 0 : index
    %29 = vector.load %arg3[%c88, %c0_16] : memref<488x128xf32, #tpu.memory_space<vmem>>, vector<64x1xf32>
    %30 = vector.broadcast %29 : vector<64x1xf32> to vector<64x8xf32>
    %31 = arith.addf %28, %30 : vector<64x8xf32>
    %cst_17 = arith.constant 0.000000e+00 : f32
    %32 = vector.broadcast %cst_17 : f32 to vector<64x8xf32>
    %33 = arith.cmpf oge, %31, %32 : vector<64x8xf32>
    %cst_18 = arith.constant 1.000000e-01 : f32
    %34 = vector.broadcast %cst_18 : f32 to vector<64x8xf32>
    %35 = arith.mulf %34, %31 : vector<64x8xf32>
    %36 = arith.select %33, %31, %35 : vector<64x8xi1>, vector<64x8xf32>
    %37 = vector.extract_strided_slice %36 {offsets = [0, 0], sizes = [16, 8], strides = [1, 1]} : vector<64x8xf32> to vector<16x8xf32>
    %c0_19 = arith.constant 0 : index
    %c0_20 = arith.constant 0 : index
    %38 = vector.load %arg1[%c0_19, %c0_20] : memref<128x256xbf16, #tpu.memory_space<vmem>>, vector<8x256xbf16>
    %39 = arith.truncf %37 : vector<16x8xf32> to vector<16x8xbf16>
    %cst_21 = arith.constant dense<0.000000e+00> : vector<16x256xf32>
    %40 = tpu.matmul %39, %38, %cst_21 {dimension_numbers = #tpu.dot_dimension_numbers<[1], [0], [0], [1], [0, 0, 1, 1], [], []>} : vector<16x8xbf16>, vector<8x256xbf16>, vector<16x256xf32> -> vector<16x256xf32>
    %41 = vector.extract_strided_slice %36 {offsets = [16, 0], sizes = [16, 8], strides = [1, 1]} : vector<64x8xf32> to vector<16x8xf32>
    %c16_22 = arith.constant 16 : index
    %c0_23 = arith.constant 0 : index
    %42 = vector.load %arg1[%c16_22, %c0_23] : memref<128x256xbf16, #tpu.memory_space<vmem>>, vector<8x256xbf16>
    %43 = arith.truncf %41 : vector<16x8xf32> to vector<16x8xbf16>
    %cst_24 = arith.constant dense<0.000000e+00> : vector<16x256xf32>
    %44 = tpu.matmul %43, %42, %cst_24 {dimension_numbers = #tpu.dot_dimension_numbers<[1], [0], [0], [1], [0, 0, 1, 1], [], []>} : vector<16x8xbf16>, vector<8x256xbf16>, vector<16x256xf32> -> vector<16x256xf32>
    %45 = arith.addf %40, %44 : vector<16x256xf32>
    %46 = vector.extract_strided_slice %36 {offsets = [32, 0], sizes = [16, 8], strides = [1, 1]} : vector<64x8xf32> to vector<16x8xf32>
    %c32 = arith.constant 32 : index
    %c0_25 = arith.constant 0 : index
    %47 = vector.load %arg1[%c32, %c0_25] : memref<128x256xbf16, #tpu.memory_space<vmem>>, vector<8x256xbf16>
    %48 = arith.truncf %46 : vector<16x8xf32> to vector<16x8xbf16>
    %cst_26 = arith.constant dense<0.000000e+00> : vector<16x256xf32>
    %49 = tpu.matmul %48, %47, %cst_26 {dimension_numbers = #tpu.dot_dimension_numbers<[1], [0], [0], [1], [0, 0, 1, 1], [], []>} : vector<16x8xbf16>, vector<8x256xbf16>, vector<16x256xf32> -> vector<16x256xf32>
    %50 = arith.addf %45, %49 : vector<16x256xf32>
    %51 = vector.extract_strided_slice %36 {offsets = [48, 0], sizes = [16, 8], strides = [1, 1]} : vector<64x8xf32> to vector<16x8xf32>
    %c48 = arith.constant 48 : index
    %c0_27 = arith.constant 0 : index
    %52 = vector.load %arg1[%c48, %c0_27] : memref<128x256xbf16, #tpu.memory_space<vmem>>, vector<8x256xbf16>
    %53 = arith.truncf %51 : vector<16x8xf32> to vector<16x8xbf16>
    %cst_28 = arith.constant dense<0.000000e+00> : vector<16x256xf32>
    %54 = tpu.matmul %53, %52, %cst_28 {dimension_numbers = #tpu.dot_dimension_numbers<[1], [0], [0], [1], [0, 0, 1, 1], [], []>} : vector<16x8xbf16>, vector<8x256xbf16>, vector<16x256xf32> -> vector<16x256xf32>
    %55 = arith.addf %50, %54 : vector<16x256xf32>
    %c656 = arith.constant 656 : index
    %c0_29 = arith.constant 0 : index
    %56 = vector.load %arg2[%c656, %c0_29] : memref<1536x128xbf16, #tpu.memory_space<vmem>>, vector<16x16xbf16>
    %57 = vector.extract_strided_slice %55 {offsets = [0, 0], sizes = [16, 128], strides = [1, 1]} : vector<16x256xf32> to vector<16x128xf32>
    %58 = arith.truncf %57 : vector<16x128xf32> to vector<16x128xbf16>
    %cst_30 = arith.constant dense<0.000000e+00> : vector<16x128xf32>
    %59 = tpu.matmul %56, %58, %cst_30 {dimension_numbers = #tpu.dot_dimension_numbers<[1], [0], [0], [1], [0, 0, 1, 1], [], []>} : vector<16x16xbf16>, vector<16x128xbf16>, vector<16x128xf32> -> vector<16x128xf32>
    %c152 = arith.constant 152 : index
    %c0_31 = arith.constant 0 : index
    %60 = vector.load %arg3[%c152, %c0_31] : memref<488x128xf32, #tpu.memory_space<vmem>>, vector<16x128xf32>
    %61 = arith.addf %59, %60 : vector<16x128xf32>
    %cst_32 = arith.constant 0.000000e+00 : f32
    %62 = vector.broadcast %cst_32 : f32 to vector<16x128xf32>
    %63 = arith.cmpf oge, %61, %62 : vector<16x128xf32>
    %cst_33 = arith.constant 1.000000e-01 : f32
    %64 = vector.broadcast %cst_33 : f32 to vector<16x128xf32>
    %65 = arith.mulf %64, %61 : vector<16x128xf32>
    %66 = arith.select %63, %61, %65 : vector<16x128xi1>, vector<16x128xf32>
    %c816 = arith.constant 816 : index
    %c0_34 = arith.constant 0 : index
    %67 = vector.load %arg2[%c816, %c0_34] : memref<1536x128xbf16, #tpu.memory_space<vmem>>, vector<16x16xbf16>
    %68 = vector.extract_strided_slice %55 {offsets = [0, 128], sizes = [16, 128], strides = [1, 1]} : vector<16x256xf32> to vector<16x128xf32>
    %69 = arith.truncf %68 : vector<16x128xf32> to vector<16x128xbf16>
    %cst_35 = arith.constant dense<0.000000e+00> : vector<16x128xf32>
    %70 = tpu.matmul %67, %69, %cst_35 {dimension_numbers = #tpu.dot_dimension_numbers<[1], [0], [0], [1], [0, 0, 1, 1], [], []>} : vector<16x16xbf16>, vector<16x128xbf16>, vector<16x128xf32> -> vector<16x128xf32>
    %c176 = arith.constant 176 : index
    %c0_36 = arith.constant 0 : index
    %71 = vector.load %arg3[%c176, %c0_36] : memref<488x128xf32, #tpu.memory_space<vmem>>, vector<16x128xf32>
    %72 = arith.addf %70, %71 : vector<16x128xf32>
    %cst_37 = arith.constant 0.000000e+00 : f32
    %73 = vector.broadcast %cst_37 : f32 to vector<16x128xf32>
    %74 = arith.cmpf oge, %72, %73 : vector<16x128xf32>
    %cst_38 = arith.constant 1.000000e-01 : f32
    %75 = vector.broadcast %cst_38 : f32 to vector<16x128xf32>
    %76 = arith.mulf %75, %72 : vector<16x128xf32>
    %77 = arith.select %74, %72, %76 : vector<16x128xi1>, vector<16x128xf32>
    %c672 = arith.constant 672 : index
    %c0_39 = arith.constant 0 : index
    %78 = vector.load %arg2[%c672, %c0_39] : memref<1536x128xbf16, #tpu.memory_space<vmem>>, vector<16x16xbf16>
    %c688 = arith.constant 688 : index
    %c0_40 = arith.constant 0 : index
    %79 = vector.load %arg2[%c688, %c0_40] : memref<1536x128xbf16, #tpu.memory_space<vmem>>, vector<128x128xbf16>
    %80 = arith.truncf %66 : vector<16x128xf32> to vector<16x128xbf16>
    %cst_41 = arith.constant dense<0.000000e+00> : vector<16x128xf32>
    %81 = tpu.matmul %80, %79, %cst_41 {dimension_numbers = #tpu.dot_dimension_numbers<[1], [0], [0], [1], [0, 0, 1, 1], [], []>} : vector<16x128xbf16>, vector<128x128xbf16>, vector<16x128xf32> -> vector<16x128xf32>
    %82 = arith.truncf %81 : vector<16x128xf32> to vector<16x128xbf16>
    %cst_42 = arith.constant dense<0.000000e+00> : vector<16x128xf32>
    %83 = tpu.matmul %78, %82, %cst_42 {dimension_numbers = #tpu.dot_dimension_numbers<[1], [0], [0], [1], [0, 0, 1, 1], [], []>} : vector<16x16xbf16>, vector<16x128xbf16>, vector<16x128xf32> -> vector<16x128xf32>
    %c168 = arith.constant 168 : index
    %c0_43 = arith.constant 0 : index
    %84 = vector.load %arg3[%c168, %c0_43] : memref<488x128xf32, #tpu.memory_space<vmem>>, vector<1x128xf32>
    %85 = vector.broadcast %84 : vector<1x128xf32> to vector<16x128xf32>
    %86 = arith.addf %83, %85 : vector<16x128xf32>
    %c832 = arith.constant 832 : index
    %c0_44 = arith.constant 0 : index
    %87 = vector.load %arg2[%c832, %c0_44] : memref<1536x128xbf16, #tpu.memory_space<vmem>>, vector<16x16xbf16>
    %c848 = arith.constant 848 : index
    %c0_45 = arith.constant 0 : index
    %88 = vector.load %arg2[%c848, %c0_45] : memref<1536x128xbf16, #tpu.memory_space<vmem>>, vector<128x128xbf16>
    %89 = arith.truncf %77 : vector<16x128xf32> to vector<16x128xbf16>
    %cst_46 = arith.constant dense<0.000000e+00> : vector<16x128xf32>
    %90 = tpu.matmul %89, %88, %cst_46 {dimension_numbers = #tpu.dot_dimension_numbers<[1], [0], [0], [1], [0, 0, 1, 1], [], []>} : vector<16x128xbf16>, vector<128x128xbf16>, vector<16x128xf32> -> vector<16x128xf32>
    %91 = arith.truncf %90 : vector<16x128xf32> to vector<16x128xbf16>
    %cst_47 = arith.constant dense<0.000000e+00> : vector<16x128xf32>
    %92 = tpu.matmul %87, %91, %cst_47 {dimension_numbers = #tpu.dot_dimension_numbers<[1], [0], [0], [1], [0, 0, 1, 1], [], []>} : vector<16x16xbf16>, vector<16x128xbf16>, vector<16x128xf32> -> vector<16x128xf32>
    %c192 = arith.constant 192 : index
    %c0_48 = arith.constant 0 : index
    %93 = vector.load %arg3[%c192, %c0_48] : memref<488x128xf32, #tpu.memory_space<vmem>>, vector<1x128xf32>
    %94 = vector.broadcast %93 : vector<1x128xf32> to vector<16x128xf32>
    %95 = arith.addf %92, %94 : vector<16x128xf32>
    %c976 = arith.constant 976 : index
    %c0_49 = arith.constant 0 : index
    %96 = vector.load %arg2[%c976, %c0_49] : memref<1536x128xbf16, #tpu.memory_space<vmem>>, vector<4x16xbf16>
    %97 = arith.truncf %86 : vector<16x128xf32> to vector<16x128xbf16>
    %cst_50 = arith.constant dense<0.000000e+00> : vector<4x128xf32>
    %98 = tpu.matmul %96, %97, %cst_50 {dimension_numbers = #tpu.dot_dimension_numbers<[1], [0], [0], [1], [0, 0, 1, 1], [], []>} : vector<4x16xbf16>, vector<16x128xbf16>, vector<4x128xf32> -> vector<4x128xf32>
    %c200 = arith.constant 200 : index
    %c0_51 = arith.constant 0 : index
    %99 = vector.load %arg3[%c200, %c0_51] : memref<488x128xf32, #tpu.memory_space<vmem>>, vector<4x1xf32>
    %100 = vector.broadcast %99 : vector<4x1xf32> to vector<4x128xf32>
    %101 = arith.addf %98, %100 : vector<4x128xf32>
    %c992 = arith.constant 992 : index
    %c0_52 = arith.constant 0 : index
    %102 = vector.load %arg2[%c992, %c0_52] : memref<1536x128xbf16, #tpu.memory_space<vmem>>, vector<4x16xbf16>
    %103 = arith.truncf %95 : vector<16x128xf32> to vector<16x128xbf16>
    %cst_53 = arith.constant dense<0.000000e+00> : vector<4x128xf32>
    %104 = tpu.matmul %102, %103, %cst_53 {dimension_numbers = #tpu.dot_dimension_numbers<[1], [0], [0], [1], [0, 0, 1, 1], [], []>} : vector<4x16xbf16>, vector<16x128xbf16>, vector<4x128xf32> -> vector<4x128xf32>
    %c208 = arith.constant 208 : index
    %c0_54 = arith.constant 0 : index
    %105 = vector.load %arg3[%c208, %c0_54] : memref<488x128xf32, #tpu.memory_space<vmem>>, vector<4x1xf32>
    %106 = vector.broadcast %105 : vector<4x1xf32> to vector<4x128xf32>
    %107 = arith.addf %104, %106 : vector<4x128xf32>
    %c240 = arith.constant 240 : index
    %c0_55 = arith.constant 0 : index
    %108 = vector.load %arg3[%c240, %c0_55] : memref<488x128xf32, #tpu.memory_space<vmem>>, vector<4x1xf32>
    %109 = vector.broadcast %108 : vector<4x1xf32> to vector<4x128xf32>
    %110 = arith.mulf %101, %109 : vector<4x128xf32>
    %cst_56 = arith.constant dense<0xFF800000> : vector<4xf32>
    %111 = vector.multi_reduction <maximumf>, %110, %cst_56 [1] : vector<4x128xf32> to vector<4xf32>
    %112 = vector.shape_cast %111 : vector<4xf32> to vector<4x1xf32>
    %113 = vector.broadcast %112 : vector<4x1xf32> to vector<4x128xf32>
    %114 = arith.subf %110, %113 : vector<4x128xf32>
    %115 = math.exp %114 : vector<4x128xf32>
    %c144 = arith.constant 144 : index
    %c0_57 = arith.constant 0 : index
    %116 = vector.load %arg2[%c144, %c0_57] : memref<1536x128xbf16, #tpu.memory_space<vmem>>, vector<128x128xbf16>
    %117 = arith.truncf %115 : vector<4x128xf32> to vector<4x128xbf16>
    %cst_58 = arith.constant dense<0.000000e+00> : vector<4x128xf32>
    %118 = tpu.matmul %117, %116, %cst_58 {dimension_numbers = #tpu.dot_dimension_numbers<[1], [0], [0], [1], [0, 0, 1, 1], [], []>} : vector<4x128xbf16>, vector<128x128xbf16>, vector<4x128xf32> -> vector<4x128xf32>
    %cst_59 = arith.constant 1.000000e-30 : f32
    %119 = vector.broadcast %cst_59 : f32 to vector<4x128xf32>
    %120 = arith.addf %118, %119 : vector<4x128xf32>
    %121 = tpu.reciprocal %120 : vector<4x128xf32> -> vector<4x128xf32>
    %122 = arith.mulf %115, %121 : vector<4x128xf32>
    %123 = arith.mulf %122, %107 : vector<4x128xf32>
    %c1488 = arith.constant 1488 : index
    %c0_60 = arith.constant 0 : index
    %124 = vector.load %arg2[%c1488, %c0_60] : memref<1536x128xbf16, #tpu.memory_space<vmem>>, vector<16x16xbf16>
    %125 = arith.truncf %11 : vector<16x128xf32> to vector<16x128xbf16>
    %cst_61 = arith.constant dense<0.000000e+00> : vector<16x128xf32>
    %126 = tpu.matmul %124, %125, %cst_61 {dimension_numbers = #tpu.dot_dimension_numbers<[1], [0], [0], [1], [0, 0, 1, 1], [], []>} : vector<16x16xbf16>, vector<16x128xbf16>, vector<16x128xf32> -> vector<16x128xf32>
    %c1504 = arith.constant 1504 : index
    %c0_62 = arith.constant 0 : index
    %127 = vector.load %arg2[%c1504, %c0_62] : memref<1536x128xbf16, #tpu.memory_space<vmem>>, vector<16x4xbf16>
    %128 = arith.truncf %122 : vector<4x128xf32> to vector<4x128xbf16>
    %cst_63 = arith.constant dense<0.000000e+00> : vector<16x128xf32>
    %129 = tpu.matmul %127, %128, %cst_63 {dimension_numbers = #tpu.dot_dimension_numbers<[1], [0], [0], [1], [0, 0, 1, 1], [], []>} : vector<16x4xbf16>, vector<4x128xbf16>, vector<16x128xf32> -> vector<16x128xf32>
    %130 = arith.addf %126, %129 : vector<16x128xf32>
    %c1520 = arith.constant 1520 : index
    %c0_64 = arith.constant 0 : index
    %131 = vector.load %arg2[%c1520, %c0_64] : memref<1536x128xbf16, #tpu.memory_space<vmem>>, vector<16x4xbf16>
    %132 = arith.truncf %123 : vector<4x128xf32> to vector<4x128xbf16>
    %cst_65 = arith.constant dense<0.000000e+00> : vector<16x128xf32>
    %133 = tpu.matmul %131, %132, %cst_65 {dimension_numbers = #tpu.dot_dimension_numbers<[1], [0], [0], [1], [0, 0, 1, 1], [], []>} : vector<16x4xbf16>, vector<4x128xbf16>, vector<16x128xf32> -> vector<16x128xf32>
    %134 = arith.addf %130, %133 : vector<16x128xf32>
    %c472 = arith.constant 472 : index
    %c0_66 = arith.constant 0 : index
    %135 = vector.load %arg3[%c472, %c0_66] : memref<488x128xf32, #tpu.memory_space<vmem>>, vector<16x1xf32>
    %136 = vector.broadcast %135 : vector<16x1xf32> to vector<16x128xf32>
    %137 = arith.addf %134, %136 : vector<16x128xf32>
    %c16_67 = arith.constant 16 : index
    %c0_68 = arith.constant 0 : index
    %138 = vector.load %arg2[%c16_67, %c0_68] : memref<1536x128xbf16, #tpu.memory_space<vmem>>, vector<128x8xbf16>
    %139 = arith.truncf %137 : vector<16x128xf32> to vector<16x128xbf16>
    %cst_69 = arith.constant dense<0.000000e+00> : vector<16x8xf32>
    %140 = tpu.matmul %139, %138, %cst_69 {dimension_numbers = #tpu.dot_dimension_numbers<[1], [0], [0], [1], [0, 0, 1, 1], [], []>} : vector<16x128xbf16>, vector<128x8xbf16>, vector<16x8xf32> -> vector<16x8xf32>
    %c1008 = arith.constant 1008 : index
    %c0_70 = arith.constant 0 : index
    %141 = vector.load %arg2[%c1008, %c0_70] : memref<1536x128xbf16, #tpu.memory_space<vmem>>, vector<64x16xbf16>
    %142 = arith.truncf %140 : vector<16x8xf32> to vector<16x8xbf16>
    %cst_71 = arith.constant dense<0.000000e+00> : vector<64x8xf32>
    %143 = tpu.matmul %141, %142, %cst_71 {dimension_numbers = #tpu.dot_dimension_numbers<[1], [0], [0], [1], [0, 0, 1, 1], [], []>} : vector<64x16xbf16>, vector<16x8xbf16>, vector<64x8xf32> -> vector<64x8xf32>
    %c248 = arith.constant 248 : index
    %c0_72 = arith.constant 0 : index
    %144 = vector.load %arg3[%c248, %c0_72] : memref<488x128xf32, #tpu.memory_space<vmem>>, vector<64x1xf32>
    %145 = vector.broadcast %144 : vector<64x1xf32> to vector<64x8xf32>
    %146 = arith.addf %143, %145 : vector<64x8xf32>
    %cst_73 = arith.constant 0.000000e+00 : f32
    %147 = vector.broadcast %cst_73 : f32 to vector<64x8xf32>
    %148 = arith.cmpf oge, %146, %147 : vector<64x8xf32>
    %cst_74 = arith.constant 1.000000e-01 : f32
    %149 = vector.broadcast %cst_74 : f32 to vector<64x8xf32>
    %150 = arith.mulf %149, %146 : vector<64x8xf32>
    %151 = arith.select %148, %146, %150 : vector<64x8xi1>, vector<64x8xf32>
    %c1072 = arith.constant 1072 : index
    %c0_75 = arith.constant 0 : index
    %152 = vector.load %arg2[%c1072, %c0_75] : memref<1536x128xbf16, #tpu.memory_space<vmem>>, vector<64x64xbf16>
    %153 = arith.truncf %151 : vector<64x8xf32> to vector<64x8xbf16>
    %cst_76 = arith.constant dense<0.000000e+00> : vector<64x8xf32>
    %154 = tpu.matmul %152, %153, %cst_76 {dimension_numbers = #tpu.dot_dimension_numbers<[1], [0], [0], [1], [0, 0, 1, 1], [], []>} : vector<64x64xbf16>, vector<64x8xbf16>, vector<64x8xf32> -> vector<64x8xf32>
    %c312 = arith.constant 312 : index
    %c0_77 = arith.constant 0 : index
    %155 = vector.load %arg3[%c312, %c0_77] : memref<488x128xf32, #tpu.memory_space<vmem>>, vector<64x1xf32>
    %156 = vector.broadcast %155 : vector<64x1xf32> to vector<64x8xf32>
    %157 = arith.addf %154, %156 : vector<64x8xf32>
    %cst_78 = arith.constant 0.000000e+00 : f32
    %158 = vector.broadcast %cst_78 : f32 to vector<64x8xf32>
    %159 = arith.cmpf oge, %157, %158 : vector<64x8xf32>
    %cst_79 = arith.constant 1.000000e-01 : f32
    %160 = vector.broadcast %cst_79 : f32 to vector<64x8xf32>
    %161 = arith.mulf %160, %157 : vector<64x8xf32>
    %162 = arith.select %159, %157, %161 : vector<64x8xi1>, vector<64x8xf32>
    %163 = vector.extract_strided_slice %162 {offsets = [0, 0], sizes = [16, 8], strides = [1, 1]} : vector<64x8xf32> to vector<16x8xf32>
    %c64 = arith.constant 64 : index
    %c0_80 = arith.constant 0 : index
    %164 = vector.load %arg1[%c64, %c0_80] : memref<128x256xbf16, #tpu.memory_space<vmem>>, vector<8x256xbf16>
    %165 = arith.truncf %163 : vector<16x8xf32> to vector<16x8xbf16>
    %cst_81 = arith.constant dense<0.000000e+00> : vector<16x256xf32>
    %166 = tpu.matmul %165, %164, %cst_81 {dimension_numbers = #tpu.dot_dimension_numbers<[1], [0], [0], [1], [0, 0, 1, 1], [], []>} : vector<16x8xbf16>, vector<8x256xbf16>, vector<16x256xf32> -> vector<16x256xf32>
    %167 = vector.extract_strided_slice %162 {offsets = [16, 0], sizes = [16, 8], strides = [1, 1]} : vector<64x8xf32> to vector<16x8xf32>
    %c80 = arith.constant 80 : index
    %c0_82 = arith.constant 0 : index
    %168 = vector.load %arg1[%c80, %c0_82] : memref<128x256xbf16, #tpu.memory_space<vmem>>, vector<8x256xbf16>
    %169 = arith.truncf %167 : vector<16x8xf32> to vector<16x8xbf16>
    %cst_83 = arith.constant dense<0.000000e+00> : vector<16x256xf32>
    %170 = tpu.matmul %169, %168, %cst_83 {dimension_numbers = #tpu.dot_dimension_numbers<[1], [0], [0], [1], [0, 0, 1, 1], [], []>} : vector<16x8xbf16>, vector<8x256xbf16>, vector<16x256xf32> -> vector<16x256xf32>
    %171 = arith.addf %166, %170 : vector<16x256xf32>
    %172 = vector.extract_strided_slice %162 {offsets = [32, 0], sizes = [16, 8], strides = [1, 1]} : vector<64x8xf32> to vector<16x8xf32>
    %c96 = arith.constant 96 : index
    %c0_84 = arith.constant 0 : index
    %173 = vector.load %arg1[%c96, %c0_84] : memref<128x256xbf16, #tpu.memory_space<vmem>>, vector<8x256xbf16>
    %174 = arith.truncf %172 : vector<16x8xf32> to vector<16x8xbf16>
    %cst_85 = arith.constant dense<0.000000e+00> : vector<16x256xf32>
    %175 = tpu.matmul %174, %173, %cst_85 {dimension_numbers = #tpu.dot_dimension_numbers<[1], [0], [0], [1], [0, 0, 1, 1], [], []>} : vector<16x8xbf16>, vector<8x256xbf16>, vector<16x256xf32> -> vector<16x256xf32>
    %176 = arith.addf %171, %175 : vector<16x256xf32>
    %177 = vector.extract_strided_slice %162 {offsets = [48, 0], sizes = [16, 8], strides = [1, 1]} : vector<64x8xf32> to vector<16x8xf32>
    %c112 = arith.constant 112 : index
    %c0_86 = arith.constant 0 : index
    %178 = vector.load %arg1[%c112, %c0_86] : memref<128x256xbf16, #tpu.memory_space<vmem>>, vector<8x256xbf16>
    %179 = arith.truncf %177 : vector<16x8xf32> to vector<16x8xbf16>
    %cst_87 = arith.constant dense<0.000000e+00> : vector<16x256xf32>
    %180 = tpu.matmul %179, %178, %cst_87 {dimension_numbers = #tpu.dot_dimension_numbers<[1], [0], [0], [1], [0, 0, 1, 1], [], []>} : vector<16x8xbf16>, vector<8x256xbf16>, vector<16x256xf32> -> vector<16x256xf32>
    %181 = arith.addf %176, %180 : vector<16x256xf32>
    %c1136 = arith.constant 1136 : index
    %c0_88 = arith.constant 0 : index
    %182 = vector.load %arg2[%c1136, %c0_88] : memref<1536x128xbf16, #tpu.memory_space<vmem>>, vector<16x16xbf16>
    %183 = vector.extract_strided_slice %181 {offsets = [0, 0], sizes = [16, 128], strides = [1, 1]} : vector<16x256xf32> to vector<16x128xf32>
    %184 = arith.truncf %183 : vector<16x128xf32> to vector<16x128xbf16>
    %cst_89 = arith.constant dense<0.000000e+00> : vector<16x128xf32>
    %185 = tpu.matmul %182, %184, %cst_89 {dimension_numbers = #tpu.dot_dimension_numbers<[1], [0], [0], [1], [0, 0, 1, 1], [], []>} : vector<16x16xbf16>, vector<16x128xbf16>, vector<16x128xf32> -> vector<16x128xf32>
    %c376 = arith.constant 376 : index
    %c0_90 = arith.constant 0 : index
    %186 = vector.load %arg3[%c376, %c0_90] : memref<488x128xf32, #tpu.memory_space<vmem>>, vector<16x128xf32>
    %187 = arith.addf %185, %186 : vector<16x128xf32>
    %cst_91 = arith.constant 0.000000e+00 : f32
    %188 = vector.broadcast %cst_91 : f32 to vector<16x128xf32>
    %189 = arith.cmpf oge, %187, %188 : vector<16x128xf32>
    %cst_92 = arith.constant 1.000000e-01 : f32
    %190 = vector.broadcast %cst_92 : f32 to vector<16x128xf32>
    %191 = arith.mulf %190, %187 : vector<16x128xf32>
    %192 = arith.select %189, %187, %191 : vector<16x128xi1>, vector<16x128xf32>
    %c1296 = arith.constant 1296 : index
    %c0_93 = arith.constant 0 : index
    %193 = vector.load %arg2[%c1296, %c0_93] : memref<1536x128xbf16, #tpu.memory_space<vmem>>, vector<16x16xbf16>
    %194 = vector.extract_strided_slice %181 {offsets = [0, 128], sizes = [16, 128], strides = [1, 1]} : vector<16x256xf32> to vector<16x128xf32>
    %195 = arith.truncf %194 : vector<16x128xf32> to vector<16x128xbf16>
    %cst_94 = arith.constant dense<0.000000e+00> : vector<16x128xf32>
    %196 = tpu.matmul %193, %195, %cst_94 {dimension_numbers = #tpu.dot_dimension_numbers<[1], [0], [0], [1], [0, 0, 1, 1], [], []>} : vector<16x16xbf16>, vector<16x128xbf16>, vector<16x128xf32> -> vector<16x128xf32>
    %c400 = arith.constant 400 : index
    %c0_95 = arith.constant 0 : index
    %197 = vector.load %arg3[%c400, %c0_95] : memref<488x128xf32, #tpu.memory_space<vmem>>, vector<16x128xf32>
    %198 = arith.addf %196, %197 : vector<16x128xf32>
    %cst_96 = arith.constant 0.000000e+00 : f32
    %199 = vector.broadcast %cst_96 : f32 to vector<16x128xf32>
    %200 = arith.cmpf oge, %198, %199 : vector<16x128xf32>
    %cst_97 = arith.constant 1.000000e-01 : f32
    %201 = vector.broadcast %cst_97 : f32 to vector<16x128xf32>
    %202 = arith.mulf %201, %198 : vector<16x128xf32>
    %203 = arith.select %200, %198, %202 : vector<16x128xi1>, vector<16x128xf32>
    %c1152 = arith.constant 1152 : index
    %c0_98 = arith.constant 0 : index
    %204 = vector.load %arg2[%c1152, %c0_98] : memref<1536x128xbf16, #tpu.memory_space<vmem>>, vector<16x16xbf16>
    %c1168 = arith.constant 1168 : index
    %c0_99 = arith.constant 0 : index
    %205 = vector.load %arg2[%c1168, %c0_99] : memref<1536x128xbf16, #tpu.memory_space<vmem>>, vector<128x128xbf16>
    %206 = arith.truncf %192 : vector<16x128xf32> to vector<16x128xbf16>
    %cst_100 = arith.constant dense<0.000000e+00> : vector<16x128xf32>
    %207 = tpu.matmul %206, %205, %cst_100 {dimension_numbers = #tpu.dot_dimension_numbers<[1], [0], [0], [1], [0, 0, 1, 1], [], []>} : vector<16x128xbf16>, vector<128x128xbf16>, vector<16x128xf32> -> vector<16x128xf32>
    %208 = arith.truncf %207 : vector<16x128xf32> to vector<16x128xbf16>
    %cst_101 = arith.constant dense<0.000000e+00> : vector<16x128xf32>
    %209 = tpu.matmul %204, %208, %cst_101 {dimension_numbers = #tpu.dot_dimension_numbers<[1], [0], [0], [1], [0, 0, 1, 1], [], []>} : vector<16x16xbf16>, vector<16x128xbf16>, vector<16x128xf32> -> vector<16x128xf32>
    %c392 = arith.constant 392 : index
    %c0_102 = arith.constant 0 : index
    %210 = vector.load %arg3[%c392, %c0_102] : memref<488x128xf32, #tpu.memory_space<vmem>>, vector<1x128xf32>
    %211 = vector.broadcast %210 : vector<1x128xf32> to vector<16x128xf32>
    %212 = arith.addf %209, %211 : vector<16x128xf32>
    %c1312 = arith.constant 1312 : index
    %c0_103 = arith.constant 0 : index
    %213 = vector.load %arg2[%c1312, %c0_103] : memref<1536x128xbf16, #tpu.memory_space<vmem>>, vector<16x16xbf16>
    %c1328 = arith.constant 1328 : index
    %c0_104 = arith.constant 0 : index
    %214 = vector.load %arg2[%c1328, %c0_104] : memref<1536x128xbf16, #tpu.memory_space<vmem>>, vector<128x128xbf16>
    %215 = arith.truncf %203 : vector<16x128xf32> to vector<16x128xbf16>
    %cst_105 = arith.constant dense<0.000000e+00> : vector<16x128xf32>
    %216 = tpu.matmul %215, %214, %cst_105 {dimension_numbers = #tpu.dot_dimension_numbers<[1], [0], [0], [1], [0, 0, 1, 1], [], []>} : vector<16x128xbf16>, vector<128x128xbf16>, vector<16x128xf32> -> vector<16x128xf32>
    %217 = arith.truncf %216 : vector<16x128xf32> to vector<16x128xbf16>
    %cst_106 = arith.constant dense<0.000000e+00> : vector<16x128xf32>
    %218 = tpu.matmul %213, %217, %cst_106 {dimension_numbers = #tpu.dot_dimension_numbers<[1], [0], [0], [1], [0, 0, 1, 1], [], []>} : vector<16x16xbf16>, vector<16x128xbf16>, vector<16x128xf32> -> vector<16x128xf32>
    %c416 = arith.constant 416 : index
    %c0_107 = arith.constant 0 : index
    %219 = vector.load %arg3[%c416, %c0_107] : memref<488x128xf32, #tpu.memory_space<vmem>>, vector<1x128xf32>
    %220 = vector.broadcast %219 : vector<1x128xf32> to vector<16x128xf32>
    %221 = arith.addf %218, %220 : vector<16x128xf32>
    %c1456 = arith.constant 1456 : index
    %c0_108 = arith.constant 0 : index
    %222 = vector.load %arg2[%c1456, %c0_108] : memref<1536x128xbf16, #tpu.memory_space<vmem>>, vector<4x16xbf16>
    %223 = arith.truncf %212 : vector<16x128xf32> to vector<16x128xbf16>
    %cst_109 = arith.constant dense<0.000000e+00> : vector<4x128xf32>
    %224 = tpu.matmul %222, %223, %cst_109 {dimension_numbers = #tpu.dot_dimension_numbers<[1], [0], [0], [1], [0, 0, 1, 1], [], []>} : vector<4x16xbf16>, vector<16x128xbf16>, vector<4x128xf32> -> vector<4x128xf32>
    %c424 = arith.constant 424 : index
    %c0_110 = arith.constant 0 : index
    %225 = vector.load %arg3[%c424, %c0_110] : memref<488x128xf32, #tpu.memory_space<vmem>>, vector<4x1xf32>
    %226 = vector.broadcast %225 : vector<4x1xf32> to vector<4x128xf32>
    %227 = arith.addf %224, %226 : vector<4x128xf32>
    %c1472 = arith.constant 1472 : index
    %c0_111 = arith.constant 0 : index
    %228 = vector.load %arg2[%c1472, %c0_111] : memref<1536x128xbf16, #tpu.memory_space<vmem>>, vector<4x16xbf16>
    %229 = arith.truncf %221 : vector<16x128xf32> to vector<16x128xbf16>
    %cst_112 = arith.constant dense<0.000000e+00> : vector<4x128xf32>
    %230 = tpu.matmul %228, %229, %cst_112 {dimension_numbers = #tpu.dot_dimension_numbers<[1], [0], [0], [1], [0, 0, 1, 1], [], []>} : vector<4x16xbf16>, vector<16x128xbf16>, vector<4x128xf32> -> vector<4x128xf32>
    %c432 = arith.constant 432 : index
    %c0_113 = arith.constant 0 : index
    %231 = vector.load %arg3[%c432, %c0_113] : memref<488x128xf32, #tpu.memory_space<vmem>>, vector<4x1xf32>
    %232 = vector.broadcast %231 : vector<4x1xf32> to vector<4x128xf32>
    %233 = arith.addf %230, %232 : vector<4x128xf32>
    %234 = tpu.concatenate %212, %227 in 0 : vector<16x128xf32>, vector<4x128xf32> -> vector<20x128xf32>
    %235 = tpu.concatenate %221, %233 in 0 : vector<16x128xf32>, vector<4x128xf32> -> vector<20x128xf32>
    %c440 = arith.constant 440 : index
    %c0_114 = arith.constant 0 : index
    %236 = vector.load %arg3[%c440, %c0_114] : memref<488x128xf32, #tpu.memory_space<vmem>>, vector<20x1xf32>
    %237 = vector.broadcast %236 : vector<20x1xf32> to vector<20x128xf32>
    %238 = arith.mulf %234, %237 : vector<20x128xf32>
    %cst_115 = arith.constant dense<0xFF800000> : vector<20xf32>
    %239 = vector.multi_reduction <maximumf>, %238, %cst_115 [1] : vector<20x128xf32> to vector<20xf32>
    %240 = vector.shape_cast %239 : vector<20xf32> to vector<20x1xf32>
    %241 = vector.broadcast %240 : vector<20x1xf32> to vector<20x128xf32>
    %242 = arith.subf %238, %241 : vector<20x128xf32>
    %243 = math.exp %242 : vector<20x128xf32>
    %c144_116 = arith.constant 144 : index
    %c0_117 = arith.constant 0 : index
    %244 = vector.load %arg2[%c144_116, %c0_117] : memref<1536x128xbf16, #tpu.memory_space<vmem>>, vector<128x128xbf16>
    %245 = arith.truncf %243 : vector<20x128xf32> to vector<20x128xbf16>
    %cst_118 = arith.constant dense<0.000000e+00> : vector<20x128xf32>
    %246 = tpu.matmul %245, %244, %cst_118 {dimension_numbers = #tpu.dot_dimension_numbers<[1], [0], [0], [1], [0, 0, 1, 1], [], []>} : vector<20x128xbf16>, vector<128x128xbf16>, vector<20x128xf32> -> vector<20x128xf32>
    %cst_119 = arith.constant 1.000000e-30 : f32
    %247 = vector.broadcast %cst_119 : f32 to vector<20x128xf32>
    %248 = arith.addf %246, %247 : vector<20x128xf32>
    %249 = tpu.reciprocal %248 : vector<20x128xf32> -> vector<20x128xf32>
    %250 = arith.mulf %243, %249 : vector<20x128xf32>
    %251 = arith.mulf %250, %235 : vector<20x128xf32>
    %c272 = arith.constant 272 : index
    %c0_120 = arith.constant 0 : index
    %252 = vector.load %arg2[%c272, %c0_120] : memref<1536x128xbf16, #tpu.memory_space<vmem>>, vector<128x128xbf16>
    %253 = arith.truncf %250 : vector<20x128xf32> to vector<20x128xbf16>
    %cst_121 = arith.constant dense<0.000000e+00> : vector<20x128xf32>
    %254 = tpu.matmul %253, %252, %cst_121 {dimension_numbers = #tpu.dot_dimension_numbers<[1], [0], [0], [1], [0, 0, 1, 1], [], []>} : vector<20x128xbf16>, vector<128x128xbf16>, vector<20x128xf32> -> vector<20x128xf32>
    %c400_122 = arith.constant 400 : index
    %c0_123 = arith.constant 0 : index
    %255 = vector.load %arg2[%c400_122, %c0_123] : memref<1536x128xbf16, #tpu.memory_space<vmem>>, vector<128x128xbf16>
    %256 = arith.truncf %251 : vector<20x128xf32> to vector<20x128xbf16>
    %cst_124 = arith.constant dense<0.000000e+00> : vector<20x128xf32>
    %257 = tpu.matmul %256, %255, %cst_124 {dimension_numbers = #tpu.dot_dimension_numbers<[1], [0], [0], [1], [0, 0, 1, 1], [], []>} : vector<20x128xbf16>, vector<128x128xbf16>, vector<20x128xf32> -> vector<20x128xf32>
    %258 = arith.addf %254, %257 : vector<20x128xf32>
    %c16_125 = arith.constant 16 : index
    %c0_126 = arith.constant 0 : index
    %259 = vector.load %arg3[%c16_125, %c0_126] : memref<488x128xf32, #tpu.memory_space<vmem>>, vector<1x128xf32>
    %260 = vector.broadcast %259 : vector<1x128xf32> to vector<20x128xf32>
    %261 = arith.addf %258, %260 : vector<20x128xf32>
    %c0_127 = arith.constant 0 : index
    %c0_128 = arith.constant 0 : index
    %262 = vector.load %arg4[%c0_127, %c0_128] : memref<72x128xf32, #tpu.memory_space<vmem>>, vector<20x128xf32>
    tpu.vector_store %arg4[%c0_127, %c0_128], %261 {strides = array<i32>} : memref<72x128xf32, #tpu.memory_space<vmem>>, vector<20x128xf32>,
    %c24_129 = arith.constant 24 : index
    %c0_130 = arith.constant 0 : index
    %263 = vector.load %arg4[%c24_129, %c0_130] : memref<72x128xf32, #tpu.memory_space<vmem>>, vector<20x128xf32>
    tpu.vector_store %arg4[%c24_129, %c0_130], %250 {strides = array<i32>} : memref<72x128xf32, #tpu.memory_space<vmem>>, vector<20x128xf32>,
    %c48_131 = arith.constant 48 : index
    %c0_132 = arith.constant 0 : index
    %264 = vector.load %arg4[%c48_131, %c0_132] : memref<72x128xf32, #tpu.memory_space<vmem>>, vector<20x128xf32>
    tpu.vector_store %arg4[%c48_131, %c0_132], %251 {strides = array<i32>} : memref<72x128xf32, #tpu.memory_space<vmem>>, vector<20x128xf32>,
    return
  }
}

</mosaic_0001>

<llo_original>
// kernel: forward.1
$region0: #{forward.1}
  #allocation0 [shape = 'u32[]', space=smem, size = 0x4, offset = 0x4, fixed_abs, tag = 'smem constant byte address 0x4 - core index']
  #allocation1 [shape = 'u32[144,128]{1,0:T(1,128)}', space=vmem, size = 0x12000, scoped, tag = 'internal scratch']
  %s0 = inlined_call_operand.vmem [shape: f32[3,128], index: 0, kind: input, shape index: {}]
  %s1 = inlined_call_operand.vmem [shape: bf16[128,256], index: 1, kind: input, shape index: {}]
  %s2 = inlined_call_operand.vmem [shape: bf16[1536,128], index: 2, kind: input, shape index: {}]
  %s3 = inlined_call_operand.vmem [shape: f32[488,128], index: 3, kind: input, shape index: {}]
  %s4 = inlined_call_operand.vmem [shape: f32[72,128], index: 4, kind: output, shape index: {}]
  %s5 = sld [smem:[#allocation0]]
  $region26: #{forward.1} parent=0
    _
  %s7 = ssub.s32 1, %s5
  %s8 = scalar_select 0, %s7, %s5
  // Predicated region
  $region2: #{forward.1} parent=0 // pred_check
    _
  $region3: #{forward.1} parent=0 // pred_check_branch
    %10 = sbr.rel (0) target = $region5
  $region4: #{forward.1} parent=0 // pred_region
    _
  $region5: #{forward.1} parent=0 // pred_fallthru
    _
  // Predicated region
  $region6: #{forward.1} parent=0 // pred_check
    _
  $region7: #{forward.1} parent=0 // pred_check_branch
    %12 = sbr.rel (0) target = $region9
  $region8: #{forward.1} parent=0 // pred_region
    _
  $region9: #{forward.1} parent=0 // pred_fallthru
    _
  // Predicated region
  $region10: #{forward.1} parent=0 // pred_check
    _
  $region11: #{forward.1} parent=0 // pred_check_branch
    %14 = sbr.rel (0) target = $region13
  $region12: #{forward.1} parent=0 // pred_region
    _
  $region13: #{forward.1} parent=0 // pred_fallthru
    _
  // Predicated region
  $region14: #{forward.1} parent=0 // pred_check
    _
  $region15: #{forward.1} parent=0 // pred_check_branch
    %16 = sbr.rel (0) target = $region17
  $region16: #{forward.1} parent=0 // pred_region
    _
  $region17: #{forward.1} parent=0 // pred_fallthru
    _
  %v18 = vld [vmem:[%s2] sm:$0xf]
  %v19 = vld [vmem:[%s2 + $0x4] sm:$0xf]
  %v20 = vld [vmem:[%s0] sm:$0x7]
  %v21 = vpack.c.bf16 %v20, %v20
  %v22 = vld [vmem:[%s3] sm:$0xff]
  %v23 = vld [vmem:[%s3 + $0x8] sm:$0xff]
  %25 = vset.pattern.permute.xlu0 0
  %26 = vperm.xlu0 %25, %v22
  %v27 = vpop.permute.xlu0 %26
  %30 = vset.pattern.permute.xlu0 0
  %31 = vperm.xlu0 %30, %v23
  %v32 = vpop.permute.xlu0 %31
  %v36 = vunpack.c.l.b16 %v18
  %v37 = vunpack.c.l.b16 %v19
  %v38 = vpack.c.b16 %v37, %v36
  %vm39 = vcmask 23552
  %v41 = vsel %vm39, %v38, 0
  %vm43 = vcmask 1040384
  %vm44 = vcmask 1041408
  %v45 = vsel %vm43, 4294967295, 65535
  %v46 = vsel %vm44, %v45, 0
  %v48 = vand.u32 %v21, %v46
  %50 = vmatprep.subr.bf16.mxu0 0
  %51 = vmatpush1.bf16.msra.mxu0 %v48
  %52 = vmatprep.subr.bf16.mxu0 0
  %53 = vmatpush1.bf16.msra.mxu0 0
  %54 = vmatprep.subr.bf16.mxu0 0
  %55 = vmatpush1.bf16.msra.mxu0 0
  %56 = vmatprep.subr.bf16.mxu0 0
  %57 = vmatpush1.bf16.msra.mxu0 0
  %58 = vmatprep.subr.bf16.mxu0 0
  %59 = vmatpush1.bf16.msra.mxu0 0
  %60 = vmatprep.subr.bf16.mxu0 0
  %61 = vmatpush1.bf16.msra.mxu0 0
  %62 = vmatprep.subr.bf16.mxu0 0
  %63 = vmatpush1.bf16.msra.mxu0 0
  %64 = vmatprep.subr.bf16.mxu0 0
  %65 = vmatpush1.bf16.msra.mxu0 0
  %66 = vmatprep.subr.bf16.mxu0 0
  %67 = vmatpush1.bf16.msra.mxu0 0
  %68 = vmatprep.subr.bf16.mxu0 0
  %69 = vmatpush1.bf16.msra.mxu0 0
  %70 = vmatprep.subr.bf16.mxu0 0
  %71 = vmatpush1.bf16.msra.mxu0 0
  %72 = vmatprep.subr.bf16.mxu0 0
  %73 = vmatpush1.bf16.msra.mxu0 0
  %74 = vmatprep.subr.bf16.mxu0 0
  %75 = vmatpush1.bf16.msra.mxu0 0
  %76 = vmatprep.subr.bf16.mxu0 0
  %77 = vmatpush1.bf16.msra.mxu0 0
  %78 = vmatprep.subr.bf16.mxu0 0
  %79 = vmatpush1.bf16.msra.mxu0 0
  %80 = vmatprep.subr.bf16.mxu0 0
  %81 = vmatpush1.bf16.msra.mxu0 0
  %82 = vmatprep.mubr.bf16.mxu0 0
  %83 = vmatmul.mubr.bf16.gmra.mrb[0].mxu0 %v41
  %v84 = vpop.f32.mrb[0].mxu0
  %v85 = vadd.f32 %v27, %v84
  %v86 = vpop.f32.mrb[0].mxu0
  %v87 = vpop.f32.mrb[0].mxu0
  %v88 = vadd.f32 %v32, %v87
  %v89 = vpop.f32.mrb[0].mxu0
  %90 = vdwg.mxu0
  %vm91 = vcmp.ge.f32.partialorder %v85, 0.0
  %vm92 = vcmp.ge.f32.partialorder %v88, 0.0
  %v93 = vmul.f32 %v85, 0.1
  %v94 = vmul.f32 %v88, 0.1
  %v95 = vsel %vm91, %v85, %v93
  %v96 = vsel %vm92, %v88, %v94
  %v97 = vld [vmem:[%s2 + $0x8] sm:$0xf]
  %v98 = vld [vmem:[%s2 + $0xc] sm:$0xf]
  %v99 = vld [vmem:[%s2 + $0x10] sm:$0xf]
  %v100 = vld [vmem:[%s2 + $0x14] sm:$0xf]
  %v101 = vld [vmem:[%s2 + $0x18] sm:$0xf]
  %v102 = vld [vmem:[%s2 + $0x1c] sm:$0xf]
  %v103 = vld [vmem:[%s2 + $0x20] sm:$0xf]
  %v104 = vld [vmem:[%s2 + $0x24] sm:$0xf]
  %v105 = vld [vmem:[%s2 + $0x28] sm:$0xf]
  %v106 = vld [vmem:[%s2 + $0x2c] sm:$0xf]
  %v107 = vld [vmem:[%s2 + $0x30] sm:$0xf]
  %v108 = vld [vmem:[%s2 + $0x34] sm:$0xf]
  %v109 = vld [vmem:[%s2 + $0x38] sm:$0xf]
  %v110 = vld [vmem:[%s2 + $0x3c] sm:$0xf]
  %v111 = vld [vmem:[%s2 + $0x40] sm:$0xf]
  %v112 = vld [vmem:[%s2 + $0x44] sm:$0xf]
  %v113 = vpack.c.bf16 %v96, %v95
  %v130 = vunpack.c.l.b16 %v97
  %v131 = vunpack.c.l.b16 %v98
  %v132 = vunpack.c.l.b16 %v99
  %v133 = vunpack.c.l.b16 %v100
  %v134 = vunpack.c.l.b16 %v101
  %v135 = vunpack.c.l.b16 %v102
  %v136 = vunpack.c.l.b16 %v103
  %v137 = vunpack.c.l.b16 %v104
  %v138 = vunpack.c.l.b16 %v105
  %v139 = vunpack.c.l.b16 %v106
  %v140 = vunpack.c.l.b16 %v107
  %v141 = vunpack.c.l.b16 %v108
  %v142 = vunpack.c.l.b16 %v109
  %v143 = vunpack.c.l.b16 %v110
  %v144 = vunpack.c.l.b16 %v111
  %v145 = vunpack.c.l.b16 %v112
  %v146 = vpack.c.b16 %v131, %v130
  %v147 = vpack.c.b16 %v133, %v132
  %v148 = vpack.c.b16 %v135, %v134
  %v149 = vpack.c.b16 %v137, %v136
  %v150 = vpack.c.b16 %v139, %v138
  %v151 = vpack.c.b16 %v141, %v140
  %v152 = vpack.c.b16 %v143, %v142
  %v153 = vpack.c.b16 %v145, %v144
  %162 = vmatprep.subr.bf16.mxu0 0
  %163 = vmatpush1.bf16.msra.mxu0 %v146
  %164 = vmatprep.subr.bf16.mxu0 0
  %165 = vmatpush1.bf16.msra.mxu0 %v147
  %166 = vmatprep.subr.bf16.mxu0 0
  %167 = vmatpush1.bf16.msra.mxu0 %v148
  %168 = vmatprep.subr.bf16.mxu0 0
  %169 = vmatpush1.bf16.msra.mxu0 %v149
  %170 = vmatprep.subr.bf16.mxu0 0
  %171 = vmatpush1.bf16.msra.mxu0 %v150
  %172 = vmatprep.subr.bf16.mxu0 0
  %173 = vmatpush1.bf16.msra.mxu0 %v151
  %174 = vmatprep.subr.bf16.mxu0 0
  %175 = vmatpush1.bf16.msra.mxu0 %v152
  %176 = vmatprep.subr.bf16.mxu0 0
  %177 = vmatpush1.bf16.msra.mxu0 %v153
  %178 = vmatprep.subr.bf16.mxu0 0
  %179 = vmatpush1.bf16.msra.mxu0 0
  %180 = vmatprep.subr.bf16.mxu0 0
  %181 = vmatpush1.bf16.msra.mxu0 0
  %182 = vmatprep.subr.bf16.mxu0 0
  %183 = vmatpush1.bf16.msra.mxu0 0
  %184 = vmatprep.subr.bf16.mxu0 0
  %185 = vmatpush1.bf16.msra.mxu0 0
  %186 = vmatprep.subr.bf16.mxu0 0
  %187 = vmatpush1.bf16.msra.mxu0 0
  %188 = vmatprep.subr.bf16.mxu0 0
  %189 = vmatpush1.bf16.msra.mxu0 0
  %190 = vmatprep.subr.bf16.mxu0 0
  %191 = vmatpush1.bf16.msra.mxu0 0
  %192 = vmatprep.subr.bf16.mxu0 0
  %193 = vmatpush1.bf16.msra.mxu0 0
  %194 = vmatprep.mubr.bf16.mxu0 0
  %195 = vmatmul.mubr.bf16.gmra.mrb[0].mxu0 %v113
  %v196 = vpop.f32.mrb[0].mxu0
  %v197 = vadd.f32 0.0, %v196
  %v198 = vpop.f32.mrb[0].mxu0
  %v199 = vpop.f32.mrb[0].mxu0
  %v200 = vadd.f32 0.0, %v199
  %v201 = vpop.f32.mrb[0].mxu0
  %202 = vdwg.mxu0
  %v203 = vld [vmem:[%s2 + $0x108] sm:$0xf]
  %v204 = vld [vmem:[%s2 + $0x10c] sm:$0xf]
  %v205 = vld [vmem:[%s2 + $0x110] sm:$0xf]
  %v206 = vld [vmem:[%s2 + $0x114] sm:$0xf]
  %v207 = vld [vmem:[%s2 + $0x118] sm:$0xf]
  %v208 = vld [vmem:[%s2 + $0x11c] sm:$0xf]
  %v209 = vld [vmem:[%s2 + $0x120] sm:$0xf]
  %v210 = vld [vmem:[%s2 + $0x124] sm:$0xf]
  %v211 = vpack.c.bf16 %v200, %v197
  %v212 = vld [vmem:[%s3 + $0x18] sm:$0xff]
  %v213 = vld [vmem:[%s3 + $0x20] sm:$0xff]
  %v214 = vld [vmem:[%s3 + $0x28] sm:$0xff]
  %v215 = vld [vmem:[%s3 + $0x30] sm:$0xff]
  %v216 = vld [vmem:[%s3 + $0x38] sm:$0xff]
  %v217 = vld [vmem:[%s3 + $0x40] sm:$0xff]
  %v218 = vld [vmem:[%s3 + $0x48] sm:$0xff]
  %v219 = vld [vmem:[%s3 + $0x50] sm:$0xff]
  %221 = vset.pattern.permute.xlu0 0
  %222 = vperm.xlu0 %221, %v212
  %v223 = vpop.permute.xlu0 %222
  %226 = vset.pattern.permute.xlu0 0
  %227 = vperm.xlu0 %226, %v213
  %v228 = vpop.permute.xlu0 %227
  %231 = vset.pattern.permute.xlu0 0
  %232 = vperm.xlu0 %231, %v214
  %v233 = vpop.permute.xlu0 %232
  %236 = vset.pattern.permute.xlu0 0
  %237 = vperm.xlu0 %236, %v215
  %v238 = vpop.permute.xlu0 %237
  %241 = vset.pattern.permute.xlu0 0
  %242 = vperm.xlu0 %241, %v216
  %v243 = vpop.permute.xlu0 %242
  %246 = vset.pattern.permute.xlu0 0
  %247 = vperm.xlu0 %246, %v217
  %v248 = vpop.permute.xlu0 %247
  %251 = vset.pattern.permute.xlu0 0
  %252 = vperm.xlu0 %251, %v218
  %v253 = vpop.permute.xlu0 %252
  %256 = vset.pattern.permute.xlu0 0
  %257 = vperm.xlu0 %256, %v219
  %v258 = vpop.permute.xlu0 %257
  %v268 = vunpack.c.l.b16 %v203
  %v269 = vunpack.c.l.b16 %v204
  %v270 = vunpack.c.l.b16 %v205
  %v271 = vunpack.c.l.b16 %v206
  %v272 = vunpack.c.l.b16 %v207
  %v273 = vunpack.c.l.b16 %v208
  %v274 = vunpack.c.l.b16 %v209
  %v275 = vunpack.c.l.b16 %v210
  %v276 = vpack.c.b16 %v269, %v268
  %v277 = vpack.c.b16 %v271, %v270
  %v278 = vpack.c.b16 %v273, %v272
  %v279 = vpack.c.b16 %v275, %v274
  %vm280 = vcmask 130048
  %v282 = vsel %vm280, %v276, 0
  %v285 = vsel %vm280, %v277, 0
  %v288 = vsel %vm280, %v278, 0
  %v291 = vsel %vm280, %v279, 0
  %293 = vmatprep.subr.bf16.mxu0 0
  %294 = vmatpush1.bf16.msra.mxu0 %v211
  %295 = vmatprep.subr.bf16.mxu0 0
  %296 = vmatpush1.bf16.msra.mxu0 0
  %297 = vmatprep.subr.bf16.mxu0 0
  %298 = vmatpush1.bf16.msra.mxu0 0
  %299 = vmatprep.subr.bf16.mxu0 0
  %300 = vmatpush1.bf16.msra.mxu0 0
  %301 = vmatprep.subr.bf16.mxu0 0
  %302 = vmatpush1.bf16.msra.mxu0 0
  %303 = vmatprep.subr.bf16.mxu0 0
  %304 = vmatpush1.bf16.msra.mxu0 0
  %305 = vmatprep.subr.bf16.mxu0 0
  %306 = vmatpush1.bf16.msra.mxu0 0
  %307 = vmatprep.subr.bf16.mxu0 0
  %308 = vmatpush1.bf16.msra.mxu0 0
  %309 = vmatprep.subr.bf16.mxu0 0
  %310 = vmatpush1.bf16.msra.mxu0 0
  %311 = vmatprep.subr.bf16.mxu0 0
  %312 = vmatpush1.bf16.msra.mxu0 0
  %313 = vmatprep.subr.bf16.mxu0 0
  %314 = vmatpush1.bf16.msra.mxu0 0
  %315 = vmatprep.subr.bf16.mxu0 0
  %316 = vmatpush1.bf16.msra.mxu0 0
  %317 = vmatprep.subr.bf16.mxu0 0
  %318 = vmatpush1.bf16.msra.mxu0 0
  %319 = vmatprep.subr.bf16.mxu0 0
  %320 = vmatpush1.bf16.msra.mxu0 0
  %321 = vmatprep.subr.bf16.mxu0 0
  %322 = vmatpush1.bf16.msra.mxu0 0
  %323 = vmatprep.subr.bf16.mxu0 0
  %324 = vmatpush1.bf16.msra.mxu0 0
  %325 = vmatprep.mubr.bf16.mxu0 0
  %326 = vmatmul.mubr.bf16.gmra.mrb[0].mxu0 %v282
  %v327 = vpop.f32.mrb[0].mxu0
  %v328 = vadd.f32 %v223, %v327
  %v329 = vpop.f32.mrb[0].mxu0
  %v330 = vpop.f32.mrb[0].mxu0
  %v331 = vadd.f32 %v228, %v330
  %v332 = vpop.f32.mrb[0].mxu0
  %333 = vmatprep.mubr.bf16.mxu0 0
  %334 = vmatmul.mubr.bf16.gmra.mrb[0].mxu0 %v285
  %v335 = vpop.f32.mrb[0].mxu0
  %v336 = vadd.f32 %v233, %v335
  %v337 = vpop.f32.mrb[0].mxu0
  %v338 = vpop.f32.mrb[0].mxu0
  %v339 = vadd.f32 %v238, %v338
  %v340 = vpop.f32.mrb[0].mxu0
  %341 = vmatprep.mubr.bf16.mxu0 0
  %342 = vmatmul.mubr.bf16.gmra.mrb[0].mxu0 %v288
  %v343 = vpop.f32.mrb[0].mxu0
  %v344 = vadd.f32 %v243, %v343
  %v345 = vpop.f32.mrb[0].mxu0
  %v346 = vpop.f32.mrb[0].mxu0
  %v347 = vadd.f32 %v248, %v346
  %v348 = vpop.f32.mrb[0].mxu0
  %349 = vmatprep.mubr.bf16.mxu0 0
  %350 = vmatmul.mubr.bf16.gmra.mrb[0].mxu0 %v291
  %v351 = vpop.f32.mrb[0].mxu0
  %v352 = vadd.f32 %v253, %v351
  %v353 = vpop.f32.mrb[0].mxu0
  %v354 = vpop.f32.mrb[0].mxu0
  %v355 = vadd.f32 %v258, %v354
  %v356 = vpop.f32.mrb[0].mxu0
  %357 = vdwg.mxu0
  %vm358 = vcmp.ge.f32.partialorder %v328, 0.0
  %vm359 = vcmp.ge.f32.partialorder %v331, 0.0
  %vm360 = vcmp.ge.f32.partialorder %v336, 0.0
  %vm361 = vcmp.ge.f32.partialorder %v339, 0.0
  %vm362 = vcmp.ge.f32.partialorder %v344, 0.0
  %vm363 = vcmp.ge.f32.partialorder %v347, 0.0
  %vm364 = vcmp.ge.f32.partialorder %v352, 0.0
  %vm365 = vcmp.ge.f32.partialorder %v355, 0.0
  %v366 = vmul.f32 %v328, 0.1
  %v367 = vmul.f32 %v331, 0.1
  %v368 = vmul.f32 %v336, 0.1
  %v369 = vmul.f32 %v339, 0.1
  %v370 = vmul.f32 %v344, 0.1
  %v371 = vmul.f32 %v347, 0.1
  %v372 = vmul.f32 %v352, 0.1
  %v373 = vmul.f32 %v355, 0.1
  %v374 = vsel %vm358, %v328, %v366
  %v375 = vsel %vm359, %v331, %v367
  %v376 = vsel %vm360, %v336, %v368
  %v377 = vsel %vm361, %v339, %v369
  %v378 = vsel %vm362, %v344, %v370
  %v379 = vsel %vm363, %v347, %v371
  %v380 = vsel %vm364, %v352, %v372
  %v381 = vsel %vm365, %v355, %v373
  %v382 = vld [vmem:[%s2 + $0x128] sm:$0xf]
  %v383 = vld [vmem:[%s2 + $0x12c] sm:$0xf]
  %v384 = vld [vmem:[%s2 + $0x130] sm:$0xf]
  %v385 = vld [vmem:[%s2 + $0x134] sm:$0xf]
  %v386 = vld [vmem:[%s2 + $0x138] sm:$0xf]
  %v387 = vld [vmem:[%s2 + $0x13c] sm:$0xf]
  %v388 = vld [vmem:[%s2 + $0x140] sm:$0xf]
  %v389 = vld [vmem:[%s2 + $0x144] sm:$0xf]
  %v390 = vpack.c.bf16 %v375, %v374
  %v391 = vpack.c.bf16 %v377, %v376
  %v392 = vpack.c.bf16 %v379, %v378
  %v393 = vpack.c.bf16 %v381, %v380
  %v394 = vld [vmem:[%s3 + $0x58] sm:$0xff]
  %v395 = vld [vmem:[%s3 + $0x60] sm:$0xff]
  %v396 = vld [vmem:[%s3 + $0x68] sm:$0xff]
  %v397 = vld [vmem:[%s3 + $0x70] sm:$0xff]
  %v398 = vld [vmem:[%s3 + $0x78] sm:$0xff]
  %v399 = vld [vmem:[%s3 + $0x80] sm:$0xff]
  %v400 = vld [vmem:[%s3 + $0x88] sm:$0xff]
  %v401 = vld [vmem:[%s3 + $0x90] sm:$0xff]
  %403 = vset.pattern.permute.xlu0 0
  %404 = vperm.xlu0 %403, %v394
  %v405 = vpop.permute.xlu0 %404
  %408 = vset.pattern.permute.xlu0 0
  %409 = vperm.xlu0 %408, %v395
  %v410 = vpop.permute.xlu0 %409
  %413 = vset.pattern.permute.xlu0 0
  %414 = vperm.xlu0 %413, %v396
  %v415 = vpop.permute.xlu0 %414
  %418 = vset.pattern.permute.xlu0 0
  %419 = vperm.xlu0 %418, %v397
  %v420 = vpop.permute.xlu0 %419
  %423 = vset.pattern.permute.xlu0 0
  %424 = vperm.xlu0 %423, %v398
  %v425 = vpop.permute.xlu0 %424
  %428 = vset.pattern.permute.xlu0 0
  %429 = vperm.xlu0 %428, %v399
  %v430 = vpop.permute.xlu0 %429
  %433 = vset.pattern.permute.xlu0 0
  %434 = vperm.xlu0 %433, %v400
  %v435 = vpop.permute.xlu0 %434
  %438 = vset.pattern.permute.xlu0 0
  %439 = vperm.xlu0 %438, %v401
  %v440 = vpop.permute.xlu0 %439
  %v450 = vunpack.c.l.b16 %v382
  %v451 = vunpack.c.l.b16 %v383
  %v452 = vunpack.c.l.b16 %v384
  %v453 = vunpack.c.l.b16 %v385
  %v454 = vunpack.c.l.b16 %v386
  %v455 = vunpack.c.l.b16 %v387
  %v456 = vunpack.c.l.b16 %v388
  %v457 = vunpack.c.l.b16 %v389
  %v458 = vpack.c.b16 %v451, %v450
  %v459 = vpack.c.b16 %v453, %v452
  %v460 = vpack.c.b16 %v455, %v454
  %v461 = vpack.c.b16 %v457, %v456
  %vm462 = vcmask 523264
  %v464 = vsel %vm462, %v458, 0
  %v467 = vsel %vm462, %v459, 0
  %v470 = vsel %vm462, %v460, 0
  %v473 = vsel %vm462, %v461, 0
  %475 = vmatprep.subr.bf16.mxu0 0
  %476 = vmatpush1.bf16.msra.mxu0 %v390
  %477 = vmatprep.subr.bf16.mxu0 0
  %478 = vmatpush1.bf16.msra.mxu0 %v391
  %479 = vmatprep.subr.bf16.mxu0 0
  %480 = vmatpush1.bf16.msra.mxu0 %v392
  %481 = vmatprep.subr.bf16.mxu0 0
  %482 = vmatpush1.bf16.msra.mxu0 %v393
  %483 = vmatprep.subr.bf16.mxu0 0
  %484 = vmatpush1.bf16.msra.mxu0 0
  %485 = vmatprep.subr.bf16.mxu0 0
  %486 = vmatpush1.bf16.msra.mxu0 0
  %487 = vmatprep.subr.bf16.mxu0 0
  %488 = vmatpush1.bf16.msra.mxu0 0
  %489 = vmatprep.subr.bf16.mxu0 0
  %490 = vmatpush1.bf16.msra.mxu0 0
  %491 = vmatprep.subr.bf16.mxu0 0
  %492 = vmatpush1.bf16.msra.mxu0 0
  %493 = vmatprep.subr.bf16.mxu0 0
  %494 = vmatpush1.bf16.msra.mxu0 0
  %495 = vmatprep.subr.bf16.mxu0 0
  %496 = vmatpush1.bf16.msra.mxu0 0
  %497 = vmatprep.subr.bf16.mxu0 0
  %498 = vmatpush1.bf16.msra.mxu0 0
  %499 = vmatprep.subr.bf16.mxu0 0
  %500 = vmatpush1.bf16.msra.mxu0 0
  %501 = vmatprep.subr.bf16.mxu0 0
  %502 = vmatpush1.bf16.msra.mxu0 0
  %503 = vmatprep.subr.bf16.mxu0 0
  %504 = vmatpush1.bf16.msra.mxu0 0
  %505 = vmatprep.subr.bf16.mxu0 0
  %506 = vmatpush1.bf16.msra.mxu0 0
  %507 = vmatprep.mubr.bf16.mxu0 0
  %508 = vmatmul.mubr.bf16.gmra.mrb[0].mxu0 %v464
  %v509 = vpop.f32.mrb[0].mxu0
  %v510 = vadd.f32 %v405, %v509
  %v511 = vpop.f32.mrb[0].mxu0
  %v512 = vpop.f32.mrb[0].mxu0
  %v513 = vadd.f32 %v410, %v512
  %v514 = vpop.f32.mrb[0].mxu0
  %515 = vmatprep.mubr.bf16.mxu0 0
  %516 = vmatmul.mubr.bf16.gmra.mrb[0].mxu0 %v467
  %v517 = vpop.f32.mrb[0].mxu0
  %v518 = vadd.f32 %v415, %v517
  %v519 = vpop.f32.mrb[0].mxu0
  %v520 = vpop.f32.mrb[0].mxu0
  %v521 = vadd.f32 %v420, %v520
  %v522 = vpop.f32.mrb[0].mxu0
  %523 = vmatprep.mubr.bf16.mxu0 0
  %524 = vmatmul.mubr.bf16.gmra.mrb[0].mxu0 %v470
  %v525 = vpop.f32.mrb[0].mxu0
  %v526 = vadd.f32 %v425, %v525
  %v527 = vpop.f32.mrb[0].mxu0
  %v528 = vpop.f32.mrb[0].mxu0
  %v529 = vadd.f32 %v430, %v528
  %v530 = vpop.f32.mrb[0].mxu0
  %531 = vmatprep.mubr.bf16.mxu0 0
  %532 = vmatmul.mubr.bf16.gmra.mrb[0].mxu0 %v473
  %v533 = vpop.f32.mrb[0].mxu0
  %v534 = vadd.f32 %v435, %v533
  %v535 = vpop.f32.mrb[0].mxu0
  %v536 = vpop.f32.mrb[0].mxu0
  %v537 = vadd.f32 %v440, %v536
  %v538 = vpop.f32.mrb[0].mxu0
  %539 = vdwg.mxu0
  %vm540 = vcmp.ge.f32.partialorder %v510, 0.0
  %vm541 = vcmp.ge.f32.partialorder %v513, 0.0
  %vm542 = vcmp.ge.f32.partialorder %v518, 0.0
  %vm543 = vcmp.ge.f32.partialorder %v521, 0.0
  %vm544 = vcmp.ge.f32.partialorder %v526, 0.0
  %vm545 = vcmp.ge.f32.partialorder %v529, 0.0
  %vm546 = vcmp.ge.f32.partialorder %v534, 0.0
  %vm547 = vcmp.ge.f32.partialorder %v537, 0.0
  %v548 = vmul.f32 %v510, 0.1
  %v549 = vmul.f32 %v513, 0.1
  %v550 = vmul.f32 %v518, 0.1
  %v551 = vmul.f32 %v521, 0.1
  %v552 = vmul.f32 %v526, 0.1
  %v553 = vmul.f32 %v529, 0.1
  %v554 = vmul.f32 %v534, 0.1
  %v555 = vmul.f32 %v537, 0.1
  %v556 = vsel %vm540, %v510, %v548
  %v557 = vsel %vm541, %v513, %v549
  %v558 = vsel %vm542, %v518, %v550
  %v559 = vsel %vm543, %v521, %v551
  %v560 = vsel %vm544, %v526, %v552
  %v561 = vsel %vm545, %v529, %v553
  %v562 = vsel %vm546, %v534, %v554
  %v563 = vsel %vm547, %v537, %v555
  %v564 = vld [vmem:[%s1] sm:$0xff]
  %v565 = vpack.c.bf16 %v557, %v556
  %v566 = vld [vmem:[%s1 + $0x10] sm:$0xff]
  %v567 = vpack.c.bf16 %v559, %v558
  %v569 = vunpack.c.l.b16 %v566
  %v570 = vunpack.c.h.b16 %v566
  %v571 = vpack.c.b16 %v569, %v569
  %v572 = vpack.c.b16 %v570, %v570
  %vm573 = vcmask 64512
  %v575 = vsel %vm573, %v567, 0
  %vm577 = vcmask 1043456
  %v579 = vsel %vm577, %v571, 0
  %v582 = vsel %vm577, %v572, 0
  %584 = vmatprep.subr.bf16.mxu0 %v582
  %585 = vmatpush1.bf16.msra.mxu0 %v579
  %586 = vmatprep.subr.bf16.mxu0 0
  %587 = vmatpush1.bf16.msra.mxu0 0
  %588 = vmatprep.subr.bf16.mxu0 0
  %589 = vmatpush1.bf16.msra.mxu0 0
  %590 = vmatprep.subr.bf16.mxu0 0
  %591 = vmatpush1.bf16.msra.mxu0 0
  %592 = vmatprep.subr.bf16.mxu0 0
  %593 = vmatpush1.bf16.msra.mxu0 0
  %594 = vmatprep.subr.bf16.mxu0 0
  %595 = vmatpush1.bf16.msra.mxu0 0
  %596 = vmatprep.subr.bf16.mxu0 0
  %597 = vmatpush1.bf16.msra.mxu0 0
  %598 = vmatprep.subr.bf16.mxu0 0
  %599 = vmatpush1.bf16.msra.mxu0 0
  %600 = vmatprep.subr.bf16.mxu0 0
  %601 = vmatpush1.bf16.msra.mxu0 0
  %602 = vmatprep.subr.bf16.mxu0 0
  %603 = vmatpush1.bf16.msra.mxu0 0
  %604 = vmatprep.subr.bf16.mxu0 0
  %605 = vmatpush1.bf16.msra.mxu0 0
  %606 = vmatprep.subr.bf16.mxu0 0
  %607 = vmatpush1.bf16.msra.mxu0 0
  %608 = vmatprep.subr.bf16.mxu0 0
  %609 = vmatpush1.bf16.msra.mxu0 0
  %610 = vmatprep.subr.bf16.mxu0 0
  %611 = vmatpush1.bf16.msra.mxu0 0
  %612 = vmatprep.subr.bf16.mxu0 0
  %613 = vmatpush1.bf16.msra.mxu0 0
  %614 = vmatprep.subr.bf16.mxu0 0
  %615 = vmatpush1.bf16.msra.mxu0 0
  %616 = vmatprep.mubr.bf16.mxu0 0
  %617 = vmatmul.mubr.bf16.gmra.mrb[0].mxu0 %v575
  %v618 = vpop.f32.mrb[0].mxu0
  %v619 = vadd.f32 0.0, %v618
  %v620 = vpop.f32.mrb[0].mxu0
  %v621 = vadd.f32 0.0, %v620
  %v622 = vpop.f32.mrb[0].mxu0
  %v623 = vadd.f32 0.0, %v622
  %v624 = vpop.f32.mrb[0].mxu0
  %v625 = vadd.f32 0.0, %v624
  %626 = vdwg.mxu0
  %v628 = vunpack.c.l.b16 %v564
  %v629 = vunpack.c.h.b16 %v564
  %v630 = vpack.c.b16 %v628, %v628
  %v631 = vpack.c.b16 %v629, %v629
  %v633 = vsel %vm573, %v565, 0
  %v636 = vsel %vm577, %v630, 0
  %v639 = vsel %vm577, %v631, 0
  %641 = vmatprep.subr.bf16.mxu0 %v639
  %642 = vmatpush1.bf16.msra.mxu0 %v636
  %643 = vmatprep.subr.bf16.mxu0 0
  %644 = vmatpush1.bf16.msra.mxu0 0
  %645 = vmatprep.subr.bf16.mxu0 0
  %646 = vmatpush1.bf16.msra.mxu0 0
  %647 = vmatprep.subr.bf16.mxu0 0
  %648 = vmatpush1.bf16.msra.mxu0 0
  %649 = vmatprep.subr.bf16.mxu0 0
  %650 = vmatpush1.bf16.msra.mxu0 0
  %651 = vmatprep.subr.bf16.mxu0 0
  %652 = vmatpush1.bf16.msra.mxu0 0
  %653 = vmatprep.subr.bf16.mxu0 0
  %654 = vmatpush1.bf16.msra.mxu0 0
  %655 = vmatprep.subr.bf16.mxu0 0
  %656 = vmatpush1.bf16.msra.mxu0 0
  %657 = vmatprep.subr.bf16.mxu0 0
  %658 = vmatpush1.bf16.msra.mxu0 0
  %659 = vmatprep.subr.bf16.mxu0 0
  %660 = vmatpush1.bf16.msra.mxu0 0
  %661 = vmatprep.subr.bf16.mxu0 0
  %662 = vmatpush1.bf16.msra.mxu0 0
  %663 = vmatprep.subr.bf16.mxu0 0
  %664 = vmatpush1.bf16.msra.mxu0 0
  %665 = vmatprep.subr.bf16.mxu0 0
  %666 = vmatpush1.bf16.msra.mxu0 0
  %667 = vmatprep.subr.bf16.mxu0 0
  %668 = vmatpush1.bf16.msra.mxu0 0
  %669 = vmatprep.subr.bf16.mxu0 0
  %670 = vmatpush1.bf16.msra.mxu0 0
  %671 = vmatprep.subr.bf16.mxu0 0
  %672 = vmatpush1.bf16.msra.mxu0 0
  %673 = vmatprep.mubr.bf16.mxu0 0
  %674 = vmatmul.mubr.bf16.gmra.mrb[0].mxu0 %v633
  %v675 = vpop.f32.mrb[0].mxu0
  %v676 = vadd.f32 %v619, %v675
  %v677 = vpop.f32.mrb[0].mxu0
  %v678 = vadd.f32 %v621, %v677
  %v679 = vpop.f32.mrb[0].mxu0
  %v680 = vadd.f32 %v623, %v679
  %v681 = vpop.f32.mrb[0].mxu0
  %v682 = vadd.f32 %v625, %v681
  %683 = vdwg.mxu0
  %v684 = vld [vmem:[%s1 + $0x20] sm:$0xff]
  %v685 = vpack.c.bf16 %v561, %v560
  %v687 = vunpack.c.l.b16 %v684
  %v688 = vunpack.c.h.b16 %v684
  %v689 = vpack.c.b16 %v687, %v687
  %v690 = vpack.c.b16 %v688, %v688
  %v692 = vsel %vm573, %v685, 0
  %v695 = vsel %vm577, %v689, 0
  %v698 = vsel %vm577, %v690, 0
  %700 = vmatprep.subr.bf16.mxu0 %v698
  %701 = vmatpush1.bf16.msra.mxu0 %v695
  %702 = vmatprep.subr.bf16.mxu0 0
  %703 = vmatpush1.bf16.msra.mxu0 0
  %704 = vmatprep.subr.bf16.mxu0 0
  %705 = vmatpush1.bf16.msra.mxu0 0
  %706 = vmatprep.subr.bf16.mxu0 0
  %707 = vmatpush1.bf16.msra.mxu0 0
  %708 = vmatprep.subr.bf16.mxu0 0
  %709 = vmatpush1.bf16.msra.mxu0 0
  %710 = vmatprep.subr.bf16.mxu0 0
  %711 = vmatpush1.bf16.msra.mxu0 0
  %712 = vmatprep.subr.bf16.mxu0 0
  %713 = vmatpush1.bf16.msra.mxu0 0
  %714 = vmatprep.subr.bf16.mxu0 0
  %715 = vmatpush1.bf16.msra.mxu0 0
  %716 = vmatprep.subr.bf16.mxu0 0
  %717 = vmatpush1.bf16.msra.mxu0 0
  %718 = vmatprep.subr.bf16.mxu0 0
  %719 = vmatpush1.bf16.msra.mxu0 0
  %720 = vmatprep.subr.bf16.mxu0 0
  %721 = vmatpush1.bf16.msra.mxu0 0
  %722 = vmatprep.subr.bf16.mxu0 0
  %723 = vmatpush1.bf16.msra.mxu0 0
  %724 = vmatprep.subr.bf16.mxu0 0
  %725 = vmatpush1.bf16.msra.mxu0 0
  %726 = vmatprep.subr.bf16.mxu0 0
  %727 = vmatpush1.bf16.msra.mxu0 0
  %728 = vmatprep.subr.bf16.mxu0 0
  %729 = vmatpush1.bf16.msra.mxu0 0
  %730 = vmatprep.subr.bf16.mxu0 0
  %731 = vmatpush1.bf16.msra.mxu0 0
  %732 = vmatprep.mubr.bf16.mxu0 0
  %733 = vmatmul.mubr.bf16.gmra.mrb[0].mxu0 %v692
  %v734 = vpop.f32.mrb[0].mxu0
  %v735 = vadd.f32 0.0, %v734
  %v736 = vpop.f32.mrb[0].mxu0
  %v737 = vadd.f32 0.0, %v736
  %v738 = vpop.f32.mrb[0].mxu0
  %v739 = vadd.f32 0.0, %v738
  %v740 = vpop.f32.mrb[0].mxu0
  %v741 = vadd.f32 0.0, %v740
  %742 = vdwg.mxu0
  %v743 = vadd.f32 %v676, %v735
  %v744 = vadd.f32 %v678, %v737
  %v745 = vadd.f32 %v680, %v739
  %v746 = vadd.f32 %v682, %v741
  %v747 = vld [vmem:[%s1 + $0x30] sm:$0xff]
  %v748 = vpack.c.bf16 %v563, %v562
  %v750 = vunpack.c.l.b16 %v747
  %v751 = vunpack.c.h.b16 %v747
  %v752 = vpack.c.b16 %v750, %v750
  %v753 = vpack.c.b16 %v751, %v751
  %v755 = vsel %vm573, %v748, 0
  %v758 = vsel %vm577, %v752, 0
  %v761 = vsel %vm577, %v753, 0
  %763 = vmatprep.subr.bf16.mxu0 %v761
  %764 = vmatpush1.bf16.msra.mxu0 %v758
  %765 = vmatprep.subr.bf16.mxu0 0
  %766 = vmatpush1.bf16.msra.mxu0 0
  %767 = vmatprep.subr.bf16.mxu0 0
  %768 = vmatpush1.bf16.msra.mxu0 0
  %769 = vmatprep.subr.bf16.mxu0 0
  %770 = vmatpush1.bf16.msra.mxu0 0
  %771 = vmatprep.subr.bf16.mxu0 0
  %772 = vmatpush1.bf16.msra.mxu0 0
  %773 = vmatprep.subr.bf16.mxu0 0
  %774 = vmatpush1.bf16.msra.mxu0 0
  %775 = vmatprep.subr.bf16.mxu0 0
  %776 = vmatpush1.bf16.msra.mxu0 0
  %777 = vmatprep.subr.bf16.mxu0 0
  %778 = vmatpush1.bf16.msra.mxu0 0
  %779 = vmatprep.subr.bf16.mxu0 0
  %780 = vmatpush1.bf16.msra.mxu0 0
  %781 = vmatprep.subr.bf16.mxu0 0
  %782 = vmatpush1.bf16.msra.mxu0 0
  %783 = vmatprep.subr.bf16.mxu0 0
  %784 = vmatpush1.bf16.msra.mxu0 0
  %785 = vmatprep.subr.bf16.mxu0 0
  %786 = vmatpush1.bf16.msra.mxu0 0
  %787 = vmatprep.subr.bf16.mxu0 0
  %788 = vmatpush1.bf16.msra.mxu0 0
  %789 = vmatprep.subr.bf16.mxu0 0
  %790 = vmatpush1.bf16.msra.mxu0 0
  %791 = vmatprep.subr.bf16.mxu0 0
  %792 = vmatpush1.bf16.msra.mxu0 0
  %793 = vmatprep.subr.bf16.mxu0 0
  %794 = vmatpush1.bf16.msra.mxu0 0
  %795 = vmatprep.mubr.bf16.mxu0 0
  %796 = vmatmul.mubr.bf16.gmra.mrb[0].mxu0 %v755
  %v797 = vpop.f32.mrb[0].mxu0
  %v798 = vadd.f32 0.0, %v797
  %v799 = vpop.f32.mrb[0].mxu0
  %v800 = vadd.f32 0.0, %v799
  %v801 = vpop.f32.mrb[0].mxu0
  %v802 = vadd.f32 0.0, %v801
  %v803 = vpop.f32.mrb[0].mxu0
  %v804 = vadd.f32 0.0, %v803
  %805 = vdwg.mxu0
  %v806 = vadd.f32 %v743, %v798
  %v807 = vadd.f32 %v744, %v800
  %v808 = vadd.f32 %v745, %v802
  %v809 = vadd.f32 %v746, %v804
  %v810 = vld [vmem:[%s2 + $0x148] sm:$0xf]
  %v811 = vld [vmem:[%s2 + $0x14c] sm:$0xf]
  %v812 = vpack.c.bf16 %v808, %v806
  %v813 = vld [vmem:[%s3 + $0x98] sm:$0xff]
  %v814 = vld [vmem:[%s3 + $0xa0] sm:$0xff]
  %v817 = vunpack.c.l.b16 %v810
  %v818 = vunpack.c.l.b16 %v811
  %v819 = vpack.c.b16 %v818, %v817
  %v821 = vsel %vm280, %v819, 0
  %823 = vmatprep.subr.bf16.mxu0 0
  %824 = vmatpush1.bf16.msra.mxu0 %v812
  %825 = vmatprep.subr.bf16.mxu0 0
  %826 = vmatpush1.bf16.msra.mxu0 0
  %827 = vmatprep.subr.bf16.mxu0 0
  %828 = vmatpush1.bf16.msra.mxu0 0
  %829 = vmatprep.subr.bf16.mxu0 0
  %830 = vmatpush1.bf16.msra.mxu0 0
  %831 = vmatprep.subr.bf16.mxu0 0
  %832 = vmatpush1.bf16.msra.mxu0 0
  %833 = vmatprep.subr.bf16.mxu0 0
  %834 = vmatpush1.bf16.msra.mxu0 0
  %835 = vmatprep.subr.bf16.mxu0 0
  %836 = vmatpush1.bf16.msra.mxu0 0
  %837 = vmatprep.subr.bf16.mxu0 0
  %838 = vmatpush1.bf16.msra.mxu0 0
  %839 = vmatprep.subr.bf16.mxu0 0
  %840 = vmatpush1.bf16.msra.mxu0 0
  %841 = vmatprep.subr.bf16.mxu0 0
  %842 = vmatpush1.bf16.msra.mxu0 0
  %843 = vmatprep.subr.bf16.mxu0 0
  %844 = vmatpush1.bf16.msra.mxu0 0
  %845 = vmatprep.subr.bf16.mxu0 0
  %846 = vmatpush1.bf16.msra.mxu0 0
  %847 = vmatprep.subr.bf16.mxu0 0
  %848 = vmatpush1.bf16.msra.mxu0 0
  %849 = vmatprep.subr.bf16.mxu0 0
  %850 = vmatpush1.bf16.msra.mxu0 0
  %851 = vmatprep.subr.bf16.mxu0 0
  %852 = vmatpush1.bf16.msra.mxu0 0
  %853 = vmatprep.subr.bf16.mxu0 0
  %854 = vmatpush1.bf16.msra.mxu0 0
  %855 = vmatprep.mubr.bf16.mxu0 0
  %856 = vmatmul.mubr.bf16.gmra.mrb[0].mxu0 %v821
  %v857 = vpop.f32.mrb[0].mxu0
  %v858 = vadd.f32 %v813, %v857
  %v859 = vpop.f32.mrb[0].mxu0
  %v860 = vpop.f32.mrb[0].mxu0
  %v861 = vadd.f32 %v814, %v860
  %v862 = vpop.f32.mrb[0].mxu0
  %863 = vdwg.mxu0
  %vm864 = vcmp.ge.f32.partialorder %v858, 0.0
  %vm865 = vcmp.ge.f32.partialorder %v861, 0.0
  %v866 = vmul.f32 %v858, 0.1
  %v867 = vmul.f32 %v861, 0.1
  %v868 = vsel %vm864, %v858, %v866
  %v869 = vsel %vm865, %v861, %v867
  %v870 = vld [vmem:[%s2 + $0x198] sm:$0xf]
  %v871 = vld [vmem:[%s2 + $0x19c] sm:$0xf]
  %v872 = vpack.c.bf16 %v809, %v807
  %v873 = vld [vmem:[%s3 + $0xb0] sm:$0xff]
  %v874 = vld [vmem:[%s3 + $0xb8] sm:$0xff]
  %v877 = vunpack.c.l.b16 %v870
  %v878 = vunpack.c.l.b16 %v871
  %v879 = vpack.c.b16 %v878, %v877
  %v881 = vsel %vm280, %v879, 0
  %883 = vmatprep.subr.bf16.mxu0 0
  %884 = vmatpush1.bf16.msra.mxu0 %v872
  %885 = vmatprep.subr.bf16.mxu0 0
  %886 = vmatpush1.bf16.msra.mxu0 0
  %887 = vmatprep.subr.bf16.mxu0 0
  %888 = vmatpush1.bf16.msra.mxu0 0
  %889 = vmatprep.subr.bf16.mxu0 0
  %890 = vmatpush1.bf16.msra.mxu0 0
  %891 = vmatprep.subr.bf16.mxu0 0
  %892 = vmatpush1.bf16.msra.mxu0 0
  %893 = vmatprep.subr.bf16.mxu0 0
  %894 = vmatpush1.bf16.msra.mxu0 0
  %895 = vmatprep.subr.bf16.mxu0 0
  %896 = vmatpush1.bf16.msra.mxu0 0
  %897 = vmatprep.subr.bf16.mxu0 0
  %898 = vmatpush1.bf16.msra.mxu0 0
  %899 = vmatprep.subr.bf16.mxu0 0
  %900 = vmatpush1.bf16.msra.mxu0 0
  %901 = vmatprep.subr.bf16.mxu0 0
  %902 = vmatpush1.bf16.msra.mxu0 0
  %903 = vmatprep.subr.bf16.mxu0 0
  %904 = vmatpush1.bf16.msra.mxu0 0
  %905 = vmatprep.subr.bf16.mxu0 0
  %906 = vmatpush1.bf16.msra.mxu0 0
  %907 = vmatprep.subr.bf16.mxu0 0
  %908 = vmatpush1.bf16.msra.mxu0 0
  %909 = vmatprep.subr.bf16.mxu0 0
  %910 = vmatpush1.bf16.msra.mxu0 0
  %911 = vmatprep.subr.bf16.mxu0 0
  %912 = vmatpush1.bf16.msra.mxu0 0
  %913 = vmatprep.subr.bf16.mxu0 0
  %914 = vmatpush1.bf16.msra.mxu0 0
  %915 = vmatprep.mubr.bf16.mxu0 0
  %916 = vmatmul.mubr.bf16.gmra.mrb[0].mxu0 %v881
  %v917 = vpop.f32.mrb[0].mxu0
  %v918 = vadd.f32 %v873, %v917
  %v919 = vpop.f32.mrb[0].mxu0
  %v920 = vpop.f32.mrb[0].mxu0
  %v921 = vadd.f32 %v874, %v920
  %v922 = vpop.f32.mrb[0].mxu0
  %923 = vdwg.mxu0
  %vm924 = vcmp.ge.f32.partialorder %v918, 0.0
  %vm925 = vcmp.ge.f32.partialorder %v921, 0.0
  %v926 = vmul.f32 %v918, 0.1
  %v927 = vmul.f32 %v921, 0.1
  %v928 = vsel %vm924, %v918, %v926
  %v929 = vsel %vm925, %v921, %v927
  %v930 = vld [vmem:[%s2 + $0x150] sm:$0xf]
  %v931 = vld [vmem:[%s2 + $0x154] sm:$0xf]
  %v932 = vld [vmem:[%s2 + $0x158] sm:$0xf]
  %v933 = vld [vmem:[%s2 + $0x15c] sm:$0xf]
  %v934 = vld [vmem:[%s2 + $0x160] sm:$0xf]
  %v935 = vld [vmem:[%s2 + $0x164] sm:$0xf]
  %v936 = vld [vmem:[%s2 + $0x168] sm:$0xf]
  %v937 = vld [vmem:[%s2 + $0x16c] sm:$0xf]
  %v938 = vld [vmem:[%s2 + $0x170] sm:$0xf]
  %v939 = vld [vmem:[%s2 + $0x174] sm:$0xf]
  %v940 = vld [vmem:[%s2 + $0x178] sm:$0xf]
  %v941 = vld [vmem:[%s2 + $0x17c] sm:$0xf]
  %v942 = vld [vmem:[%s2 + $0x180] sm:$0xf]
  %v943 = vld [vmem:[%s2 + $0x184] sm:$0xf]
  %v944 = vld [vmem:[%s2 + $0x188] sm:$0xf]
  %v945 = vld [vmem:[%s2 + $0x18c] sm:$0xf]
  %v946 = vld [vmem:[%s2 + $0x190] sm:$0xf]
  %v947 = vld [vmem:[%s2 + $0x194] sm:$0xf]
  %v948 = vpack.c.bf16 %v869, %v868
  %v965 = vunpack.c.l.b16 %v932
  %v966 = vunpack.c.l.b16 %v933
  %v967 = vunpack.c.l.b16 %v934
  %v968 = vunpack.c.l.b16 %v935
  %v969 = vunpack.c.l.b16 %v936
  %v970 = vunpack.c.l.b16 %v937
  %v971 = vunpack.c.l.b16 %v938
  %v972 = vunpack.c.l.b16 %v939
  %v973 = vunpack.c.l.b16 %v940
  %v974 = vunpack.c.l.b16 %v941
  %v975 = vunpack.c.l.b16 %v942
  %v976 = vunpack.c.l.b16 %v943
  %v977 = vunpack.c.l.b16 %v944
  %v978 = vunpack.c.l.b16 %v945
  %v979 = vunpack.c.l.b16 %v946
  %v980 = vunpack.c.l.b16 %v947
  %v981 = vpack.c.b16 %v966, %v965
  %v982 = vpack.c.b16 %v968, %v967
  %v983 = vpack.c.b16 %v970, %v969
  %v984 = vpack.c.b16 %v972, %v971
  %v985 = vpack.c.b16 %v974, %v973
  %v986 = vpack.c.b16 %v976, %v975
  %v987 = vpack.c.b16 %v978, %v977
  %v988 = vpack.c.b16 %v980, %v979
  %997 = vmatprep.subr.bf16.mxu0 0
  %998 = vmatpush1.bf16.msra.mxu0 %v981
  %999 = vmatprep.subr.bf16.mxu0 0
  %1000 = vmatpush1.bf16.msra.mxu0 %v982
  %1001 = vmatprep.subr.bf16.mxu0 0
  %1002 = vmatpush1.bf16.msra.mxu0 %v983
  %1003 = vmatprep.subr.bf16.mxu0 0
  %1004 = vmatpush1.bf16.msra.mxu0 %v984
  %1005 = vmatprep.subr.bf16.mxu0 0
  %1006 = vmatpush1.bf16.msra.mxu0 %v985
  %1007 = vmatprep.subr.bf16.mxu0 0
  %1008 = vmatpush1.bf16.msra.mxu0 %v986
  %1009 = vmatprep.subr.bf16.mxu0 0
  %1010 = vmatpush1.bf16.msra.mxu0 %v987
  %1011 = vmatprep.subr.bf16.mxu0 0
  %1012 = vmatpush1.bf16.msra.mxu0 %v988
  %1013 = vmatprep.subr.bf16.mxu0 0
  %1014 = vmatpush1.bf16.msra.mxu0 0
  %1015 = vmatprep.subr.bf16.mxu0 0
  %1016 = vmatpush1.bf16.msra.mxu0 0
  %1017 = vmatprep.subr.bf16.mxu0 0
  %1018 = vmatpush1.bf16.msra.mxu0 0
  %1019 = vmatprep.subr.bf16.mxu0 0
  %1020 = vmatpush1.bf16.msra.mxu0 0
  %1021 = vmatprep.subr.bf16.mxu0 0
  %1022 = vmatpush1.bf16.msra.mxu0 0
  %1023 = vmatprep.subr.bf16.mxu0 0
  %1024 = vmatpush1.bf16.msra.mxu0 0
  %1025 = vmatprep.subr.bf16.mxu0 0
  %1026 = vmatpush1.bf16.msra.mxu0 0
  %1027 = vmatprep.subr.bf16.mxu0 0
  %1028 = vmatpush1.bf16.msra.mxu0 0
  %1029 = vmatprep.mubr.bf16.mxu0 0
  %1030 = vmatmul.mubr.bf16.gmra.mrb[0].mxu0 %v948
  %v1031 = vpop.f32.mrb[0].mxu0
  %v1032 = vadd.f32 0.0, %v1031
  %v1033 = vpop.f32.mrb[0].mxu0
  %v1034 = vpop.f32.mrb[0].mxu0
  %v1035 = vadd.f32 0.0, %v1034
  %v1036 = vpop.f32.mrb[0].mxu0
  %1037 = vdwg.mxu0
  %v1038 = vpack.c.bf16 %v1035, %v1032
  %v1039 = vld [vmem:[%s3 + $0xa8] sm:$0x1]
  %v1040 = vlaneseq
  %v1041 = vshrl.u32 %v1040, 7
  %v1042 = vsub.s32 0, %v1041
  %v1043 = vrot.slane %v1039, %v1042
  %v1046 = vunpack.c.l.b16 %v930
  %v1047 = vunpack.c.l.b16 %v931
  %v1048 = vpack.c.b16 %v1047, %v1046
  %v1050 = vsel %vm280, %v1048, 0
  %1052 = vmatprep.subr.bf16.mxu0 0
  %1053 = vmatpush1.bf16.msra.mxu0 %v1038
  %1054 = vmatprep.subr.bf16.mxu0 0
  %1055 = vmatpush1.bf16.msra.mxu0 0
  %1056 = vmatprep.subr.bf16.mxu0 0
  %1057 = vmatpush1.bf16.msra.mxu0 0
  %1058 = vmatprep.subr.bf16.mxu0 0
  %1059 = vmatpush1.bf16.msra.mxu0 0
  %1060 = vmatprep.subr.bf16.mxu0 0
  %1061 = vmatpush1.bf16.msra.mxu0 0
  %1062 = vmatprep.subr.bf16.mxu0 0
  %1063 = vmatpush1.bf16.msra.mxu0 0
  %1064 = vmatprep.subr.bf16.mxu0 0
  %1065 = vmatpush1.bf16.msra.mxu0 0
  %1066 = vmatprep.subr.bf16.mxu0 0
  %1067 = vmatpush1.bf16.msra.mxu0 0
  %1068 = vmatprep.subr.bf16.mxu0 0
  %1069 = vmatpush1.bf16.msra.mxu0 0
  %1070 = vmatprep.subr.bf16.mxu0 0
  %1071 = vmatpush1.bf16.msra.mxu0 0
  %1072 = vmatprep.subr.bf16.mxu0 0
  %1073 = vmatpush1.bf16.msra.mxu0 0
  %1074 = vmatprep.subr.bf16.mxu0 0
  %1075 = vmatpush1.bf16.msra.mxu0 0
  %1076 = vmatprep.subr.bf16.mxu0 0
  %1077 = vmatpush1.bf16.msra.mxu0 0
  %1078 = vmatprep.subr.bf16.mxu0 0
  %1079 = vmatpush1.bf16.msra.mxu0 0
  %1080 = vmatprep.subr.bf16.mxu0 0
  %1081 = vmatpush1.bf16.msra.mxu0 0
  %1082 = vmatprep.subr.bf16.mxu0 0
  %1083 = vmatpush1.bf16.msra.mxu0 0
  %1084 = vmatprep.mubr.bf16.mxu0 0
  %1085 = vmatmul.mubr.bf16.gmra.mrb[0].mxu0 %v1050
  %v1086 = vpop.f32.mrb[0].mxu0
  %v1087 = vadd.f32 %v1043, %v1086
  %v1088 = vpop.f32.mrb[0].mxu0
  %v1089 = vpop.f32.mrb[0].mxu0
  %v1090 = vadd.f32 %v1043, %v1089
  %v1091 = vpop.f32.mrb[0].mxu0
  %1092 = vdwg.mxu0
  %v1093 = vld [vmem:[%s2 + $0x1a0] sm:$0xf]
  %v1094 = vld [vmem:[%s2 + $0x1a4] sm:$0xf]
  %v1095 = vld [vmem:[%s2 + $0x1a8] sm:$0xf]
  %v1096 = vld [vmem:[%s2 + $0x1ac] sm:$0xf]
  %v1097 = vld [vmem:[%s2 + $0x1b0] sm:$0xf]
  %v1098 = vld [vmem:[%s2 + $0x1b4] sm:$0xf]
  %v1099 = vld [vmem:[%s2 + $0x1b8] sm:$0xf]
  %v1100 = vld [vmem:[%s2 + $0x1bc] sm:$0xf]
  %v1101 = vld [vmem:[%s2 + $0x1c0] sm:$0xf]
  %v1102 = vld [vmem:[%s2 + $0x1c4] sm:$0xf]
  %v1103 = vld [vmem:[%s2 + $0x1c8] sm:$0xf]
  %v1104 = vld [vmem:[%s2 + $0x1cc] sm:$0xf]
  %v1105 = vld [vmem:[%s2 + $0x1d0] sm:$0xf]
  %v1106 = vld [vmem:[%s2 + $0x1d4] sm:$0xf]
  %v1107 = vld [vmem:[%s2 + $0x1d8] sm:$0xf]
  %v1108 = vld [vmem:[%s2 + $0x1dc] sm:$0xf]
  %v1109 = vld [vmem:[%s2 + $0x1e0] sm:$0xf]
  %v1110 = vld [vmem:[%s2 + $0x1e4] sm:$0xf]
  %v1111 = vpack.c.bf16 %v929, %v928
  %v1128 = vunpack.c.l.b16 %v1095
  %v1129 = vunpack.c.l.b16 %v1096
  %v1130 = vunpack.c.l.b16 %v1097
  %v1131 = vunpack.c.l.b16 %v1098
  %v1132 = vunpack.c.l.b16 %v1099
  %v1133 = vunpack.c.l.b16 %v1100
  %v1134 = vunpack.c.l.b16 %v1101
  %v1135 = vunpack.c.l.b16 %v1102
  %v1136 = vunpack.c.l.b16 %v1103
  %v1137 = vunpack.c.l.b16 %v1104
  %v1138 = vunpack.c.l.b16 %v1105
  %v1139 = vunpack.c.l.b16 %v1106
  %v1140 = vunpack.c.l.b16 %v1107
  %v1141 = vunpack.c.l.b16 %v1108
  %v1142 = vunpack.c.l.b16 %v1109
  %v1143 = vunpack.c.l.b16 %v1110
  %v1144 = vpack.c.b16 %v1129, %v1128
  %v1145 = vpack.c.b16 %v1131, %v1130
  %v1146 = vpack.c.b16 %v1133, %v1132
  %v1147 = vpack.c.b16 %v1135, %v1134
  %v1148 = vpack.c.b16 %v1137, %v1136
  %v1149 = vpack.c.b16 %v1139, %v1138
  %v1150 = vpack.c.b16 %v1141, %v1140
  %v1151 = vpack.c.b16 %v1143, %v1142
  %1160 = vmatprep.subr.bf16.mxu0 0
  %1161 = vmatpush1.bf16.msra.mxu0 %v1144
  %1162 = vmatprep.subr.bf16.mxu0 0
  %1163 = vmatpush1.bf16.msra.mxu0 %v1145
  %1164 = vmatprep.subr.bf16.mxu0 0
  %1165 = vmatpush1.bf16.msra.mxu0 %v1146
  %1166 = vmatprep.subr.bf16.mxu0 0
  %1167 = vmatpush1.bf16.msra.mxu0 %v1147
  %1168 = vmatprep.subr.bf16.mxu0 0
  %1169 = vmatpush1.bf16.msra.mxu0 %v1148
  %1170 = vmatprep.subr.bf16.mxu0 0
  %1171 = vmatpush1.bf16.msra.mxu0 %v1149
  %1172 = vmatprep.subr.bf16.mxu0 0
  %1173 = vmatpush1.bf16.msra.mxu0 %v1150
  %1174 = vmatprep.subr.bf16.mxu0 0
  %1175 = vmatpush1.bf16.msra.mxu0 %v1151
  %1176 = vmatprep.subr.bf16.mxu0 0
  %1177 = vmatpush1.bf16.msra.mxu0 0
  %1178 = vmatprep.subr.bf16.mxu0 0
  %1179 = vmatpush1.bf16.msra.mxu0 0
  %1180 = vmatprep.subr.bf16.mxu0 0
  %1181 = vmatpush1.bf16.msra.mxu0 0
  %1182 = vmatprep.subr.bf16.mxu0 0
  %1183 = vmatpush1.bf16.msra.mxu0 0
  %1184 = vmatprep.subr.bf16.mxu0 0
  %1185 = vmatpush1.bf16.msra.mxu0 0
  %1186 = vmatprep.subr.bf16.mxu0 0
  %1187 = vmatpush1.bf16.msra.mxu0 0
  %1188 = vmatprep.subr.bf16.mxu0 0
  %1189 = vmatpush1.bf16.msra.mxu0 0
  %1190 = vmatprep.subr.bf16.mxu0 0
  %1191 = vmatpush1.bf16.msra.mxu0 0
  %1192 = vmatprep.mubr.bf16.mxu0 0
  %1193 = vmatmul.mubr.bf16.gmra.mrb[0].mxu0 %v1111
  %v1194 = vpop.f32.mrb[0].mxu0
  %v1195 = vadd.f32 0.0, %v1194
  %v1196 = vpop.f32.mrb[0].mxu0
  %v1197 = vpop.f32.mrb[0].mxu0
  %v1198 = vadd.f32 0.0, %v1197
  %v1199 = vpop.f32.mrb[0].mxu0
  %1200 = vdwg.mxu0
  %v1201 = vpack.c.bf16 %v1198, %v1195
  %v1202 = vld [vmem:[%s3 + $0xc0] sm:$0x1]
  %v1203 = vlaneseq
  %v1204 = vshrl.u32 %v1203, 7
  %v1205 = vsub.s32 0, %v1204
  %v1206 = vrot.slane %v1202, %v1205
  %v1209 = vunpack.c.l.b16 %v1093
  %v1210 = vunpack.c.l.b16 %v1094
  %v1211 = vpack.c.b16 %v1210, %v1209
  %v1213 = vsel %vm280, %v1211, 0
  %1215 = vmatprep.subr.bf16.mxu0 0
  %1216 = vmatpush1.bf16.msra.mxu0 %v1201
  %1217 = vmatprep.subr.bf16.mxu0 0
  %1218 = vmatpush1.bf16.msra.mxu0 0
  %1219 = vmatprep.subr.bf16.mxu0 0
  %1220 = vmatpush1.bf16.msra.mxu0 0
  %1221 = vmatprep.subr.bf16.mxu0 0
  %1222 = vmatpush1.bf16.msra.mxu0 0
  %1223 = vmatprep.subr.bf16.mxu0 0
  %1224 = vmatpush1.bf16.msra.mxu0 0
  %1225 = vmatprep.subr.bf16.mxu0 0
  %1226 = vmatpush1.bf16.msra.mxu0 0
  %1227 = vmatprep.subr.bf16.mxu0 0
  %1228 = vmatpush1.bf16.msra.mxu0 0
  %1229 = vmatprep.subr.bf16.mxu0 0
  %1230 = vmatpush1.bf16.msra.mxu0 0
  %1231 = vmatprep.subr.bf16.mxu0 0
  %1232 = vmatpush1.bf16.msra.mxu0 0
  %1233 = vmatprep.subr.bf16.mxu0 0
  %1234 = vmatpush1.bf16.msra.mxu0 0
  %1235 = vmatprep.subr.bf16.mxu0 0
  %1236 = vmatpush1.bf16.msra.mxu0 0
  %1237 = vmatprep.subr.bf16.mxu0 0
  %1238 = vmatpush1.bf16.msra.mxu0 0
  %1239 = vmatprep.subr.bf16.mxu0 0
  %1240 = vmatpush1.bf16.msra.mxu0 0
  %1241 = vmatprep.subr.bf16.mxu0 0
  %1242 = vmatpush1.bf16.msra.mxu0 0
  %1243 = vmatprep.subr.bf16.mxu0 0
  %1244 = vmatpush1.bf16.msra.mxu0 0
  %1245 = vmatprep.subr.bf16.mxu0 0
  %1246 = vmatpush1.bf16.msra.mxu0 0
  %1247 = vmatprep.mubr.bf16.mxu0 0
  %1248 = vmatmul.mubr.bf16.gmra.mrb[0].mxu0 %v1213
  %v1249 = vpop.f32.mrb[0].mxu0
  %v1250 = vadd.f32 %v1206, %v1249
  %v1251 = vpop.f32.mrb[0].mxu0
  %v1252 = vpop.f32.mrb[0].mxu0
  %v1253 = vadd.f32 %v1206, %v1252
  %v1254 = vpop.f32.mrb[0].mxu0
  %1255 = vdwg.mxu0
  %v1256 = vld [vmem:[%s2 + $0x1e8] sm:$0x3]
  %v1257 = vpack.c.bf16 %v1090, %v1087
  %v1258 = vld [vmem:[%s3 + $0xc8] sm:$0xf]
  %1260 = vset.pattern.permute.xlu0 0
  %1261 = vperm.xlu0 %1260, %v1258
  %v1262 = vpop.permute.xlu0 %1261
  %v1265 = vsel %vm280, %v1256, 0
  %1267 = vmatprep.subr.bf16.mxu0 0
  %1268 = vmatpush1.bf16.msra.mxu0 %v1257
  %1269 = vmatprep.subr.bf16.mxu0 0
  %1270 = vmatpush1.bf16.msra.mxu0 0
  %1271 = vmatprep.subr.bf16.mxu0 0
  %1272 = vmatpush1.bf16.msra.mxu0 0
  %1273 = vmatprep.subr.bf16.mxu0 0
  %1274 = vmatpush1.bf16.msra.mxu0 0
  %1275 = vmatprep.subr.bf16.mxu0 0
  %1276 = vmatpush1.bf16.msra.mxu0 0
  %1277 = vmatprep.subr.bf16.mxu0 0
  %1278 = vmatpush1.bf16.msra.mxu0 0
  %1279 = vmatprep.subr.bf16.mxu0 0
  %1280 = vmatpush1.bf16.msra.mxu0 0
  %1281 = vmatprep.subr.bf16.mxu0 0
  %1282 = vmatpush1.bf16.msra.mxu0 0
  %1283 = vmatprep.subr.bf16.mxu0 0
  %1284 = vmatpush1.bf16.msra.mxu0 0
  %1285 = vmatprep.subr.bf16.mxu0 0
  %1286 = vmatpush1.bf16.msra.mxu0 0
  %1287 = vmatprep.subr.bf16.mxu0 0
  %1288 = vmatpush1.bf16.msra.mxu0 0
  %1289 = vmatprep.subr.bf16.mxu0 0
  %1290 = vmatpush1.bf16.msra.mxu0 0
  %1291 = vmatprep.subr.bf16.mxu0 0
  %1292 = vmatpush1.bf16.msra.mxu0 0
  %1293 = vmatprep.subr.bf16.mxu0 0
  %1294 = vmatpush1.bf16.msra.mxu0 0
  %1295 = vmatprep.subr.bf16.mxu0 0
  %1296 = vmatpush1.bf16.msra.mxu0 0
  %1297 = vmatprep.subr.bf16.mxu0 0
  %1298 = vmatpush1.bf16.msra.mxu0 0
  %1299 = vmatprep.mubr.bf16.mxu0 0
  %1300 = vmatmul.mubr.bf16.gmra.mrb[0].mxu0 %v1265
  %v1301 = vpop.f32.mrb[0].mxu0
  %v1302 = vadd.f32 %v1262, %v1301
  %v1303 = vpop.f32.mrb[0].mxu0
  %v1304 = vpop.f32.mrb[0].mxu0
  %v1305 = vpop.f32.mrb[0].mxu0
  %1306 = vdwg.mxu0
  %v1307 = vld [vmem:[%s2 + $0x1f0] sm:$0x3]
  %v1308 = vpack.c.bf16 %v1253, %v1250
  %v1309 = vld [vmem:[%s3 + $0xd0] sm:$0xf]
  %1311 = vset.pattern.permute.xlu0 0
  %1312 = vperm.xlu0 %1311, %v1309
  %v1313 = vpop.permute.xlu0 %1312
  %v1316 = vsel %vm280, %v1307, 0
  %1318 = vmatprep.subr.bf16.mxu0 0
  %1319 = vmatpush1.bf16.msra.mxu0 %v1308
  %1320 = vmatprep.subr.bf16.mxu0 0
  %1321 = vmatpush1.bf16.msra.mxu0 0
  %1322 = vmatprep.subr.bf16.mxu0 0
  %1323 = vmatpush1.bf16.msra.mxu0 0
  %1324 = vmatprep.subr.bf16.mxu0 0
  %1325 = vmatpush1.bf16.msra.mxu0 0
  %1326 = vmatprep.subr.bf16.mxu0 0
  %1327 = vmatpush1.bf16.msra.mxu0 0
  %1328 = vmatprep.subr.bf16.mxu0 0
  %1329 = vmatpush1.bf16.msra.mxu0 0
  %1330 = vmatprep.subr.bf16.mxu0 0
  %1331 = vmatpush1.bf16.msra.mxu0 0
  %1332 = vmatprep.subr.bf16.mxu0 0
  %1333 = vmatpush1.bf16.msra.mxu0 0
  %1334 = vmatprep.subr.bf16.mxu0 0
  %1335 = vmatpush1.bf16.msra.mxu0 0
  %1336 = vmatprep.subr.bf16.mxu0 0
  %1337 = vmatpush1.bf16.msra.mxu0 0
  %1338 = vmatprep.subr.bf16.mxu0 0
  %1339 = vmatpush1.bf16.msra.mxu0 0
  %1340 = vmatprep.subr.bf16.mxu0 0
  %1341 = vmatpush1.bf16.msra.mxu0 0
  %1342 = vmatprep.subr.bf16.mxu0 0
  %1343 = vmatpush1.bf16.msra.mxu0 0
  %1344 = vmatprep.subr.bf16.mxu0 0
  %1345 = vmatpush1.bf16.msra.mxu0 0
  %1346 = vmatprep.subr.bf16.mxu0 0
  %1347 = vmatpush1.bf16.msra.mxu0 0
  %1348 = vmatprep.subr.bf16.mxu0 0
  %1349 = vmatpush1.bf16.msra.mxu0 0
  %1350 = vmatprep.mubr.bf16.mxu0 0
  %1351 = vmatmul.mubr.bf16.gmra.mrb[0].mxu0 %v1316
  %v1352 = vpop.f32.mrb[0].mxu0
  %v1353 = vadd.f32 %v1313, %v1352
  %v1354 = vpop.f32.mrb[0].mxu0
  %v1355 = vpop.f32.mrb[0].mxu0
  %v1356 = vpop.f32.mrb[0].mxu0
  %1357 = vdwg.mxu0
  %v1358 = vld [vmem:[%s3 + $0xf0] sm:$0xf]
  %1360 = vset.pattern.permute.xlu0 0
  %1361 = vperm.xlu0 %1360, %v1358
  %v1362 = vpop.permute.xlu0 %1361
  %v1364 = vmul.f32 %v1302, %v1362
  %v1365 = vsel %vm577, %v1364, -inf
  %1366 = vmax.xlane.f32.xlu0 %v1365
  %v1367 = vpop.xlane.xlu0 %1366
  %v1368 = vsub.f32 %v1364, %v1367
  %v1369 = vmul.f32 %v1368, 1.442695
  %v1370 = vpow.pop %v1369
  %v1371 = vld [vmem:[%s2 + $0x48] sm:$0xf]
  %v1372 = vld [vmem:[%s2 + $0x4c] sm:$0xf]
  %v1373 = vld [vmem:[%s2 + $0x50] sm:$0xf]
  %v1374 = vld [vmem:[%s2 + $0x54] sm:$0xf]
  %v1375 = vld [vmem:[%s2 + $0x58] sm:$0xf]
  %v1376 = vld [vmem:[%s2 + $0x5c] sm:$0xf]
  %v1377 = vld [vmem:[%s2 + $0x60] sm:$0xf]
  %v1378 = vld [vmem:[%s2 + $0x64] sm:$0xf]
  %v1379 = vld [vmem:[%s2 + $0x68] sm:$0xf]
  %v1380 = vld [vmem:[%s2 + $0x6c] sm:$0xf]
  %v1381 = vld [vmem:[%s2 + $0x70] sm:$0xf]
  %v1382 = vld [vmem:[%s2 + $0x74] sm:$0xf]
  %v1383 = vld [vmem:[%s2 + $0x78] sm:$0xf]
  %v1384 = vld [vmem:[%s2 + $0x7c] sm:$0xf]
  %v1385 = vld [vmem:[%s2 + $0x80] sm:$0xf]
  %v1386 = vld [vmem:[%s2 + $0x84] sm:$0xf]
  %v1387 = vpack.c.bf16 %v1370, %v1370
  %v1404 = vunpack.c.l.b16 %v1371
  %v1405 = vunpack.c.l.b16 %v1372
  %v1406 = vunpack.c.l.b16 %v1373
  %v1407 = vunpack.c.l.b16 %v1374
  %v1408 = vunpack.c.l.b16 %v1375
  %v1409 = vunpack.c.l.b16 %v1376
  %v1410 = vunpack.c.l.b16 %v1377
  %v1411 = vunpack.c.l.b16 %v1378
  %v1412 = vunpack.c.l.b16 %v1379
  %v1413 = vunpack.c.l.b16 %v1380
  %v1414 = vunpack.c.l.b16 %v1381
  %v1415 = vunpack.c.l.b16 %v1382
  %v1416 = vunpack.c.l.b16 %v1383
  %v1417 = vunpack.c.l.b16 %v1384
  %v1418 = vunpack.c.l.b16 %v1385
  %v1419 = vunpack.c.l.b16 %v1386
  %v1420 = vpack.c.b16 %v1405, %v1404
  %v1421 = vpack.c.b16 %v1407, %v1406
  %v1422 = vpack.c.b16 %v1409, %v1408
  %v1423 = vpack.c.b16 %v1411, %v1410
  %v1424 = vpack.c.b16 %v1413, %v1412
  %v1425 = vpack.c.b16 %v1415, %v1414
  %v1426 = vpack.c.b16 %v1417, %v1416
  %v1427 = vpack.c.b16 %v1419, %v1418
  %1436 = vmatprep.subr.bf16.mxu0 0
  %1437 = vmatpush1.bf16.msra.mxu0 %v1420
  %1438 = vmatprep.subr.bf16.mxu0 0
  %1439 = vmatpush1.bf16.msra.mxu0 %v1421
  %1440 = vmatprep.subr.bf16.mxu0 0
  %1441 = vmatpush1.bf16.msra.mxu0 %v1422
  %1442 = vmatprep.subr.bf16.mxu0 0
  %1443 = vmatpush1.bf16.msra.mxu0 %v1423
  %1444 = vmatprep.subr.bf16.mxu0 0
  %1445 = vmatpush1.bf16.msra.mxu0 %v1424
  %1446 = vmatprep.subr.bf16.mxu0 0
  %1447 = vmatpush1.bf16.msra.mxu0 %v1425
  %1448 = vmatprep.subr.bf16.mxu0 0
  %1449 = vmatpush1.bf16.msra.mxu0 %v1426
  %1450 = vmatprep.subr.bf16.mxu0 0
  %1451 = vmatpush1.bf16.msra.mxu0 %v1427
  %1452 = vmatprep.subr.bf16.mxu0 0
  %1453 = vmatpush1.bf16.msra.mxu0 0
  %1454 = vmatprep.subr.bf16.mxu0 0
  %1455 = vmatpush1.bf16.msra.mxu0 0
  %1456 = vmatprep.subr.bf16.mxu0 0
  %1457 = vmatpush1.bf16.msra.mxu0 0
  %1458 = vmatprep.subr.bf16.mxu0 0
  %1459 = vmatpush1.bf16.msra.mxu0 0
  %1460 = vmatprep.subr.bf16.mxu0 0
  %1461 = vmatpush1.bf16.msra.mxu0 0
  %1462 = vmatprep.subr.bf16.mxu0 0
  %1463 = vmatpush1.bf16.msra.mxu0 0
  %1464 = vmatprep.subr.bf16.mxu0 0
  %1465 = vmatpush1.bf16.msra.mxu0 0
  %1466 = vmatprep.subr.bf16.mxu0 0
  %1467 = vmatpush1.bf16.msra.mxu0 0
  %1468 = vmatprep.mubr.bf16.mxu0 0
  %1469 = vmatmul.mubr.bf16.gmra.mrb[0].mxu0 %v1387
  %v1470 = vpop.f32.mrb[0].mxu0
  %v1471 = vadd.f32 1e-30, %v1470
  %v1472 = vpop.f32.mrb[0].mxu0
  %v1473 = vpop.f32.mrb[0].mxu0
  %v1474 = vpop.f32.mrb[0].mxu0
  %1475 = vdwg.mxu0
  %v1476 = vrcp.pop %v1471
  %v1477 = vmul.f32 %v1370, %v1476
  %v1478 = vmul.f32 %v1477, %v1353
  %v1479 = vld [vmem:[%s2 + $0x2e8] sm:$0xf]
  %v1480 = vld [vmem:[%s2 + $0x2ec] sm:$0xf]
  %v1481 = vld [vmem:[%s2 + $0x2f0] sm:$0xf]
  %v1482 = vld [vmem:[%s2 + $0x2f4] sm:$0xf]
  %v1483 = vpack.c.bf16 %v1477, %v1477
  %v1486 = vunpack.c.l.b16 %v1481
  %v1487 = vunpack.c.l.b16 %v1482
  %v1488 = vpack.c.b16 %v1487, %v1486
  %vm1489 = vcmask 31744
  %v1491 = vsel %vm1489, %v1488, 0
  %v1494 = vsel %vm44, %v1483, 0
  %1496 = vmatprep.subr.bf16.mxu0 0
  %1497 = vmatpush1.bf16.msra.mxu0 %v1494
  %1498 = vmatprep.subr.bf16.mxu0 0
  %1499 = vmatpush1.bf16.msra.mxu0 0
  %1500 = vmatprep.subr.bf16.mxu0 0
  %1501 = vmatpush1.bf16.msra.mxu0 0
  %1502 = vmatprep.subr.bf16.mxu0 0
  %1503 = vmatpush1.bf16.msra.mxu0 0
  %1504 = vmatprep.subr.bf16.mxu0 0
  %1505 = vmatpush1.bf16.msra.mxu0 0
  %1506 = vmatprep.subr.bf16.mxu0 0
  %1507 = vmatpush1.bf16.msra.mxu0 0
  %1508 = vmatprep.subr.bf16.mxu0 0
  %1509 = vmatpush1.bf16.msra.mxu0 0
  %1510 = vmatprep.subr.bf16.mxu0 0
  %1511 = vmatpush1.bf16.msra.mxu0 0
  %1512 = vmatprep.subr.bf16.mxu0 0
  %1513 = vmatpush1.bf16.msra.mxu0 0
  %1514 = vmatprep.subr.bf16.mxu0 0
  %1515 = vmatpush1.bf16.msra.mxu0 0
  %1516 = vmatprep.subr.bf16.mxu0 0
  %1517 = vmatpush1.bf16.msra.mxu0 0
  %1518 = vmatprep.subr.bf16.mxu0 0
  %1519 = vmatpush1.bf16.msra.mxu0 0
  %1520 = vmatprep.subr.bf16.mxu0 0
  %1521 = vmatpush1.bf16.msra.mxu0 0
  %1522 = vmatprep.subr.bf16.mxu0 0
  %1523 = vmatpush1.bf16.msra.mxu0 0
  %1524 = vmatprep.subr.bf16.mxu0 0
  %1525 = vmatpush1.bf16.msra.mxu0 0
  %1526 = vmatprep.subr.bf16.mxu0 0
  %1527 = vmatpush1.bf16.msra.mxu0 0
  %1528 = vmatprep.mubr.bf16.mxu0 0
  %1529 = vmatmul.mubr.bf16.gmra.mrb[0].mxu0 %v1491
  %v1530 = vpop.f32.mrb[0].mxu0
  %v1531 = vadd.f32 0.0, %v1530
  %v1532 = vpop.f32.mrb[0].mxu0
  %v1533 = vpop.f32.mrb[0].mxu0
  %v1534 = vadd.f32 0.0, %v1533
  %v1535 = vpop.f32.mrb[0].mxu0
  %1536 = vdwg.mxu0
  %v1539 = vunpack.c.l.b16 %v1479
  %v1540 = vunpack.c.l.b16 %v1480
  %v1541 = vpack.c.b16 %v1540, %v1539
  %v1543 = vsel %vm280, %v1541, 0
  %1545 = vmatprep.subr.bf16.mxu0 0
  %1546 = vmatpush1.bf16.msra.mxu0 %v113
  %1547 = vmatprep.subr.bf16.mxu0 0
  %1548 = vmatpush1.bf16.msra.mxu0 0
  %1549 = vmatprep.subr.bf16.mxu0 0
  %1550 = vmatpush1.bf16.msra.mxu0 0
  %1551 = vmatprep.subr.bf16.mxu0 0
  %1552 = vmatpush1.bf16.msra.mxu0 0
  %1553 = vmatprep.subr.bf16.mxu0 0
  %1554 = vmatpush1.bf16.msra.mxu0 0
  %1555 = vmatprep.subr.bf16.mxu0 0
  %1556 = vmatpush1.bf16.msra.mxu0 0
  %1557 = vmatprep.subr.bf16.mxu0 0
  %1558 = vmatpush1.bf16.msra.mxu0 0
  %1559 = vmatprep.subr.bf16.mxu0 0
  %1560 = vmatpush1.bf16.msra.mxu0 0
  %1561 = vmatprep.subr.bf16.mxu0 0
  %1562 = vmatpush1.bf16.msra.mxu0 0
  %1563 = vmatprep.subr.bf16.mxu0 0
  %1564 = vmatpush1.bf16.msra.mxu0 0
  %1565 = vmatprep.subr.bf16.mxu0 0
  %1566 = vmatpush1.bf16.msra.mxu0 0
  %1567 = vmatprep.subr.bf16.mxu0 0
  %1568 = vmatpush1.bf16.msra.mxu0 0
  %1569 = vmatprep.subr.bf16.mxu0 0
  %1570 = vmatpush1.bf16.msra.mxu0 0
  %1571 = vmatprep.subr.bf16.mxu0 0
  %1572 = vmatpush1.bf16.msra.mxu0 0
  %1573 = vmatprep.subr.bf16.mxu0 0
  %1574 = vmatpush1.bf16.msra.mxu0 0
  %1575 = vmatprep.subr.bf16.mxu0 0
  %1576 = vmatpush1.bf16.msra.mxu0 0
  %1577 = vmatprep.mubr.bf16.mxu0 0
  %1578 = vmatmul.mubr.bf16.gmra.mrb[0].mxu0 %v1543
  %v1579 = vpop.f32.mrb[0].mxu0
  %v1580 = vadd.f32 %v1531, %v1579
  %v1581 = vpop.f32.mrb[0].mxu0
  %v1582 = vpop.f32.mrb[0].mxu0
  %v1583 = vadd.f32 %v1534, %v1582
  %v1584 = vpop.f32.mrb[0].mxu0
  %1585 = vdwg.mxu0
  %v1586 = vld [vmem:[%s2 + $0x2f8] sm:$0xf]
  %v1587 = vld [vmem:[%s2 + $0x2fc] sm:$0xf]
  %v1588 = vpack.c.bf16 %v1478, %v1478
  %v1591 = vunpack.c.l.b16 %v1586
  %v1592 = vunpack.c.l.b16 %v1587
  %v1593 = vpack.c.b16 %v1592, %v1591
  %v1595 = vsel %vm1489, %v1593, 0
  %v1598 = vsel %vm44, %v1588, 0
  %1600 = vmatprep.subr.bf16.mxu0 0
  %1601 = vmatpush1.bf16.msra.mxu0 %v1598
  %1602 = vmatprep.subr.bf16.mxu0 0
  %1603 = vmatpush1.bf16.msra.mxu0 0
  %1604 = vmatprep.subr.bf16.mxu0 0
  %1605 = vmatpush1.bf16.msra.mxu0 0
  %1606 = vmatprep.subr.bf16.mxu0 0
  %1607 = vmatpush1.bf16.msra.mxu0 0
  %1608 = vmatprep.subr.bf16.mxu0 0
  %1609 = vmatpush1.bf16.msra.mxu0 0
  %1610 = vmatprep.subr.bf16.mxu0 0
  %1611 = vmatpush1.bf16.msra.mxu0 0
  %1612 = vmatprep.subr.bf16.mxu0 0
  %1613 = vmatpush1.bf16.msra.mxu0 0
  %1614 = vmatprep.subr.bf16.mxu0 0
  %1615 = vmatpush1.bf16.msra.mxu0 0
  %1616 = vmatprep.subr.bf16.mxu0 0
  %1617 = vmatpush1.bf16.msra.mxu0 0
  %1618 = vmatprep.subr.bf16.mxu0 0
  %1619 = vmatpush1.bf16.msra.mxu0 0
  %1620 = vmatprep.subr.bf16.mxu0 0
  %1621 = vmatpush1.bf16.msra.mxu0 0
  %1622 = vmatprep.subr.bf16.mxu0 0
  %1623 = vmatpush1.bf16.msra.mxu0 0
  %1624 = vmatprep.subr.bf16.mxu0 0
  %1625 = vmatpush1.bf16.msra.mxu0 0
  %1626 = vmatprep.subr.bf16.mxu0 0
  %1627 = vmatpush1.bf16.msra.mxu0 0
  %1628 = vmatprep.subr.bf16.mxu0 0
  %1629 = vmatpush1.bf16.msra.mxu0 0
  %1630 = vmatprep.subr.bf16.mxu0 0
  %1631 = vmatpush1.bf16.msra.mxu0 0
  %1632 = vmatprep.mubr.bf16.mxu0 0
  %1633 = vmatmul.mubr.bf16.gmra.mrb[0].mxu0 %v1595
  %v1634 = vpop.f32.mrb[0].mxu0
  %v1635 = vadd.f32 0.0, %v1634
  %v1636 = vpop.f32.mrb[0].mxu0
  %v1637 = vpop.f32.mrb[0].mxu0
  %v1638 = vadd.f32 0.0, %v1637
  %v1639 = vpop.f32.mrb[0].mxu0
  %1640 = vdwg.mxu0
  %v1641 = vadd.f32 %v1580, %v1635
  %v1642 = vadd.f32 %v1583, %v1638
  %v1643 = vld [vmem:[%s3 + $0x1d8] sm:$0xff]
  %v1644 = vld [vmem:[%s3 + $0x1e0] sm:$0xff]
  %1646 = vset.pattern.permute.xlu0 0
  %1647 = vperm.xlu0 %1646, %v1643
  %v1648 = vpop.permute.xlu0 %1647
  %1651 = vset.pattern.permute.xlu0 0
  %1652 = vperm.xlu0 %1651, %v1644
  %v1653 = vpop.permute.xlu0 %1652
  %v1655 = vadd.f32 %v1641, %v1648
  %v1656 = vadd.f32 %v1642, %v1653
  %v1657 = vpack.c.bf16 %v1656, %v1655
  %1658 = vmatprep.subr.bf16.mxu0 0
  %1659 = vmatpush1.bf16.msra.mxu0 %v146
  %1660 = vmatprep.subr.bf16.mxu0 0
  %1661 = vmatpush1.bf16.msra.mxu0 %v147
  %1662 = vmatprep.subr.bf16.mxu0 0
  %1663 = vmatpush1.bf16.msra.mxu0 %v148
  %1664 = vmatprep.subr.bf16.mxu0 0
  %1665 = vmatpush1.bf16.msra.mxu0 %v149
  %1666 = vmatprep.subr.bf16.mxu0 0
  %1667 = vmatpush1.bf16.msra.mxu0 %v150
  %1668 = vmatprep.subr.bf16.mxu0 0
  %1669 = vmatpush1.bf16.msra.mxu0 %v151
  %1670 = vmatprep.subr.bf16.mxu0 0
  %1671 = vmatpush1.bf16.msra.mxu0 %v152
  %1672 = vmatprep.subr.bf16.mxu0 0
  %1673 = vmatpush1.bf16.msra.mxu0 %v153
  %1674 = vmatprep.subr.bf16.mxu0 0
  %1675 = vmatpush1.bf16.msra.mxu0 0
  %1676 = vmatprep.subr.bf16.mxu0 0
  %1677 = vmatpush1.bf16.msra.mxu0 0
  %1678 = vmatprep.subr.bf16.mxu0 0
  %1679 = vmatpush1.bf16.msra.mxu0 0
  %1680 = vmatprep.subr.bf16.mxu0 0
  %1681 = vmatpush1.bf16.msra.mxu0 0
  %1682 = vmatprep.subr.bf16.mxu0 0
  %1683 = vmatpush1.bf16.msra.mxu0 0
  %1684 = vmatprep.subr.bf16.mxu0 0
  %1685 = vmatpush1.bf16.msra.mxu0 0
  %1686 = vmatprep.subr.bf16.mxu0 0
  %1687 = vmatpush1.bf16.msra.mxu0 0
  %1688 = vmatprep.subr.bf16.mxu0 0
  %1689 = vmatpush1.bf16.msra.mxu0 0
  %1690 = vmatprep.mubr.bf16.mxu0 0
  %1691 = vmatmul.mubr.bf16.gmra.mrb[0].mxu0 %v1657
  %v1692 = vpop.f32.mrb[0].mxu0
  %v1693 = vadd.f32 0.0, %v1692
  %v1694 = vpop.f32.mrb[0].mxu0
  %v1695 = vpop.f32.mrb[0].mxu0
  %v1696 = vadd.f32 0.0, %v1695
  %v1697 = vpop.f32.mrb[0].mxu0
  %1698 = vdwg.mxu0
  %v1699 = vld [vmem:[%s2 + $0x1f8] sm:$0xf]
  %v1700 = vld [vmem:[%s2 + $0x1fc] sm:$0xf]
  %v1701 = vld [vmem:[%s2 + $0x200] sm:$0xf]
  %v1702 = vld [vmem:[%s2 + $0x204] sm:$0xf]
  %v1703 = vld [vmem:[%s2 + $0x208] sm:$0xf]
  %v1704 = vld [vmem:[%s2 + $0x20c] sm:$0xf]
  %v1705 = vld [vmem:[%s2 + $0x210] sm:$0xf]
  %v1706 = vld [vmem:[%s2 + $0x214] sm:$0xf]
  %v1707 = vpack.c.bf16 %v1696, %v1693
  %v1708 = vld [vmem:[%s3 + $0xf8] sm:$0xff]
  %v1709 = vld [vmem:[%s3 + $0x100] sm:$0xff]
  %v1710 = vld [vmem:[%s3 + $0x108] sm:$0xff]
  %v1711 = vld [vmem:[%s3 + $0x110] sm:$0xff]
  %v1712 = vld [vmem:[%s3 + $0x118] sm:$0xff]
  %v1713 = vld [vmem:[%s3 + $0x120] sm:$0xff]
  %v1714 = vld [vmem:[%s3 + $0x128] sm:$0xff]
  %v1715 = vld [vmem:[%s3 + $0x130] sm:$0xff]
  %1717 = vset.pattern.permute.xlu0 0
  %1718 = vperm.xlu0 %1717, %v1708
  %v1719 = vpop.permute.xlu0 %1718
  %1722 = vset.pattern.permute.xlu0 0
  %1723 = vperm.xlu0 %1722, %v1709
  %v1724 = vpop.permute.xlu0 %1723
  %1727 = vset.pattern.permute.xlu0 0
  %1728 = vperm.xlu0 %1727, %v1710
  %v1729 = vpop.permute.xlu0 %1728
  %1732 = vset.pattern.permute.xlu0 0
  %1733 = vperm.xlu0 %1732, %v1711
  %v1734 = vpop.permute.xlu0 %1733
  %1737 = vset.pattern.permute.xlu0 0
  %1738 = vperm.xlu0 %1737, %v1712
  %v1739 = vpop.permute.xlu0 %1738
  %1742 = vset.pattern.permute.xlu0 0
  %1743 = vperm.xlu0 %1742, %v1713
  %v1744 = vpop.permute.xlu0 %1743
  %1747 = vset.pattern.permute.xlu0 0
  %1748 = vperm.xlu0 %1747, %v1714
  %v1749 = vpop.permute.xlu0 %1748
  %1752 = vset.pattern.permute.xlu0 0
  %1753 = vperm.xlu0 %1752, %v1715
  %v1754 = vpop.permute.xlu0 %1753
  %v1764 = vunpack.c.l.b16 %v1699
  %v1765 = vunpack.c.l.b16 %v1700
  %v1766 = vunpack.c.l.b16 %v1701
  %v1767 = vunpack.c.l.b16 %v1702
  %v1768 = vunpack.c.l.b16 %v1703
  %v1769 = vunpack.c.l.b16 %v1704
  %v1770 = vunpack.c.l.b16 %v1705
  %v1771 = vunpack.c.l.b16 %v1706
  %v1772 = vpack.c.b16 %v1765, %v1764
  %v1773 = vpack.c.b16 %v1767, %v1766
  %v1774 = vpack.c.b16 %v1769, %v1768
  %v1775 = vpack.c.b16 %v1771, %v1770
  %v1777 = vsel %vm280, %v1772, 0
  %v1780 = vsel %vm280, %v1773, 0
  %v1783 = vsel %vm280, %v1774, 0
  %v1786 = vsel %vm280, %v1775, 0
  %1788 = vmatprep.subr.bf16.mxu0 0
  %1789 = vmatpush1.bf16.msra.mxu0 %v1707
  %1790 = vmatprep.subr.bf16.mxu0 0
  %1791 = vmatpush1.bf16.msra.mxu0 0
  %1792 = vmatprep.subr.bf16.mxu0 0
  %1793 = vmatpush1.bf16.msra.mxu0 0
  %1794 = vmatprep.subr.bf16.mxu0 0
  %1795 = vmatpush1.bf16.msra.mxu0 0
  %1796 = vmatprep.subr.bf16.mxu0 0
  %1797 = vmatpush1.bf16.msra.mxu0 0
  %1798 = vmatprep.subr.bf16.mxu0 0
  %1799 = vmatpush1.bf16.msra.mxu0 0
  %1800 = vmatprep.subr.bf16.mxu0 0
  %1801 = vmatpush1.bf16.msra.mxu0 0
  %1802 = vmatprep.subr.bf16.mxu0 0
  %1803 = vmatpush1.bf16.msra.mxu0 0
  %1804 = vmatprep.subr.bf16.mxu0 0
  %1805 = vmatpush1.bf16.msra.mxu0 0
  %1806 = vmatprep.subr.bf16.mxu0 0
  %1807 = vmatpush1.bf16.msra.mxu0 0
  %1808 = vmatprep.subr.bf16.mxu0 0
  %1809 = vmatpush1.bf16.msra.mxu0 0
  %1810 = vmatprep.subr.bf16.mxu0 0
  %1811 = vmatpush1.bf16.msra.mxu0 0
  %1812 = vmatprep.subr.bf16.mxu0 0
  %1813 = vmatpush1.bf16.msra.mxu0 0
  %1814 = vmatprep.subr.bf16.mxu0 0
  %1815 = vmatpush1.bf16.msra.mxu0 0
  %1816 = vmatprep.subr.bf16.mxu0 0
  %1817 = vmatpush1.bf16.msra.mxu0 0
  %1818 = vmatprep.subr.bf16.mxu0 0
  %1819 = vmatpush1.bf16.msra.mxu0 0
  %1820 = vmatprep.mubr.bf16.mxu0 0
  %1821 = vmatmul.mubr.bf16.gmra.mrb[0].mxu0 %v1777
  %v1822 = vpop.f32.mrb[0].mxu0
  %v1823 = vadd.f32 %v1719, %v1822
  %v1824 = vpop.f32.mrb[0].mxu0
  %v1825 = vpop.f32.mrb[0].mxu0
  %v1826 = vadd.f32 %v1724, %v1825
  %v1827 = vpop.f32.mrb[0].mxu0
  %1828 = vmatprep.mubr.bf16.mxu0 0
  %1829 = vmatmul.mubr.bf16.gmra.mrb[0].mxu0 %v1780
  %v1830 = vpop.f32.mrb[0].mxu0
  %v1831 = vadd.f32 %v1729, %v1830
  %v1832 = vpop.f32.mrb[0].mxu0
  %v1833 = vpop.f32.mrb[0].mxu0
  %v1834 = vadd.f32 %v1734, %v1833
  %v1835 = vpop.f32.mrb[0].mxu0
  %1836 = vmatprep.mubr.bf16.mxu0 0
  %1837 = vmatmul.mubr.bf16.gmra.mrb[0].mxu0 %v1783
  %v1838 = vpop.f32.mrb[0].mxu0
  %v1839 = vadd.f32 %v1739, %v1838
  %v1840 = vpop.f32.mrb[0].mxu0
  %v1841 = vpop.f32.mrb[0].mxu0
  %v1842 = vadd.f32 %v1744, %v1841
  %v1843 = vpop.f32.mrb[0].mxu0
  %1844 = vmatprep.mubr.bf16.mxu0 0
  %1845 = vmatmul.mubr.bf16.gmra.mrb[0].mxu0 %v1786
  %v1846 = vpop.f32.mrb[0].mxu0
  %v1847 = vadd.f32 %v1749, %v1846
  %v1848 = vpop.f32.mrb[0].mxu0
  %v1849 = vpop.f32.mrb[0].mxu0
  %v1850 = vadd.f32 %v1754, %v1849
  %v1851 = vpop.f32.mrb[0].mxu0
  %1852 = vdwg.mxu0
  %vm1853 = vcmp.ge.f32.partialorder %v1823, 0.0
  %vm1854 = vcmp.ge.f32.partialorder %v1826, 0.0
  %vm1855 = vcmp.ge.f32.partialorder %v1831, 0.0
  %vm1856 = vcmp.ge.f32.partialorder %v1834, 0.0
  %vm1857 = vcmp.ge.f32.partialorder %v1839, 0.0
  %vm1858 = vcmp.ge.f32.partialorder %v1842, 0.0
  %vm1859 = vcmp.ge.f32.partialorder %v1847, 0.0
  %vm1860 = vcmp.ge.f32.partialorder %v1850, 0.0
  %v1861 = vmul.f32 %v1823, 0.1
  %v1862 = vmul.f32 %v1826, 0.1
  %v1863 = vmul.f32 %v1831, 0.1
  %v1864 = vmul.f32 %v1834, 0.1
  %v1865 = vmul.f32 %v1839, 0.1
  %v1866 = vmul.f32 %v1842, 0.1
  %v1867 = vmul.f32 %v1847, 0.1
  %v1868 = vmul.f32 %v1850, 0.1
  %v1869 = vsel %vm1853, %v1823, %v1861
  %v1870 = vsel %vm1854, %v1826, %v1862
  %v1871 = vsel %vm1855, %v1831, %v1863
  %v1872 = vsel %vm1856, %v1834, %v1864
  %v1873 = vsel %vm1857, %v1839, %v1865
  %v1874 = vsel %vm1858, %v1842, %v1866
  %v1875 = vsel %vm1859, %v1847, %v1867
  %v1876 = vsel %vm1860, %v1850, %v1868
  %v1877 = vld [vmem:[%s2 + $0x218] sm:$0xf]
  %v1878 = vld [vmem:[%s2 + $0x21c] sm:$0xf]
  %v1879 = vld [vmem:[%s2 + $0x220] sm:$0xf]
  %v1880 = vld [vmem:[%s2 + $0x224] sm:$0xf]
  %v1881 = vld [vmem:[%s2 + $0x228] sm:$0xf]
  %v1882 = vld [vmem:[%s2 + $0x22c] sm:$0xf]
  %v1883 = vld [vmem:[%s2 + $0x230] sm:$0xf]
  %v1884 = vld [vmem:[%s2 + $0x234] sm:$0xf]
  %v1885 = vpack.c.bf16 %v1870, %v1869
  %v1886 = vpack.c.bf16 %v1872, %v1871
  %v1887 = vpack.c.bf16 %v1874, %v1873
  %v1888 = vpack.c.bf16 %v1876, %v1875
  %v1889 = vld [vmem:[%s3 + $0x138] sm:$0xff]
  %v1890 = vld [vmem:[%s3 + $0x140] sm:$0xff]
  %v1891 = vld [vmem:[%s3 + $0x148] sm:$0xff]
  %v1892 = vld [vmem:[%s3 + $0x150] sm:$0xff]
  %v1893 = vld [vmem:[%s3 + $0x158] sm:$0xff]
  %v1894 = vld [vmem:[%s3 + $0x160] sm:$0xff]
  %v1895 = vld [vmem:[%s3 + $0x168] sm:$0xff]
  %v1896 = vld [vmem:[%s3 + $0x170] sm:$0xff]
  %1898 = vset.pattern.permute.xlu0 0
  %1899 = vperm.xlu0 %1898, %v1889
  %v1900 = vpop.permute.xlu0 %1899
  %1903 = vset.pattern.permute.xlu0 0
  %1904 = vperm.xlu0 %1903, %v1890
  %v1905 = vpop.permute.xlu0 %1904
  %1908 = vset.pattern.permute.xlu0 0
  %1909 = vperm.xlu0 %1908, %v1891
  %v1910 = vpop.permute.xlu0 %1909
  %1913 = vset.pattern.permute.xlu0 0
  %1914 = vperm.xlu0 %1913, %v1892
  %v1915 = vpop.permute.xlu0 %1914
  %1918 = vset.pattern.permute.xlu0 0
  %1919 = vperm.xlu0 %1918, %v1893
  %v1920 = vpop.permute.xlu0 %1919
  %1923 = vset.pattern.permute.xlu0 0
  %1924 = vperm.xlu0 %1923, %v1894
  %v1925 = vpop.permute.xlu0 %1924
  %1928 = vset.pattern.permute.xlu0 0
  %1929 = vperm.xlu0 %1928, %v1895
  %v1930 = vpop.permute.xlu0 %1929
  %1933 = vset.pattern.permute.xlu0 0
  %1934 = vperm.xlu0 %1933, %v1896
  %v1935 = vpop.permute.xlu0 %1934
  %v1945 = vunpack.c.l.b16 %v1877
  %v1946 = vunpack.c.l.b16 %v1878
  %v1947 = vunpack.c.l.b16 %v1879
  %v1948 = vunpack.c.l.b16 %v1880
  %v1949 = vunpack.c.l.b16 %v1881
  %v1950 = vunpack.c.l.b16 %v1882
  %v1951 = vunpack.c.l.b16 %v1883
  %v1952 = vunpack.c.l.b16 %v1884
  %v1953 = vpack.c.b16 %v1946, %v1945
  %v1954 = vpack.c.b16 %v1948, %v1947
  %v1955 = vpack.c.b16 %v1950, %v1949
  %v1956 = vpack.c.b16 %v1952, %v1951
  %v1958 = vsel %vm462, %v1953, 0
  %v1961 = vsel %vm462, %v1954, 0
  %v1964 = vsel %vm462, %v1955, 0
  %v1967 = vsel %vm462, %v1956, 0
  %1969 = vmatprep.subr.bf16.mxu0 0
  %1970 = vmatpush1.bf16.msra.mxu0 %v1885
  %1971 = vmatprep.subr.bf16.mxu0 0
  %1972 = vmatpush1.bf16.msra.mxu0 %v1886
  %1973 = vmatprep.subr.bf16.mxu0 0
  %1974 = vmatpush1.bf16.msra.mxu0 %v1887
  %1975 = vmatprep.subr.bf16.mxu0 0
  %1976 = vmatpush1.bf16.msra.mxu0 %v1888
  %1977 = vmatprep.subr.bf16.mxu0 0
  %1978 = vmatpush1.bf16.msra.mxu0 0
  %1979 = vmatprep.subr.bf16.mxu0 0
  %1980 = vmatpush1.bf16.msra.mxu0 0
  %1981 = vmatprep.subr.bf16.mxu0 0
  %1982 = vmatpush1.bf16.msra.mxu0 0
  %1983 = vmatprep.subr.bf16.mxu0 0
  %1984 = vmatpush1.bf16.msra.mxu0 0
  %1985 = vmatprep.subr.bf16.mxu0 0
  %1986 = vmatpush1.bf16.msra.mxu0 0
  %1987 = vmatprep.subr.bf16.mxu0 0
  %1988 = vmatpush1.bf16.msra.mxu0 0
  %1989 = vmatprep.subr.bf16.mxu0 0
  %1990 = vmatpush1.bf16.msra.mxu0 0
  %1991 = vmatprep.subr.bf16.mxu0 0
  %1992 = vmatpush1.bf16.msra.mxu0 0
  %1993 = vmatprep.subr.bf16.mxu0 0
  %1994 = vmatpush1.bf16.msra.mxu0 0
  %1995 = vmatprep.subr.bf16.mxu0 0
  %1996 = vmatpush1.bf16.msra.mxu0 0
  %1997 = vmatprep.subr.bf16.mxu0 0
  %1998 = vmatpush1.bf16.msra.mxu0 0
  %1999 = vmatprep.subr.bf16.mxu0 0
  %2000 = vmatpush1.bf16.msra.mxu0 0
  %2001 = vmatprep.mubr.bf16.mxu0 0
  %2002 = vmatmul.mubr.bf16.gmra.mrb[0].mxu0 %v1958
  %v2003 = vpop.f32.mrb[0].mxu0
  %v2004 = vadd.f32 %v1900, %v2003
  %v2005 = vpop.f32.mrb[0].mxu0
  %v2006 = vpop.f32.mrb[0].mxu0
  %v2007 = vadd.f32 %v1905, %v2006
  %v2008 = vpop.f32.mrb[0].mxu0
  %2009 = vmatprep.mubr.bf16.mxu0 0
  %2010 = vmatmul.mubr.bf16.gmra.mrb[0].mxu0 %v1961
  %v2011 = vpop.f32.mrb[0].mxu0
  %v2012 = vadd.f32 %v1910, %v2011
  %v2013 = vpop.f32.mrb[0].mxu0
  %v2014 = vpop.f32.mrb[0].mxu0
  %v2015 = vadd.f32 %v1915, %v2014
  %v2016 = vpop.f32.mrb[0].mxu0
  %2017 = vmatprep.mubr.bf16.mxu0 0
  %2018 = vmatmul.mubr.bf16.gmra.mrb[0].mxu0 %v1964
  %v2019 = vpop.f32.mrb[0].mxu0
  %v2020 = vadd.f32 %v1920, %v2019
  %v2021 = vpop.f32.mrb[0].mxu0
  %v2022 = vpop.f32.mrb[0].mxu0
  %v2023 = vadd.f32 %v1925, %v2022
  %v2024 = vpop.f32.mrb[0].mxu0
  %2025 = vmatprep.mubr.bf16.mxu0 0
  %2026 = vmatmul.mubr.bf16.gmra.mrb[0].mxu0 %v1967
  %v2027 = vpop.f32.mrb[0].mxu0
  %v2028 = vadd.f32 %v1930, %v2027
  %v2029 = vpop.f32.mrb[0].mxu0
  %v2030 = vpop.f32.mrb[0].mxu0
  %v2031 = vadd.f32 %v1935, %v2030
  %v2032 = vpop.f32.mrb[0].mxu0
  %2033 = vdwg.mxu0
  %vm2034 = vcmp.ge.f32.partialorder %v2004, 0.0
  %vm2035 = vcmp.ge.f32.partialorder %v2007, 0.0
  %vm2036 = vcmp.ge.f32.partialorder %v2012, 0.0
  %vm2037 = vcmp.ge.f32.partialorder %v2015, 0.0
  %vm2038 = vcmp.ge.f32.partialorder %v2020, 0.0
  %vm2039 = vcmp.ge.f32.partialorder %v2023, 0.0
  %vm2040 = vcmp.ge.f32.partialorder %v2028, 0.0
  %vm2041 = vcmp.ge.f32.partialorder %v2031, 0.0
  %v2042 = vmul.f32 %v2004, 0.1
  %v2043 = vmul.f32 %v2007, 0.1
  %v2044 = vmul.f32 %v2012, 0.1
  %v2045 = vmul.f32 %v2015, 0.1
  %v2046 = vmul.f32 %v2020, 0.1
  %v2047 = vmul.f32 %v2023, 0.1
  %v2048 = vmul.f32 %v2028, 0.1
  %v2049 = vmul.f32 %v2031, 0.1
  %v2050 = vsel %vm2034, %v2004, %v2042
  %v2051 = vsel %vm2035, %v2007, %v2043
  %v2052 = vsel %vm2036, %v2012, %v2044
  %v2053 = vsel %vm2037, %v2015, %v2045
  %v2054 = vsel %vm2038, %v2020, %v2046
  %v2055 = vsel %vm2039, %v2023, %v2047
  %v2056 = vsel %vm2040, %v2028, %v2048
  %v2057 = vsel %vm2041, %v2031, %v2049
  %v2058 = vld [vmem:[%s1 + $0x40] sm:$0xff]
  %v2059 = vpack.c.bf16 %v2051, %v2050
  %v2060 = vld [vmem:[%s1 + $0x50] sm:$0xff]
  %v2061 = vpack.c.bf16 %v2053, %v2052
  %v2063 = vunpack.c.l.b16 %v2060
  %v2064 = vunpack.c.h.b16 %v2060
  %v2065 = vpack.c.b16 %v2063, %v2063
  %v2066 = vpack.c.b16 %v2064, %v2064
  %v2068 = vsel %vm573, %v2061, 0
  %v2071 = vsel %vm577, %v2065, 0
  %v2074 = vsel %vm577, %v2066, 0
  %2076 = vmatprep.subr.bf16.mxu0 %v2074
  %2077 = vmatpush1.bf16.msra.mxu0 %v2071
  %2078 = vmatprep.subr.bf16.mxu0 0
  %2079 = vmatpush1.bf16.msra.mxu0 0
  %2080 = vmatprep.subr.bf16.mxu0 0
  %2081 = vmatpush1.bf16.msra.mxu0 0
  %2082 = vmatprep.subr.bf16.mxu0 0
  %2083 = vmatpush1.bf16.msra.mxu0 0
  %2084 = vmatprep.subr.bf16.mxu0 0
  %2085 = vmatpush1.bf16.msra.mxu0 0
  %2086 = vmatprep.subr.bf16.mxu0 0
  %2087 = vmatpush1.bf16.msra.mxu0 0
  %2088 = vmatprep.subr.bf16.mxu0 0
  %2089 = vmatpush1.bf16.msra.mxu0 0
  %2090 = vmatprep.subr.bf16.mxu0 0
  %2091 = vmatpush1.bf16.msra.mxu0 0
  %2092 = vmatprep.subr.bf16.mxu0 0
  %2093 = vmatpush1.bf16.msra.mxu0 0
  %2094 = vmatprep.subr.bf16.mxu0 0
  %2095 = vmatpush1.bf16.msra.mxu0 0
  %2096 = vmatprep.subr.bf16.mxu0 0
  %2097 = vmatpush1.bf16.msra.mxu0 0
  %2098 = vmatprep.subr.bf16.mxu0 0
  %2099 = vmatpush1.bf16.msra.mxu0 0
  %2100 = vmatprep.subr.bf16.mxu0 0
  %2101 = vmatpush1.bf16.msra.mxu0 0
  %2102 = vmatprep.subr.bf16.mxu0 0
  %2103 = vmatpush1.bf16.msra.mxu0 0
  %2104 = vmatprep.subr.bf16.mxu0 0
  %2105 = vmatpush1.bf16.msra.mxu0 0
  %2106 = vmatprep.subr.bf16.mxu0 0
  %2107 = vmatpush1.bf16.msra.mxu0 0
  %2108 = vmatprep.mubr.bf16.mxu0 0
  %2109 = vmatmul.mubr.bf16.gmra.mrb[0].mxu0 %v2068
  %v2110 = vpop.f32.mrb[0].mxu0
  %v2111 = vadd.f32 0.0, %v2110
  %v2112 = vpop.f32.mrb[0].mxu0
  %v2113 = vadd.f32 0.0, %v2112
  %v2114 = vpop.f32.mrb[0].mxu0
  %v2115 = vadd.f32 0.0, %v2114
  %v2116 = vpop.f32.mrb[0].mxu0
  %v2117 = vadd.f32 0.0, %v2116
  %2118 = vdwg.mxu0
  %v2120 = vunpack.c.l.b16 %v2058
  %v2121 = vunpack.c.h.b16 %v2058
  %v2122 = vpack.c.b16 %v2120, %v2120
  %v2123 = vpack.c.b16 %v2121, %v2121
  %v2125 = vsel %vm573, %v2059, 0
  %v2128 = vsel %vm577, %v2122, 0
  %v2131 = vsel %vm577, %v2123, 0
  %2133 = vmatprep.subr.bf16.mxu0 %v2131
  %2134 = vmatpush1.bf16.msra.mxu0 %v2128
  %2135 = vmatprep.subr.bf16.mxu0 0
  %2136 = vmatpush1.bf16.msra.mxu0 0
  %2137 = vmatprep.subr.bf16.mxu0 0
  %2138 = vmatpush1.bf16.msra.mxu0 0
  %2139 = vmatprep.subr.bf16.mxu0 0
  %2140 = vmatpush1.bf16.msra.mxu0 0
  %2141 = vmatprep.subr.bf16.mxu0 0
  %2142 = vmatpush1.bf16.msra.mxu0 0
  %2143 = vmatprep.subr.bf16.mxu0 0
  %2144 = vmatpush1.bf16.msra.mxu0 0
  %2145 = vmatprep.subr.bf16.mxu0 0
  %2146 = vmatpush1.bf16.msra.mxu0 0
  %2147 = vmatprep.subr.bf16.mxu0 0
  %2148 = vmatpush1.bf16.msra.mxu0 0
  %2149 = vmatprep.subr.bf16.mxu0 0
  %2150 = vmatpush1.bf16.msra.mxu0 0
  %2151 = vmatprep.subr.bf16.mxu0 0
  %2152 = vmatpush1.bf16.msra.mxu0 0
  %2153 = vmatprep.subr.bf16.mxu0 0
  %2154 = vmatpush1.bf16.msra.mxu0 0
  %2155 = vmatprep.subr.bf16.mxu0 0
  %2156 = vmatpush1.bf16.msra.mxu0 0
  %2157 = vmatprep.subr.bf16.mxu0 0
  %2158 = vmatpush1.bf16.msra.mxu0 0
  %2159 = vmatprep.subr.bf16.mxu0 0
  %2160 = vmatpush1.bf16.msra.mxu0 0
  %2161 = vmatprep.subr.bf16.mxu0 0
  %2162 = vmatpush1.bf16.msra.mxu0 0
  %2163 = vmatprep.subr.bf16.mxu0 0
  %2164 = vmatpush1.bf16.msra.mxu0 0
  %2165 = vmatprep.mubr.bf16.mxu0 0
  %2166 = vmatmul.mubr.bf16.gmra.mrb[0].mxu0 %v2125
  %v2167 = vpop.f32.mrb[0].mxu0
  %v2168 = vadd.f32 %v2111, %v2167
  %v2169 = vpop.f32.mrb[0].mxu0
  %v2170 = vadd.f32 %v2113, %v2169
  %v2171 = vpop.f32.mrb[0].mxu0
  %v2172 = vadd.f32 %v2115, %v2171
  %v2173 = vpop.f32.mrb[0].mxu0
  %v2174 = vadd.f32 %v2117, %v2173
  %2175 = vdwg.mxu0
  %v2176 = vld [vmem:[%s1 + $0x60] sm:$0xff]
  %v2177 = vpack.c.bf16 %v2055, %v2054
  %v2179 = vunpack.c.l.b16 %v2176
  %v2180 = vunpack.c.h.b16 %v2176
  %v2181 = vpack.c.b16 %v2179, %v2179
  %v2182 = vpack.c.b16 %v2180, %v2180
  %v2184 = vsel %vm573, %v2177, 0
  %v2187 = vsel %vm577, %v2181, 0
  %v2190 = vsel %vm577, %v2182, 0
  %2192 = vmatprep.subr.bf16.mxu0 %v2190
  %2193 = vmatpush1.bf16.msra.mxu0 %v2187
  %2194 = vmatprep.subr.bf16.mxu0 0
  %2195 = vmatpush1.bf16.msra.mxu0 0
  %2196 = vmatprep.subr.bf16.mxu0 0
  %2197 = vmatpush1.bf16.msra.mxu0 0
  %2198 = vmatprep.subr.bf16.mxu0 0
  %2199 = vmatpush1.bf16.msra.mxu0 0
  %2200 = vmatprep.subr.bf16.mxu0 0
  %2201 = vmatpush1.bf16.msra.mxu0 0
  %2202 = vmatprep.subr.bf16.mxu0 0
  %2203 = vmatpush1.bf16.msra.mxu0 0
  %2204 = vmatprep.subr.bf16.mxu0 0
  %2205 = vmatpush1.bf16.msra.mxu0 0
  %2206 = vmatprep.subr.bf16.mxu0 0
  %2207 = vmatpush1.bf16.msra.mxu0 0
  %2208 = vmatprep.subr.bf16.mxu0 0
  %2209 = vmatpush1.bf16.msra.mxu0 0
  %2210 = vmatprep.subr.bf16.mxu0 0
  %2211 = vmatpush1.bf16.msra.mxu0 0
  %2212 = vmatprep.subr.bf16.mxu0 0
  %2213 = vmatpush1.bf16.msra.mxu0 0
  %2214 = vmatprep.subr.bf16.mxu0 0
  %2215 = vmatpush1.bf16.msra.mxu0 0
  %2216 = vmatprep.subr.bf16.mxu0 0
  %2217 = vmatpush1.bf16.msra.mxu0 0
  %2218 = vmatprep.subr.bf16.mxu0 0
  %2219 = vmatpush1.bf16.msra.mxu0 0
  %2220 = vmatprep.subr.bf16.mxu0 0
  %2221 = vmatpush1.bf16.msra.mxu0 0
  %2222 = vmatprep.subr.bf16.mxu0 0
  %2223 = vmatpush1.bf16.msra.mxu0 0
  %2224 = vmatprep.mubr.bf16.mxu0 0
  %2225 = vmatmul.mubr.bf16.gmra.mrb[0].mxu0 %v2184
  %v2226 = vpop.f32.mrb[0].mxu0
  %v2227 = vadd.f32 0.0, %v2226
  %v2228 = vpop.f32.mrb[0].mxu0
  %v2229 = vadd.f32 0.0, %v2228
  %v2230 = vpop.f32.mrb[0].mxu0
  %v2231 = vadd.f32 0.0, %v2230
  %v2232 = vpop.f32.mrb[0].mxu0
  %v2233 = vadd.f32 0.0, %v2232
  %2234 = vdwg.mxu0
  %v2235 = vadd.f32 %v2168, %v2227
  %v2236 = vadd.f32 %v2170, %v2229
  %v2237 = vadd.f32 %v2172, %v2231
  %v2238 = vadd.f32 %v2174, %v2233
  %v2239 = vld [vmem:[%s1 + $0x70] sm:$0xff]
  %v2240 = vpack.c.bf16 %v2057, %v2056
  %v2242 = vunpack.c.l.b16 %v2239
  %v2243 = vunpack.c.h.b16 %v2239
  %v2244 = vpack.c.b16 %v2242, %v2242
  %v2245 = vpack.c.b16 %v2243, %v2243
  %v2247 = vsel %vm573, %v2240, 0
  %v2250 = vsel %vm577, %v2244, 0
  %v2253 = vsel %vm577, %v2245, 0
  %2255 = vmatprep.subr.bf16.mxu0 %v2253
  %2256 = vmatpush1.bf16.msra.mxu0 %v2250
  %2257 = vmatprep.subr.bf16.mxu0 0
  %2258 = vmatpush1.bf16.msra.mxu0 0
  %2259 = vmatprep.subr.bf16.mxu0 0
  %2260 = vmatpush1.bf16.msra.mxu0 0
  %2261 = vmatprep.subr.bf16.mxu0 0
  %2262 = vmatpush1.bf16.msra.mxu0 0
  %2263 = vmatprep.subr.bf16.mxu0 0
  %2264 = vmatpush1.bf16.msra.mxu0 0
  %2265 = vmatprep.subr.bf16.mxu0 0
  %2266 = vmatpush1.bf16.msra.mxu0 0
  %2267 = vmatprep.subr.bf16.mxu0 0
  %2268 = vmatpush1.bf16.msra.mxu0 0
  %2269 = vmatprep.subr.bf16.mxu0 0
  %2270 = vmatpush1.bf16.msra.mxu0 0
  %2271 = vmatprep.subr.bf16.mxu0 0
  %2272 = vmatpush1.bf16.msra.mxu0 0
  %2273 = vmatprep.subr.bf16.mxu0 0
  %2274 = vmatpush1.bf16.msra.mxu0 0
  %2275 = vmatprep.subr.bf16.mxu0 0
  %2276 = vmatpush1.bf16.msra.mxu0 0
  %2277 = vmatprep.subr.bf16.mxu0 0
  %2278 = vmatpush1.bf16.msra.mxu0 0
  %2279 = vmatprep.subr.bf16.mxu0 0
  %2280 = vmatpush1.bf16.msra.mxu0 0
  %2281 = vmatprep.subr.bf16.mxu0 0
  %2282 = vmatpush1.bf16.msra.mxu0 0
  %2283 = vmatprep.subr.bf16.mxu0 0
  %2284 = vmatpush1.bf16.msra.mxu0 0
  %2285 = vmatprep.subr.bf16.mxu0 0
  %2286 = vmatpush1.bf16.msra.mxu0 0
  %2287 = vmatprep.mubr.bf16.mxu0 0
  %2288 = vmatmul.mubr.bf16.gmra.mrb[0].mxu0 %v2247
  %v2289 = vpop.f32.mrb[0].mxu0
  %v2290 = vadd.f32 0.0, %v2289
  %v2291 = vpop.f32.mrb[0].mxu0
  %v2292 = vadd.f32 0.0, %v2291
  %v2293 = vpop.f32.mrb[0].mxu0
  %v2294 = vadd.f32 0.0, %v2293
  %v2295 = vpop.f32.mrb[0].mxu0
  %v2296 = vadd.f32 0.0, %v2295
  %2297 = vdwg.mxu0
  %v2298 = vadd.f32 %v2235, %v2290
  %v2299 = vadd.f32 %v2236, %v2292
  %v2300 = vadd.f32 %v2237, %v2294
  %v2301 = vadd.f32 %v2238, %v2296
  %v2302 = vld [vmem:[%s2 + $0x238] sm:$0xf]
  %v2303 = vld [vmem:[%s2 + $0x23c] sm:$0xf]
  %v2304 = vpack.c.bf16 %v2300, %v2298
  %v2305 = vld [vmem:[%s3 + $0x178] sm:$0xff]
  %v2306 = vld [vmem:[%s3 + $0x180] sm:$0xff]
  %v2309 = vunpack.c.l.b16 %v2302
  %v2310 = vunpack.c.l.b16 %v2303
  %v2311 = vpack.c.b16 %v2310, %v2309
  %v2313 = vsel %vm280, %v2311, 0
  %2315 = vmatprep.subr.bf16.mxu0 0
  %2316 = vmatpush1.bf16.msra.mxu0 %v2304
  %2317 = vmatprep.subr.bf16.mxu0 0
  %2318 = vmatpush1.bf16.msra.mxu0 0
  %2319 = vmatprep.subr.bf16.mxu0 0
  %2320 = vmatpush1.bf16.msra.mxu0 0
  %2321 = vmatprep.subr.bf16.mxu0 0
  %2322 = vmatpush1.bf16.msra.mxu0 0
  %2323 = vmatprep.subr.bf16.mxu0 0
  %2324 = vmatpush1.bf16.msra.mxu0 0
  %2325 = vmatprep.subr.bf16.mxu0 0
  %2326 = vmatpush1.bf16.msra.mxu0 0
  %2327 = vmatprep.subr.bf16.mxu0 0
  %2328 = vmatpush1.bf16.msra.mxu0 0
  %2329 = vmatprep.subr.bf16.mxu0 0
  %2330 = vmatpush1.bf16.msra.mxu0 0
  %2331 = vmatprep.subr.bf16.mxu0 0
  %2332 = vmatpush1.bf16.msra.mxu0 0
  %2333 = vmatprep.subr.bf16.mxu0 0
  %2334 = vmatpush1.bf16.msra.mxu0 0
  %2335 = vmatprep.subr.bf16.mxu0 0
  %2336 = vmatpush1.bf16.msra.mxu0 0
  %2337 = vmatprep.subr.bf16.mxu0 0
  %2338 = vmatpush1.bf16.msra.mxu0 0
  %2339 = vmatprep.subr.bf16.mxu0 0
  %2340 = vmatpush1.bf16.msra.mxu0 0
  %2341 = vmatprep.subr.bf16.mxu0 0
  %2342 = vmatpush1.bf16.msra.mxu0 0
  %2343 = vmatprep.subr.bf16.mxu0 0
  %2344 = vmatpush1.bf16.msra.mxu0 0
  %2345 = vmatprep.subr.bf16.mxu0 0
  %2346 = vmatpush1.bf16.msra.mxu0 0
  %2347 = vmatprep.mubr.bf16.mxu0 0
  %2348 = vmatmul.mubr.bf16.gmra.mrb[0].mxu0 %v2313
  %v2349 = vpop.f32.mrb[0].mxu0
  %v2350 = vadd.f32 %v2305, %v2349
  %v2351 = vpop.f32.mrb[0].mxu0
  %v2352 = vpop.f32.mrb[0].mxu0
  %v2353 = vadd.f32 %v2306, %v2352
  %v2354 = vpop.f32.mrb[0].mxu0
  %2355 = vdwg.mxu0
  %vm2356 = vcmp.ge.f32.partialorder %v2350, 0.0
  %vm2357 = vcmp.ge.f32.partialorder %v2353, 0.0
  %v2358 = vmul.f32 %v2350, 0.1
  %v2359 = vmul.f32 %v2353, 0.1
  %v2360 = vsel %vm2356, %v2350, %v2358
  %v2361 = vsel %vm2357, %v2353, %v2359
  %v2362 = vld [vmem:[%s2 + $0x288] sm:$0xf]
  %v2363 = vld [vmem:[%s2 + $0x28c] sm:$0xf]
  %v2364 = vpack.c.bf16 %v2301, %v2299
  %v2365 = vld [vmem:[%s3 + $0x190] sm:$0xff]
  %v2366 = vld [vmem:[%s3 + $0x198] sm:$0xff]
  %v2369 = vunpack.c.l.b16 %v2362
  %v2370 = vunpack.c.l.b16 %v2363
  %v2371 = vpack.c.b16 %v2370, %v2369
  %v2373 = vsel %vm280, %v2371, 0
  %2375 = vmatprep.subr.bf16.mxu0 0
  %2376 = vmatpush1.bf16.msra.mxu0 %v2364
  %2377 = vmatprep.subr.bf16.mxu0 0
  %2378 = vmatpush1.bf16.msra.mxu0 0
  %2379 = vmatprep.subr.bf16.mxu0 0
  %2380 = vmatpush1.bf16.msra.mxu0 0
  %2381 = vmatprep.subr.bf16.mxu0 0
  %2382 = vmatpush1.bf16.msra.mxu0 0
  %2383 = vmatprep.subr.bf16.mxu0 0
  %2384 = vmatpush1.bf16.msra.mxu0 0
  %2385 = vmatprep.subr.bf16.mxu0 0
  %2386 = vmatpush1.bf16.msra.mxu0 0
  %2387 = vmatprep.subr.bf16.mxu0 0
  %2388 = vmatpush1.bf16.msra.mxu0 0
  %2389 = vmatprep.subr.bf16.mxu0 0
  %2390 = vmatpush1.bf16.msra.mxu0 0
  %2391 = vmatprep.subr.bf16.mxu0 0
  %2392 = vmatpush1.bf16.msra.mxu0 0
  %2393 = vmatprep.subr.bf16.mxu0 0
  %2394 = vmatpush1.bf16.msra.mxu0 0
  %2395 = vmatprep.subr.bf16.mxu0 0
  %2396 = vmatpush1.bf16.msra.mxu0 0
  %2397 = vmatprep.subr.bf16.mxu0 0
  %2398 = vmatpush1.bf16.msra.mxu0 0
  %2399 = vmatprep.subr.bf16.mxu0 0
  %2400 = vmatpush1.bf16.msra.mxu0 0
  %2401 = vmatprep.subr.bf16.mxu0 0
  %2402 = vmatpush1.bf16.msra.mxu0 0
  %2403 = vmatprep.subr.bf16.mxu0 0
  %2404 = vmatpush1.bf16.msra.mxu0 0
  %2405 = vmatprep.subr.bf16.mxu0 0
  %2406 = vmatpush1.bf16.msra.mxu0 0
  %2407 = vmatprep.mubr.bf16.mxu0 0
  %2408 = vmatmul.mubr.bf16.gmra.mrb[0].mxu0 %v2373
  %v2409 = vpop.f32.mrb[0].mxu0
  %v2410 = vadd.f32 %v2365, %v2409
  %v2411 = vpop.f32.mrb[0].mxu0
  %v2412 = vpop.f32.mrb[0].mxu0
  %v2413 = vadd.f32 %v2366, %v2412
  %v2414 = vpop.f32.mrb[0].mxu0
  %2415 = vdwg.mxu0
  %vm2416 = vcmp.ge.f32.partialorder %v2410, 0.0
  %vm2417 = vcmp.ge.f32.partialorder %v2413, 0.0
  %v2418 = vmul.f32 %v2410, 0.1
  %v2419 = vmul.f32 %v2413, 0.1
  %v2420 = vsel %vm2416, %v2410, %v2418
  %v2421 = vsel %vm2417, %v2413, %v2419
  %v2422 = vld [vmem:[%s2 + $0x240] sm:$0xf]
  %v2423 = vld [vmem:[%s2 + $0x244] sm:$0xf]
  %v2424 = vld [vmem:[%s2 + $0x248] sm:$0xf]
  %v2425 = vld [vmem:[%s2 + $0x24c] sm:$0xf]
  %v2426 = vld [vmem:[%s2 + $0x250] sm:$0xf]
  %v2427 = vld [vmem:[%s2 + $0x254] sm:$0xf]
  %v2428 = vld [vmem:[%s2 + $0x258] sm:$0xf]
  %v2429 = vld [vmem:[%s2 + $0x25c] sm:$0xf]
  %v2430 = vld [vmem:[%s2 + $0x260] sm:$0xf]
  %v2431 = vld [vmem:[%s2 + $0x264] sm:$0xf]
  %v2432 = vld [vmem:[%s2 + $0x268] sm:$0xf]
  %v2433 = vld [vmem:[%s2 + $0x26c] sm:$0xf]
  %v2434 = vld [vmem:[%s2 + $0x270] sm:$0xf]
  %v2435 = vld [vmem:[%s2 + $0x274] sm:$0xf]
  %v2436 = vld [vmem:[%s2 + $0x278] sm:$0xf]
  %v2437 = vld [vmem:[%s2 + $0x27c] sm:$0xf]
  %v2438 = vld [vmem:[%s2 + $0x280] sm:$0xf]
  %v2439 = vld [vmem:[%s2 + $0x284] sm:$0xf]
  %v2440 = vpack.c.bf16 %v2361, %v2360
  %v2457 = vunpack.c.l.b16 %v2424
  %v2458 = vunpack.c.l.b16 %v2425
  %v2459 = vunpack.c.l.b16 %v2426
  %v2460 = vunpack.c.l.b16 %v2427
  %v2461 = vunpack.c.l.b16 %v2428
  %v2462 = vunpack.c.l.b16 %v2429
  %v2463 = vunpack.c.l.b16 %v2430
  %v2464 = vunpack.c.l.b16 %v2431
  %v2465 = vunpack.c.l.b16 %v2432
  %v2466 = vunpack.c.l.b16 %v2433
  %v2467 = vunpack.c.l.b16 %v2434
  %v2468 = vunpack.c.l.b16 %v2435
  %v2469 = vunpack.c.l.b16 %v2436
  %v2470 = vunpack.c.l.b16 %v2437
  %v2471 = vunpack.c.l.b16 %v2438
  %v2472 = vunpack.c.l.b16 %v2439
  %v2473 = vpack.c.b16 %v2458, %v2457
  %v2474 = vpack.c.b16 %v2460, %v2459
  %v2475 = vpack.c.b16 %v2462, %v2461
  %v2476 = vpack.c.b16 %v2464, %v2463
  %v2477 = vpack.c.b16 %v2466, %v2465
  %v2478 = vpack.c.b16 %v2468, %v2467
  %v2479 = vpack.c.b16 %v2470, %v2469
  %v2480 = vpack.c.b16 %v2472, %v2471
  %2489 = vmatprep.subr.bf16.mxu0 0
  %2490 = vmatpush1.bf16.msra.mxu0 %v2473
  %2491 = vmatprep.subr.bf16.mxu0 0
  %2492 = vmatpush1.bf16.msra.mxu0 %v2474
  %2493 = vmatprep.subr.bf16.mxu0 0
  %2494 = vmatpush1.bf16.msra.mxu0 %v2475
  %2495 = vmatprep.subr.bf16.mxu0 0
  %2496 = vmatpush1.bf16.msra.mxu0 %v2476
  %2497 = vmatprep.subr.bf16.mxu0 0
  %2498 = vmatpush1.bf16.msra.mxu0 %v2477
  %2499 = vmatprep.subr.bf16.mxu0 0
  %2500 = vmatpush1.bf16.msra.mxu0 %v2478
  %2501 = vmatprep.subr.bf16.mxu0 0
  %2502 = vmatpush1.bf16.msra.mxu0 %v2479
  %2503 = vmatprep.subr.bf16.mxu0 0
  %2504 = vmatpush1.bf16.msra.mxu0 %v2480
  %2505 = vmatprep.subr.bf16.mxu0 0
  %2506 = vmatpush1.bf16.msra.mxu0 0
  %2507 = vmatprep.subr.bf16.mxu0 0
  %2508 = vmatpush1.bf16.msra.mxu0 0
  %2509 = vmatprep.subr.bf16.mxu0 0
  %2510 = vmatpush1.bf16.msra.mxu0 0
  %2511 = vmatprep.subr.bf16.mxu0 0
  %2512 = vmatpush1.bf16.msra.mxu0 0
  %2513 = vmatprep.subr.bf16.mxu0 0
  %2514 = vmatpush1.bf16.msra.mxu0 0
  %2515 = vmatprep.subr.bf16.mxu0 0
  %2516 = vmatpush1.bf16.msra.mxu0 0
  %2517 = vmatprep.subr.bf16.mxu0 0
  %2518 = vmatpush1.bf16.msra.mxu0 0
  %2519 = vmatprep.subr.bf16.mxu0 0
  %2520 = vmatpush1.bf16.msra.mxu0 0
  %2521 = vmatprep.mubr.bf16.mxu0 0
  %2522 = vmatmul.mubr.bf16.gmra.mrb[0].mxu0 %v2440
  %v2523 = vpop.f32.mrb[0].mxu0
  %v2524 = vadd.f32 0.0, %v2523
  %v2525 = vpop.f32.mrb[0].mxu0
  %v2526 = vpop.f32.mrb[0].mxu0
  %v2527 = vadd.f32 0.0, %v2526
  %v2528 = vpop.f32.mrb[0].mxu0
  %2529 = vdwg.mxu0
  %v2530 = vpack.c.bf16 %v2527, %v2524
  %v2531 = vld [vmem:[%s3 + $0x188] sm:$0x1]
  %v2532 = vlaneseq
  %v2533 = vshrl.u32 %v2532, 7
  %v2534 = vsub.s32 0, %v2533
  %v2535 = vrot.slane %v2531, %v2534
  %v2538 = vunpack.c.l.b16 %v2422
  %v2539 = vunpack.c.l.b16 %v2423
  %v2540 = vpack.c.b16 %v2539, %v2538
  %v2542 = vsel %vm280, %v2540, 0
  %2544 = vmatprep.subr.bf16.mxu0 0
  %2545 = vmatpush1.bf16.msra.mxu0 %v2530
  %2546 = vmatprep.subr.bf16.mxu0 0
  %2547 = vmatpush1.bf16.msra.mxu0 0
  %2548 = vmatprep.subr.bf16.mxu0 0
  %2549 = vmatpush1.bf16.msra.mxu0 0
  %2550 = vmatprep.subr.bf16.mxu0 0
  %2551 = vmatpush1.bf16.msra.mxu0 0
  %2552 = vmatprep.subr.bf16.mxu0 0
  %2553 = vmatpush1.bf16.msra.mxu0 0
  %2554 = vmatprep.subr.bf16.mxu0 0
  %2555 = vmatpush1.bf16.msra.mxu0 0
  %2556 = vmatprep.subr.bf16.mxu0 0
  %2557 = vmatpush1.bf16.msra.mxu0 0
  %2558 = vmatprep.subr.bf16.mxu0 0
  %2559 = vmatpush1.bf16.msra.mxu0 0
  %2560 = vmatprep.subr.bf16.mxu0 0
  %2561 = vmatpush1.bf16.msra.mxu0 0
  %2562 = vmatprep.subr.bf16.mxu0 0
  %2563 = vmatpush1.bf16.msra.mxu0 0
  %2564 = vmatprep.subr.bf16.mxu0 0
  %2565 = vmatpush1.bf16.msra.mxu0 0
  %2566 = vmatprep.subr.bf16.mxu0 0
  %2567 = vmatpush1.bf16.msra.mxu0 0
  %2568 = vmatprep.subr.bf16.mxu0 0
  %2569 = vmatpush1.bf16.msra.mxu0 0
  %2570 = vmatprep.subr.bf16.mxu0 0
  %2571 = vmatpush1.bf16.msra.mxu0 0
  %2572 = vmatprep.subr.bf16.mxu0 0
  %2573 = vmatpush1.bf16.msra.mxu0 0
  %2574 = vmatprep.subr.bf16.mxu0 0
  %2575 = vmatpush1.bf16.msra.mxu0 0
  %2576 = vmatprep.mubr.bf16.mxu0 0
  %2577 = vmatmul.mubr.bf16.gmra.mrb[0].mxu0 %v2542
  %v2578 = vpop.f32.mrb[0].mxu0
  %v2579 = vadd.f32 %v2535, %v2578
  %v2580 = vpop.f32.mrb[0].mxu0
  %v2581 = vpop.f32.mrb[0].mxu0
  %v2582 = vadd.f32 %v2535, %v2581
  %v2583 = vpop.f32.mrb[0].mxu0
  %2584 = vdwg.mxu0
  %v2585 = vld [vmem:[%s2 + $0x290] sm:$0xf]
  %v2586 = vld [vmem:[%s2 + $0x294] sm:$0xf]
  %v2587 = vld [vmem:[%s2 + $0x298] sm:$0xf]
  %v2588 = vld [vmem:[%s2 + $0x29c] sm:$0xf]
  %v2589 = vld [vmem:[%s2 + $0x2a0] sm:$0xf]
  %v2590 = vld [vmem:[%s2 + $0x2a4] sm:$0xf]
  %v2591 = vld [vmem:[%s2 + $0x2a8] sm:$0xf]
  %v2592 = vld [vmem:[%s2 + $0x2ac] sm:$0xf]
  %v2593 = vld [vmem:[%s2 + $0x2b0] sm:$0xf]
  %v2594 = vld [vmem:[%s2 + $0x2b4] sm:$0xf]
  %v2595 = vld [vmem:[%s2 + $0x2b8] sm:$0xf]
  %v2596 = vld [vmem:[%s2 + $0x2bc] sm:$0xf]
  %v2597 = vld [vmem:[%s2 + $0x2c0] sm:$0xf]
  %v2598 = vld [vmem:[%s2 + $0x2c4] sm:$0xf]
  %v2599 = vld [vmem:[%s2 + $0x2c8] sm:$0xf]
  %v2600 = vld [vmem:[%s2 + $0x2cc] sm:$0xf]
  %v2601 = vld [vmem:[%s2 + $0x2d0] sm:$0xf]
  %v2602 = vld [vmem:[%s2 + $0x2d4] sm:$0xf]
  %v2603 = vpack.c.bf16 %v2421, %v2420
  %v2620 = vunpack.c.l.b16 %v2587
  %v2621 = vunpack.c.l.b16 %v2588
  %v2622 = vunpack.c.l.b16 %v2589
  %v2623 = vunpack.c.l.b16 %v2590
  %v2624 = vunpack.c.l.b16 %v2591
  %v2625 = vunpack.c.l.b16 %v2592
  %v2626 = vunpack.c.l.b16 %v2593
  %v2627 = vunpack.c.l.b16 %v2594
  %v2628 = vunpack.c.l.b16 %v2595
  %v2629 = vunpack.c.l.b16 %v2596
  %v2630 = vunpack.c.l.b16 %v2597
  %v2631 = vunpack.c.l.b16 %v2598
  %v2632 = vunpack.c.l.b16 %v2599
  %v2633 = vunpack.c.l.b16 %v2600
  %v2634 = vunpack.c.l.b16 %v2601
  %v2635 = vunpack.c.l.b16 %v2602
  %v2636 = vpack.c.b16 %v2621, %v2620
  %v2637 = vpack.c.b16 %v2623, %v2622
  %v2638 = vpack.c.b16 %v2625, %v2624
  %v2639 = vpack.c.b16 %v2627, %v2626
  %v2640 = vpack.c.b16 %v2629, %v2628
  %v2641 = vpack.c.b16 %v2631, %v2630
  %v2642 = vpack.c.b16 %v2633, %v2632
  %v2643 = vpack.c.b16 %v2635, %v2634
  %2652 = vmatprep.subr.bf16.mxu0 0
  %2653 = vmatpush1.bf16.msra.mxu0 %v2636
  %2654 = vmatprep.subr.bf16.mxu0 0
  %2655 = vmatpush1.bf16.msra.mxu0 %v2637
  %2656 = vmatprep.subr.bf16.mxu0 0
  %2657 = vmatpush1.bf16.msra.mxu0 %v2638
  %2658 = vmatprep.subr.bf16.mxu0 0
  %2659 = vmatpush1.bf16.msra.mxu0 %v2639
  %2660 = vmatprep.subr.bf16.mxu0 0
  %2661 = vmatpush1.bf16.msra.mxu0 %v2640
  %2662 = vmatprep.subr.bf16.mxu0 0
  %2663 = vmatpush1.bf16.msra.mxu0 %v2641
  %2664 = vmatprep.subr.bf16.mxu0 0
  %2665 = vmatpush1.bf16.msra.mxu0 %v2642
  %2666 = vmatprep.subr.bf16.mxu0 0
  %2667 = vmatpush1.bf16.msra.mxu0 %v2643
  %2668 = vmatprep.subr.bf16.mxu0 0
  %2669 = vmatpush1.bf16.msra.mxu0 0
  %2670 = vmatprep.subr.bf16.mxu0 0
  %2671 = vmatpush1.bf16.msra.mxu0 0
  %2672 = vmatprep.subr.bf16.mxu0 0
  %2673 = vmatpush1.bf16.msra.mxu0 0
  %2674 = vmatprep.subr.bf16.mxu0 0
  %2675 = vmatpush1.bf16.msra.mxu0 0
  %2676 = vmatprep.subr.bf16.mxu0 0
  %2677 = vmatpush1.bf16.msra.mxu0 0
  %2678 = vmatprep.subr.bf16.mxu0 0
  %2679 = vmatpush1.bf16.msra.mxu0 0
  %2680 = vmatprep.subr.bf16.mxu0 0
  %2681 = vmatpush1.bf16.msra.mxu0 0
  %2682 = vmatprep.subr.bf16.mxu0 0
  %2683 = vmatpush1.bf16.msra.mxu0 0
  %2684 = vmatprep.mubr.bf16.mxu0 0
  %2685 = vmatmul.mubr.bf16.gmra.mrb[0].mxu0 %v2603
  %v2686 = vpop.f32.mrb[0].mxu0
  %v2687 = vadd.f32 0.0, %v2686
  %v2688 = vpop.f32.mrb[0].mxu0
  %v2689 = vpop.f32.mrb[0].mxu0
  %v2690 = vadd.f32 0.0, %v2689
  %v2691 = vpop.f32.mrb[0].mxu0
  %2692 = vdwg.mxu0
  %v2693 = vpack.c.bf16 %v2690, %v2687
  %v2694 = vld [vmem:[%s3 + $0x1a0] sm:$0x1]
  %v2695 = vlaneseq
  %v2696 = vshrl.u32 %v2695, 7
  %v2697 = vsub.s32 0, %v2696
  %v2698 = vrot.slane %v2694, %v2697
  %v2701 = vunpack.c.l.b16 %v2585
  %v2702 = vunpack.c.l.b16 %v2586
  %v2703 = vpack.c.b16 %v2702, %v2701
  %v2705 = vsel %vm280, %v2703, 0
  %2707 = vmatprep.subr.bf16.mxu0 0
  %2708 = vmatpush1.bf16.msra.mxu0 %v2693
  %2709 = vmatprep.subr.bf16.mxu0 0
  %2710 = vmatpush1.bf16.msra.mxu0 0
  %2711 = vmatprep.subr.bf16.mxu0 0
  %2712 = vmatpush1.bf16.msra.mxu0 0
  %2713 = vmatprep.subr.bf16.mxu0 0
  %2714 = vmatpush1.bf16.msra.mxu0 0
  %2715 = vmatprep.subr.bf16.mxu0 0
  %2716 = vmatpush1.bf16.msra.mxu0 0
  %2717 = vmatprep.subr.bf16.mxu0 0
  %2718 = vmatpush1.bf16.msra.mxu0 0
  %2719 = vmatprep.subr.bf16.mxu0 0
  %2720 = vmatpush1.bf16.msra.mxu0 0
  %2721 = vmatprep.subr.bf16.mxu0 0
  %2722 = vmatpush1.bf16.msra.mxu0 0
  %2723 = vmatprep.subr.bf16.mxu0 0
  %2724 = vmatpush1.bf16.msra.mxu0 0
  %2725 = vmatprep.subr.bf16.mxu0 0
  %2726 = vmatpush1.bf16.msra.mxu0 0
  %2727 = vmatprep.subr.bf16.mxu0 0
  %2728 = vmatpush1.bf16.msra.mxu0 0
  %2729 = vmatprep.subr.bf16.mxu0 0
  %2730 = vmatpush1.bf16.msra.mxu0 0
  %2731 = vmatprep.subr.bf16.mxu0 0
  %2732 = vmatpush1.bf16.msra.mxu0 0
  %2733 = vmatprep.subr.bf16.mxu0 0
  %2734 = vmatpush1.bf16.msra.mxu0 0
  %2735 = vmatprep.subr.bf16.mxu0 0
  %2736 = vmatpush1.bf16.msra.mxu0 0
  %2737 = vmatprep.subr.bf16.mxu0 0
  %2738 = vmatpush1.bf16.msra.mxu0 0
  %2739 = vmatprep.mubr.bf16.mxu0 0
  %2740 = vmatmul.mubr.bf16.gmra.mrb[0].mxu0 %v2705
  %v2741 = vpop.f32.mrb[0].mxu0
  %v2742 = vadd.f32 %v2698, %v2741
  %v2743 = vpop.f32.mrb[0].mxu0
  %v2744 = vpop.f32.mrb[0].mxu0
  %v2745 = vadd.f32 %v2698, %v2744
  %v2746 = vpop.f32.mrb[0].mxu0
  %2747 = vdwg.mxu0
  %v2748 = vld [vmem:[%s2 + $0x2d8] sm:$0x3]
  %v2749 = vpack.c.bf16 %v2582, %v2579
  %v2750 = vld [vmem:[%s3 + $0x1a8] sm:$0xf]
  %2752 = vset.pattern.permute.xlu0 0
  %2753 = vperm.xlu0 %2752, %v2750
  %v2754 = vpop.permute.xlu0 %2753
  %v2757 = vsel %vm280, %v2748, 0
  %2759 = vmatprep.subr.bf16.mxu0 0
  %2760 = vmatpush1.bf16.msra.mxu0 %v2749
  %2761 = vmatprep.subr.bf16.mxu0 0
  %2762 = vmatpush1.bf16.msra.mxu0 0
  %2763 = vmatprep.subr.bf16.mxu0 0
  %2764 = vmatpush1.bf16.msra.mxu0 0
  %2765 = vmatprep.subr.bf16.mxu0 0
  %2766 = vmatpush1.bf16.msra.mxu0 0
  %2767 = vmatprep.subr.bf16.mxu0 0
  %2768 = vmatpush1.bf16.msra.mxu0 0
  %2769 = vmatprep.subr.bf16.mxu0 0
  %2770 = vmatpush1.bf16.msra.mxu0 0
  %2771 = vmatprep.subr.bf16.mxu0 0
  %2772 = vmatpush1.bf16.msra.mxu0 0
  %2773 = vmatprep.subr.bf16.mxu0 0
  %2774 = vmatpush1.bf16.msra.mxu0 0
  %2775 = vmatprep.subr.bf16.mxu0 0
  %2776 = vmatpush1.bf16.msra.mxu0 0
  %2777 = vmatprep.subr.bf16.mxu0 0
  %2778 = vmatpush1.bf16.msra.mxu0 0
  %2779 = vmatprep.subr.bf16.mxu0 0
  %2780 = vmatpush1.bf16.msra.mxu0 0
  %2781 = vmatprep.subr.bf16.mxu0 0
  %2782 = vmatpush1.bf16.msra.mxu0 0
  %2783 = vmatprep.subr.bf16.mxu0 0
  %2784 = vmatpush1.bf16.msra.mxu0 0
  %2785 = vmatprep.subr.bf16.mxu0 0
  %2786 = vmatpush1.bf16.msra.mxu0 0
  %2787 = vmatprep.subr.bf16.mxu0 0
  %2788 = vmatpush1.bf16.msra.mxu0 0
  %2789 = vmatprep.subr.bf16.mxu0 0
  %2790 = vmatpush1.bf16.msra.mxu0 0
  %2791 = vmatprep.mubr.bf16.mxu0 0
  %2792 = vmatmul.mubr.bf16.gmra.mrb[0].mxu0 %v2757
  %v2793 = vpop.f32.mrb[0].mxu0
  %v2794 = vadd.f32 %v2754, %v2793
  %v2795 = vpop.f32.mrb[0].mxu0
  %v2796 = vpop.f32.mrb[0].mxu0
  %v2797 = vpop.f32.mrb[0].mxu0
  %2798 = vdwg.mxu0
  %v2799 = vld [vmem:[%s2 + $0x2e0] sm:$0x3]
  %v2800 = vpack.c.bf16 %v2745, %v2742
  %v2801 = vld [vmem:[%s3 + $0x1b0] sm:$0xf]
  %2803 = vset.pattern.permute.xlu0 0
  %2804 = vperm.xlu0 %2803, %v2801
  %v2805 = vpop.permute.xlu0 %2804
  %v2808 = vsel %vm280, %v2799, 0
  %2810 = vmatprep.subr.bf16.mxu0 0
  %2811 = vmatpush1.bf16.msra.mxu0 %v2800
  %2812 = vmatprep.subr.bf16.mxu0 0
  %2813 = vmatpush1.bf16.msra.mxu0 0
  %2814 = vmatprep.subr.bf16.mxu0 0
  %2815 = vmatpush1.bf16.msra.mxu0 0
  %2816 = vmatprep.subr.bf16.mxu0 0
  %2817 = vmatpush1.bf16.msra.mxu0 0
  %2818 = vmatprep.subr.bf16.mxu0 0
  %2819 = vmatpush1.bf16.msra.mxu0 0
  %2820 = vmatprep.subr.bf16.mxu0 0
  %2821 = vmatpush1.bf16.msra.mxu0 0
  %2822 = vmatprep.subr.bf16.mxu0 0
  %2823 = vmatpush1.bf16.msra.mxu0 0
  %2824 = vmatprep.subr.bf16.mxu0 0
  %2825 = vmatpush1.bf16.msra.mxu0 0
  %2826 = vmatprep.subr.bf16.mxu0 0
  %2827 = vmatpush1.bf16.msra.mxu0 0
  %2828 = vmatprep.subr.bf16.mxu0 0
  %2829 = vmatpush1.bf16.msra.mxu0 0
  %2830 = vmatprep.subr.bf16.mxu0 0
  %2831 = vmatpush1.bf16.msra.mxu0 0
  %2832 = vmatprep.subr.bf16.mxu0 0
  %2833 = vmatpush1.bf16.msra.mxu0 0
  %2834 = vmatprep.subr.bf16.mxu0 0
  %2835 = vmatpush1.bf16.msra.mxu0 0
  %2836 = vmatprep.subr.bf16.mxu0 0
  %2837 = vmatpush1.bf16.msra.mxu0 0
  %2838 = vmatprep.subr.bf16.mxu0 0
  %2839 = vmatpush1.bf16.msra.mxu0 0
  %2840 = vmatprep.subr.bf16.mxu0 0
  %2841 = vmatpush1.bf16.msra.mxu0 0
  %2842 = vmatprep.mubr.bf16.mxu0 0
  %2843 = vmatmul.mubr.bf16.gmra.mrb[0].mxu0 %v2808
  %v2844 = vpop.f32.mrb[0].mxu0
  %v2845 = vadd.f32 %v2805, %v2844
  %v2846 = vpop.f32.mrb[0].mxu0
  %v2847 = vpop.f32.mrb[0].mxu0
  %v2848 = vpop.f32.mrb[0].mxu0
  %2849 = vdwg.mxu0
  %v2850 = vld [vmem:[%s3 + $0x1b8] sm:$0xff]
  %v2851 = vld [vmem:[%s3 + $0x1c0] sm:$0xff]
  %v2852 = vld [vmem:[%s3 + $0x1c8] sm:$0xf]
  %2854 = vset.pattern.permute.xlu0 0
  %2855 = vperm.xlu0 %2854, %v2850
  %v2856 = vpop.permute.xlu0 %2855
  %2859 = vset.pattern.permute.xlu0 0
  %2860 = vperm.xlu0 %2859, %v2851
  %v2861 = vpop.permute.xlu0 %2860
  %2864 = vset.pattern.permute.xlu0 0
  %2865 = vperm.xlu0 %2864, %v2852
  %v2866 = vpop.permute.xlu0 %2865
  %v2868 = vmul.f32 %v2579, %v2856
  %v2869 = vmul.f32 %v2582, %v2861
  %v2870 = vmul.f32 %v2794, %v2866
  %2871 = vmax.xlane.f32.xlu0 %v2868
  %v2872 = vpop.xlane.xlu0 %2871
  %2873 = vmax.xlane.f32.xlu0 %v2869
  %v2874 = vpop.xlane.xlu0 %2873
  %v2875 = vsel %vm577, %v2870, -inf
  %2876 = vmax.xlane.f32.xlu0 %v2875
  %v2877 = vpop.xlane.xlu0 %2876
  %v2878 = vsub.f32 %v2868, %v2872
  %v2879 = vsub.f32 %v2869, %v2874
  %v2880 = vsub.f32 %v2870, %v2877
  %v2881 = vmul.f32 %v2878, 1.442695
  %v2882 = vpow.pop %v2881
  %v2883 = vmul.f32 %v2879, 1.442695
  %v2884 = vpow.pop %v2883
  %v2885 = vmul.f32 %v2880, 1.442695
  %v2886 = vpow.pop %v2885
  %v2887 = vpack.c.bf16 %v2884, %v2882
  %v2888 = vpack.c.bf16 %v2886, %v2886
  %2889 = vmatprep.subr.bf16.mxu0 0
  %2890 = vmatpush1.bf16.msra.mxu0 %v1420
  %2891 = vmatprep.subr.bf16.mxu0 0
  %2892 = vmatpush1.bf16.msra.mxu0 %v1421
  %2893 = vmatprep.subr.bf16.mxu0 0
  %2894 = vmatpush1.bf16.msra.mxu0 %v1422
  %2895 = vmatprep.subr.bf16.mxu0 0
  %2896 = vmatpush1.bf16.msra.mxu0 %v1423
  %2897 = vmatprep.subr.bf16.mxu0 0
  %2898 = vmatpush1.bf16.msra.mxu0 %v1424
  %2899 = vmatprep.subr.bf16.mxu0 0
  %2900 = vmatpush1.bf16.msra.mxu0 %v1425
  %2901 = vmatprep.subr.bf16.mxu0 0
  %2902 = vmatpush1.bf16.msra.mxu0 %v1426
  %2903 = vmatprep.subr.bf16.mxu0 0
  %2904 = vmatpush1.bf16.msra.mxu0 %v1427
  %2905 = vmatprep.subr.bf16.mxu0 0
  %2906 = vmatpush1.bf16.msra.mxu0 0
  %2907 = vmatprep.subr.bf16.mxu0 0
  %2908 = vmatpush1.bf16.msra.mxu0 0
  %2909 = vmatprep.subr.bf16.mxu0 0
  %2910 = vmatpush1.bf16.msra.mxu0 0
  %2911 = vmatprep.subr.bf16.mxu0 0
  %2912 = vmatpush1.bf16.msra.mxu0 0
  %2913 = vmatprep.subr.bf16.mxu0 0
  %2914 = vmatpush1.bf16.msra.mxu0 0
  %2915 = vmatprep.subr.bf16.mxu0 0
  %2916 = vmatpush1.bf16.msra.mxu0 0
  %2917 = vmatprep.subr.bf16.mxu0 0
  %2918 = vmatpush1.bf16.msra.mxu0 0
  %2919 = vmatprep.subr.bf16.mxu0 0
  %2920 = vmatpush1.bf16.msra.mxu0 0
  %2921 = vmatprep.mubr.bf16.mxu0 0
  %2922 = vmatmul.mubr.bf16.gmra.mrb[0].mxu0 %v2887
  %v2923 = vpop.f32.mrb[0].mxu0
  %v2924 = vadd.f32 1e-30, %v2923
  %v2925 = vpop.f32.mrb[0].mxu0
  %v2926 = vpop.f32.mrb[0].mxu0
  %v2927 = vadd.f32 1e-30, %v2926
  %v2928 = vpop.f32.mrb[0].mxu0
  %2929 = vmatprep.mubr.bf16.mxu0 0
  %2930 = vmatmul.mubr.bf16.gmra.mrb[0].mxu0 %v2888
  %v2931 = vpop.f32.mrb[0].mxu0
  %v2932 = vadd.f32 1e-30, %v2931
  %v2933 = vpop.f32.mrb[0].mxu0
  %v2934 = vpop.f32.mrb[0].mxu0
  %v2935 = vpop.f32.mrb[0].mxu0
  %2936 = vdwg.mxu0
  %v2937 = vrcp.pop %v2924
  %v2938 = vrcp.pop %v2927
  %v2939 = vrcp.pop %v2932
  %v2940 = vmul.f32 %v2882, %v2937
  %v2941 = vmul.f32 %v2884, %v2938
  %v2942 = vmul.f32 %v2886, %v2939
  %v2943 = vmul.f32 %v2940, %v2742
  %v2944 = vmul.f32 %v2941, %v2745
  %v2945 = vmul.f32 %v2942, %v2845
  %v2946 = vld [vmem:[%s2 + $0x88] sm:$0xf]
  %v2947 = vld [vmem:[%s2 + $0x8c] sm:$0xf]
  %v2948 = vld [vmem:[%s2 + $0x90] sm:$0xf]
  %v2949 = vld [vmem:[%s2 + $0x94] sm:$0xf]
  %v2950 = vld [vmem:[%s2 + $0x98] sm:$0xf]
  %v2951 = vld [vmem:[%s2 + $0x9c] sm:$0xf]
  %v2952 = vld [vmem:[%s2 + $0xa0] sm:$0xf]
  %v2953 = vld [vmem:[%s2 + $0xa4] sm:$0xf]
  %v2954 = vld [vmem:[%s2 + $0xa8] sm:$0xf]
  %v2955 = vld [vmem:[%s2 + $0xac] sm:$0xf]
  %v2956 = vld [vmem:[%s2 + $0xb0] sm:$0xf]
  %v2957 = vld [vmem:[%s2 + $0xb4] sm:$0xf]
  %v2958 = vld [vmem:[%s2 + $0xb8] sm:$0xf]
  %v2959 = vld [vmem:[%s2 + $0xbc] sm:$0xf]
  %v2960 = vld [vmem:[%s2 + $0xc0] sm:$0xf]
  %v2961 = vld [vmem:[%s2 + $0xc4] sm:$0xf]
  %v2962 = vpack.c.bf16 %v2941, %v2940
  %v2963 = vpack.c.bf16 %v2942, %v2942
  %v2964 = vld [vmem:[%s2 + $0xc8] sm:$0xf]
  %v2965 = vld [vmem:[%s2 + $0xcc] sm:$0xf]
  %v2966 = vld [vmem:[%s2 + $0xd0] sm:$0xf]
  %v2967 = vld [vmem:[%s2 + $0xd4] sm:$0xf]
  %v2968 = vld [vmem:[%s2 + $0xd8] sm:$0xf]
  %v2969 = vld [vmem:[%s2 + $0xdc] sm:$0xf]
  %v2970 = vld [vmem:[%s2 + $0xe0] sm:$0xf]
  %v2971 = vld [vmem:[%s2 + $0xe4] sm:$0xf]
  %v2972 = vld [vmem:[%s2 + $0xe8] sm:$0xf]
  %v2973 = vld [vmem:[%s2 + $0xec] sm:$0xf]
  %v2974 = vld [vmem:[%s2 + $0xf0] sm:$0xf]
  %v2975 = vld [vmem:[%s2 + $0xf4] sm:$0xf]
  %v2976 = vld [vmem:[%s2 + $0xf8] sm:$0xf]
  %v2977 = vld [vmem:[%s2 + $0xfc] sm:$0xf]
  %v2978 = vld [vmem:[%s2 + $0x100] sm:$0xf]
  %v2979 = vld [vmem:[%s2 + $0x104] sm:$0xf]
  %v2980 = vpack.c.bf16 %v2944, %v2943
  %v2981 = vpack.c.bf16 %v2945, %v2945
  %v2998 = vunpack.c.l.b16 %v2964
  %v2999 = vunpack.c.l.b16 %v2965
  %v3000 = vunpack.c.l.b16 %v2966
  %v3001 = vunpack.c.l.b16 %v2967
  %v3002 = vunpack.c.l.b16 %v2968
  %v3003 = vunpack.c.l.b16 %v2969
  %v3004 = vunpack.c.l.b16 %v2970
  %v3005 = vunpack.c.l.b16 %v2971
  %v3006 = vunpack.c.l.b16 %v2972
  %v3007 = vunpack.c.l.b16 %v2973
  %v3008 = vunpack.c.l.b16 %v2974
  %v3009 = vunpack.c.l.b16 %v2975
  %v3010 = vunpack.c.l.b16 %v2976
  %v3011 = vunpack.c.l.b16 %v2977
  %v3012 = vunpack.c.l.b16 %v2978
  %v3013 = vunpack.c.l.b16 %v2979
  %v3014 = vpack.c.b16 %v2999, %v2998
  %v3015 = vpack.c.b16 %v3001, %v3000
  %v3016 = vpack.c.b16 %v3003, %v3002
  %v3017 = vpack.c.b16 %v3005, %v3004
  %v3018 = vpack.c.b16 %v3007, %v3006
  %v3019 = vpack.c.b16 %v3009, %v3008
  %v3020 = vpack.c.b16 %v3011, %v3010
  %v3021 = vpack.c.b16 %v3013, %v3012
  %3030 = vmatprep.subr.bf16.mxu0 0
  %3031 = vmatpush1.bf16.msra.mxu0 %v3014
  %3032 = vmatprep.subr.bf16.mxu0 0
  %3033 = vmatpush1.bf16.msra.mxu0 %v3015
  %3034 = vmatprep.subr.bf16.mxu0 0
  %3035 = vmatpush1.bf16.msra.mxu0 %v3016
  %3036 = vmatprep.subr.bf16.mxu0 0
  %3037 = vmatpush1.bf16.msra.mxu0 %v3017
  %3038 = vmatprep.subr.bf16.mxu0 0
  %3039 = vmatpush1.bf16.msra.mxu0 %v3018
  %3040 = vmatprep.subr.bf16.mxu0 0
  %3041 = vmatpush1.bf16.msra.mxu0 %v3019
  %3042 = vmatprep.subr.bf16.mxu0 0
  %3043 = vmatpush1.bf16.msra.mxu0 %v3020
  %3044 = vmatprep.subr.bf16.mxu0 0
  %3045 = vmatpush1.bf16.msra.mxu0 %v3021
  %3046 = vmatprep.subr.bf16.mxu0 0
  %3047 = vmatpush1.bf16.msra.mxu0 0
  %3048 = vmatprep.subr.bf16.mxu0 0
  %3049 = vmatpush1.bf16.msra.mxu0 0
  %3050 = vmatprep.subr.bf16.mxu0 0
  %3051 = vmatpush1.bf16.msra.mxu0 0
  %3052 = vmatprep.subr.bf16.mxu0 0
  %3053 = vmatpush1.bf16.msra.mxu0 0
  %3054 = vmatprep.subr.bf16.mxu0 0
  %3055 = vmatpush1.bf16.msra.mxu0 0
  %3056 = vmatprep.subr.bf16.mxu0 0
  %3057 = vmatpush1.bf16.msra.mxu0 0
  %3058 = vmatprep.subr.bf16.mxu0 0
  %3059 = vmatpush1.bf16.msra.mxu0 0
  %3060 = vmatprep.subr.bf16.mxu0 0
  %3061 = vmatpush1.bf16.msra.mxu0 0
  %3062 = vmatprep.mubr.bf16.mxu0 0
  %3063 = vmatmul.mubr.bf16.gmra.mrb[0].mxu0 %v2980
  %v3064 = vpop.f32.mrb[0].mxu0
  %v3065 = vadd.f32 0.0, %v3064
  %v3066 = vpop.f32.mrb[0].mxu0
  %v3067 = vpop.f32.mrb[0].mxu0
  %v3068 = vadd.f32 0.0, %v3067
  %v3069 = vpop.f32.mrb[0].mxu0
  %3070 = vmatprep.mubr.bf16.mxu0 0
  %3071 = vmatmul.mubr.bf16.gmra.mrb[0].mxu0 %v2981
  %v3072 = vpop.f32.mrb[0].mxu0
  %v3073 = vadd.f32 0.0, %v3072
  %v3074 = vpop.f32.mrb[0].mxu0
  %v3075 = vpop.f32.mrb[0].mxu0
  %v3076 = vpop.f32.mrb[0].mxu0
  %3077 = vdwg.mxu0
  %v3094 = vunpack.c.l.b16 %v2946
  %v3095 = vunpack.c.l.b16 %v2947
  %v3096 = vunpack.c.l.b16 %v2948
  %v3097 = vunpack.c.l.b16 %v2949
  %v3098 = vunpack.c.l.b16 %v2950
  %v3099 = vunpack.c.l.b16 %v2951
  %v3100 = vunpack.c.l.b16 %v2952
  %v3101 = vunpack.c.l.b16 %v2953
  %v3102 = vunpack.c.l.b16 %v2954
  %v3103 = vunpack.c.l.b16 %v2955
  %v3104 = vunpack.c.l.b16 %v2956
  %v3105 = vunpack.c.l.b16 %v2957
  %v3106 = vunpack.c.l.b16 %v2958
  %v3107 = vunpack.c.l.b16 %v2959
  %v3108 = vunpack.c.l.b16 %v2960
  %v3109 = vunpack.c.l.b16 %v2961
  %v3110 = vpack.c.b16 %v3095, %v3094
  %v3111 = vpack.c.b16 %v3097, %v3096
  %v3112 = vpack.c.b16 %v3099, %v3098
  %v3113 = vpack.c.b16 %v3101, %v3100
  %v3114 = vpack.c.b16 %v3103, %v3102
  %v3115 = vpack.c.b16 %v3105, %v3104
  %v3116 = vpack.c.b16 %v3107, %v3106
  %v3117 = vpack.c.b16 %v3109, %v3108
  %3126 = vmatprep.subr.bf16.mxu0 0
  %3127 = vmatpush1.bf16.msra.mxu0 %v3110
  %3128 = vmatprep.subr.bf16.mxu0 0
  %3129 = vmatpush1.bf16.msra.mxu0 %v3111
  %3130 = vmatprep.subr.bf16.mxu0 0
  %3131 = vmatpush1.bf16.msra.mxu0 %v3112
  %3132 = vmatprep.subr.bf16.mxu0 0
  %3133 = vmatpush1.bf16.msra.mxu0 %v3113
  %3134 = vmatprep.subr.bf16.mxu0 0
  %3135 = vmatpush1.bf16.msra.mxu0 %v3114
  %3136 = vmatprep.subr.bf16.mxu0 0
  %3137 = vmatpush1.bf16.msra.mxu0 %v3115
  %3138 = vmatprep.subr.bf16.mxu0 0
  %3139 = vmatpush1.bf16.msra.mxu0 %v3116
  %3140 = vmatprep.subr.bf16.mxu0 0
  %3141 = vmatpush1.bf16.msra.mxu0 %v3117
  %3142 = vmatprep.subr.bf16.mxu0 0
  %3143 = vmatpush1.bf16.msra.mxu0 0
  %3144 = vmatprep.subr.bf16.mxu0 0
  %3145 = vmatpush1.bf16.msra.mxu0 0
  %3146 = vmatprep.subr.bf16.mxu0 0
  %3147 = vmatpush1.bf16.msra.mxu0 0
  %3148 = vmatprep.subr.bf16.mxu0 0
  %3149 = vmatpush1.bf16.msra.mxu0 0
  %3150 = vmatprep.subr.bf16.mxu0 0
  %3151 = vmatpush1.bf16.msra.mxu0 0
  %3152 = vmatprep.subr.bf16.mxu0 0
  %3153 = vmatpush1.bf16.msra.mxu0 0
  %3154 = vmatprep.subr.bf16.mxu0 0
  %3155 = vmatpush1.bf16.msra.mxu0 0
  %3156 = vmatprep.subr.bf16.mxu0 0
  %3157 = vmatpush1.bf16.msra.mxu0 0
  %3158 = vmatprep.mubr.bf16.mxu0 0
  %3159 = vmatmul.mubr.bf16.gmra.mrb[0].mxu0 %v2962
  %v3160 = vpop.f32.mrb[0].mxu0
  %v3161 = vadd.f32 %v3065, %v3160
  %v3162 = vpop.f32.mrb[0].mxu0
  %v3163 = vpop.f32.mrb[0].mxu0
  %v3164 = vadd.f32 %v3068, %v3163
  %v3165 = vpop.f32.mrb[0].mxu0
  %3166 = vmatprep.mubr.bf16.mxu0 0
  %3167 = vmatmul.mubr.bf16.gmra.mrb[0].mxu0 %v2963
  %v3168 = vpop.f32.mrb[0].mxu0
  %v3169 = vadd.f32 %v3073, %v3168
  %v3170 = vpop.f32.mrb[0].mxu0
  %v3171 = vpop.f32.mrb[0].mxu0
  %v3172 = vpop.f32.mrb[0].mxu0
  %3173 = vdwg.mxu0
  %v3174 = vld [vmem:[%s3 + $0x10] sm:$0x1]
  %v3175 = vlaneseq
  %v3176 = vshrl.u32 %v3175, 7
  %v3177 = vsub.s32 0, %v3176
  %v3178 = vrot.slane %v3174, %v3177
  %v3179 = vadd.f32 %v3161, %v3178
  %v3180 = vadd.f32 %v3164, %v3178
  %v3181 = vadd.f32 %v3169, %v3178
  %3182 = vst [vmem:[%s4] sm:$0xff] %v3179
  %3183 = vst [vmem:[%s4 + $0x8] sm:$0xff] %v3180
  %3184 = vst [vmem:[%s4 + $0x10] sm:$0xf] %v3181
  %3185 = vst [vmem:[%s4 + $0x18] sm:$0xff] %v2940
  %3186 = vst [vmem:[%s4 + $0x20] sm:$0xff] %v2941
  %3187 = vst [vmem:[%s4 + $0x28] sm:$0xf] %v2942
  %3188 = vst [vmem:[%s4 + $0x30] sm:$0xff] %v2943
  %3189 = vst [vmem:[%s4 + $0x38] sm:$0xff] %v2944
  %3190 = vst [vmem:[%s4 + $0x40] sm:$0xf] %v2945
  // Predicated region
  $region18: #{forward.1} parent=0 // pred_check
    _
  $region19: #{forward.1} parent=0 // pred_check_branch
    %3192 = sbr.rel (0) target = $region21
  $region20: #{forward.1} parent=0 // pred_region
    _
  $region21: #{forward.1} parent=0 // pred_fallthru
    _
  // Predicated region
  $region22: #{forward.1} parent=0 // pred_check
    _
  $region23: #{forward.1} parent=0 // pred_check_branch
    %3194 = sbr.rel (0) target = $region25
  $region24: #{forward.1} parent=0 // pred_region
    _
  $region25: #{forward.1} parent=0 // pred_fallthru
    _

</llo_original>
